<compile_context>
chip_gen: v5e
topology: v5e:2x2
jax: 0.10.0
libtpu: 0.0.40
codegen_flags: <defaults>
</compile_context>

<pallas_src>
import functools

import numpy as np

import jax
import jax.numpy as jnp
from jax.experimental import pallas as pl
from jax.experimental.pallas import tpu as pltpu

F32 = jnp.float32
_EPS = 1e-5


def _sigmoid(x):
    # logistic(x) == 0.5 * (tanh(x/2) + 1): single EUP tanh, no exp+divide on the VPU path.
    return 0.5 * (jnp.tanh(0.5 * x) + 1.0)


def _bn_relu_groups(a, gamma_ref, beta_ref, n_ch, width):
    """BatchNorm1d (training mode, batch stats, biased var) + ReLU per lane-group channel."""
    pieces = []
    for c in range(n_ch):
        sl = a[:, c * width:(c + 1) * width]
        mu = jnp.mean(sl, keepdims=True)
        var = jnp.mean((sl - mu) ** 2, keepdims=True)
        y = (sl - mu) * jax.lax.rsqrt(var + _EPS) * gamma_ref[c] + beta_ref[c]
        pieces.append(jnp.maximum(y, 0.0))
    return jnp.concatenate(pieces, axis=1)


def _net_kernel(x_ref, w1mat_ref, b1row_ref, w2mat_ref, b2row_ref,
                wenc_ref, benc_ref, whs_ref,
                w1dc_ref, w1x_ref, b1d_ref, w2t_ref,
                wdl_ref, bdl_ref, fcw_ref, ffw_ref, ffb_ref,
                gseg_ref, grep_ref, gmod_ref,
                g1_ref, be1_ref, g2_ref, be2_ref,
                wx_ref, eab_ref, dab_ref, fcb_ref,
                out_ref, *, bs, T, C1, C2, L1, Lout, E, D):
    # ---------------- CNN1: conv1(matmul) -> BN+ReLU -> [pool+conv2](matmul) -> BN+ReLU ------
    x = x_ref[...]                                                        # (T*bs, ns), rows (t,b)
    h1 = jnp.dot(x, w1mat_ref[...], preferred_element_type=F32) + b1row_ref[...]
    h1 = _bn_relu_groups(h1, g1_ref, be1_ref, C1, L1)                     # (N, C1*L1)
    h2 = jnp.dot(h1, w2mat_ref[...], preferred_element_type=F32) + b2row_ref[...]
    feat = _bn_relu_groups(h2, g2_ref, be2_ref, C2, Lout)                 # (N, m), m = C2*Lout

    Xts = [feat[t * bs:(t + 1) * bs, :] for t in range(T)]                # per-timestep (bs, m)

    # ---------------- Encoder (input attention + LSTM, unrolled over T) ----------------------
    w_h = jnp.broadcast_to(whs_ref[:, :E], (bs, E))
    w_s = jnp.broadcast_to(whs_ref[:, E:], (bs, E))
    b_attn = eab_ref[0]
    wenc = wenc_ref[...]                                                  # (m+E, 4E) stacked
    benc = jnp.broadcast_to(benc_ref[...], (bs, 4 * E))

    # S_x = sum_t w_x[t] * X[:, t, :]  (loop-invariant; SMEM scalar weights, no lane slicing)
    S_x = wx_ref[0] * Xts[0]
    for t in range(1, T):
        S_x = S_x + wx_ref[t] * Xts[t]

    h = jnp.zeros((bs, E), F32)
    s = jnp.zeros((bs, E), F32)
    h_list = []
    for t in range(T):
        score = jnp.sum(h * w_h + s * w_s, axis=1, keepdims=True) + S_x + b_attn     # (bs, m)
        score = score - jnp.max(score, axis=1, keepdims=True)
        e = jnp.exp(score)
        alpha = e * pl.reciprocal(jnp.sum(e, axis=1, keepdims=True), approx=True)
        x_tilde = alpha * Xts[t]
        gates = jnp.dot(jnp.concatenate([x_tilde, h], axis=1), wenc,
                        preferred_element_type=F32) + benc                            # (bs, 4E)
        i_g = _sigmoid(gates[:, :E])
        f_g = _sigmoid(gates[:, E:2 * E])
        g_g = jnp.tanh(gates[:, 2 * E:3 * E])
        o_g = _sigmoid(gates[:, 3 * E:])
        s = f_g * s + i_g * g_g
        h = o_g * jnp.tanh(s)
        h_list.append(h)                                                  # X_encoded[:, t, :]

    # ---------------- Decoder (temporal attention + LSTM, unrolled over T) -------------------
    Hrow = jnp.concatenate(h_list, axis=1)                                # (bs, T*E) lane-stacked
    w1x = w1x_ref[...]
    Ztile = jnp.concatenate(
        [jnp.dot(h_list[t], w1x, preferred_element_type=F32) for t in range(T)],
        axis=1)                                                           # (bs, T*E), loop-invariant
    w1dc = w1dc_ref[...]                                                  # (2D, E) stacked
    b1d = jnp.broadcast_to(b1d_ref[...], (bs, E))
    w2t = jnp.broadcast_to(w2t_ref[...], (bs, T * E))                     # tiled attn2 weight
    gseg = gseg_ref[...]                                                  # (T*E, T) segment sum
    grep = grep_ref[...]                                                  # (T, T*E) repeat
    gmod = gmod_ref[...]                                                  # (T*E, E) fold over tau
    wdl = wdl_ref[...]                                                    # (1+D, 4D) stacked
    bdl = jnp.broadcast_to(bdl_ref[...], (bs, 4 * D))
    fcw = jnp.broadcast_to(fcw_ref[...], (bs, E))
    b2a = dab_ref[0]
    fcb = fcb_ref[0]

    d = jnp.zeros((bs, D), F32)
    c = jnp.zeros((bs, D), F32)
    context = jnp.zeros((bs, E), F32)
    for t in range(T):
        base = jnp.dot(jnp.concatenate([d, c], axis=1), w1dc,
                       preferred_element_type=F32) + b1d                  # (bs, E)
        u = jnp.tanh(jnp.concatenate([base] * T, axis=1) + Ztile) * w2t   # (bs, T*E): 1 tanh, 1 mul
        sc = jnp.dot(u, gseg, preferred_element_type=F32) + b2a           # (bs, T) segmented sum
        sc = sc - jnp.max(sc, axis=1, keepdims=True)
        ex = jnp.exp(sc)
        beta = ex * pl.reciprocal(jnp.sum(ex, axis=1, keepdims=True), approx=True)
        beta_rep = jnp.dot(beta, grep, preferred_element_type=F32)        # (bs, T*E)
        context = jnp.dot(beta_rep * Hrow, gmod, preferred_element_type=F32)   # (bs, E) = bmm
        y_tilde = jnp.sum(context * fcw, axis=1, keepdims=True) + fcb     # fc: (bs, 1)
        gates = jnp.dot(jnp.concatenate([y_tilde, d], axis=1), wdl,
                        preferred_element_type=F32) + bdl                 # (bs, 4D)
        i_g = _sigmoid(gates[:, :D])
        f_g = _sigmoid(gates[:, D:2 * D])
        g_g = jnp.tanh(gates[:, 2 * D:3 * D])
        o_g = _sigmoid(gates[:, 3 * D:])
        c = f_g * c + i_g * g_g
        d = o_g * jnp.tanh(c)

    out_ref[...] = (jnp.dot(jnp.concatenate([d, context], axis=1), ffw_ref[...],
                            preferred_element_type=F32) + ffb_ref[...])


def net_forward(X, p, num_class):
    bs, T, ns = X.shape
    C1 = p["conv1_w"].shape[0]            # 8
    C2 = p["conv2_w"].shape[0]            # out_features
    L1 = ns - 1                           # conv1 output length
    Lp = (L1 - 2) // 2 + 1                # after AvgPool(2,2)
    Lout = Lp - 1                         # after conv2
    E = p["enc_lstm_whh"].shape[1]
    D = p["dec_lstm_whh"].shape[1]

    # ------ tiny host-side prep (parameter-only reshapes + one small input transpose) -------
    x_tb = jnp.transpose(X, (1, 0, 2)).reshape(T * bs, ns)    # rows ordered (t, b)

    # conv1 as a dense banded (ns, C1*L1) matrix
    S1 = np.zeros((2, ns, L1), np.float32)
    for k in range(2):
        for l in range(L1):
            S1[k, l + k, l] = 1.0
    w1mat = jnp.einsum('ck,kjl->jcl', p["conv1_w"], jnp.asarray(S1)).reshape(ns, C1 * L1)
    b1row = jnp.repeat(p["conv1_b"], L1)[None, :]

    # AvgPool(2,2) + conv2 fused into one banded (C1*L1, C2*Lout) matrix
    S2 = np.zeros((2, L1, Lout), np.float32)
    for k in range(2):
        for l in range(Lout):
            for dj in range(2):
                S2[k, 2 * (l + k) + dj, l] = 0.5
    w2mat = jnp.einsum('ock,kjl->cjol', p["conv2_w"], jnp.asarray(S2)).reshape(C1 * L1, C2 * Lout)
    b2row = jnp.repeat(p["conv2_b"], Lout)[None, :]

    # encoder weights (stacked LSTM gates)
    wenc = jnp.concatenate([p["enc_lstm_wih"].T, p["enc_lstm_whh"].T], axis=0)   # (m+E, 4E)
    benc = (p["enc_lstm_bih"] + p["enc_lstm_bhh"])[None, :]
    whs = p["enc_attn_w"][:, :2 * E]                                             # (1, 2E)
    wx = p["enc_attn_w"][0, 2 * E:]                                              # (T,)  -> SMEM

    # decoder weights
    w1dc = p["dec_attn1_w"][:, :2 * D].T                                         # (2D, E)
    w1x = p["dec_attn1_w"][:, 2 * D:].T                                          # (E, E)
    b1d = p["dec_attn1_b"][None, :]                                              # (1, E)
    w2t = jnp.tile(p["dec_attn2_w"], (1, T))                                     # (1, T*E)
    wdl = jnp.concatenate([p["dec_lstm_wih"].T, p["dec_lstm_whh"].T], axis=0)    # (1+D, 4D)
    bdl = (p["dec_lstm_bih"] + p["dec_lstm_bhh"])[None, :]
    fcw = p["fc_w"]                                                              # (1, E)
    ffw = p["fc_final_w"].T                                                      # (D+E, num_class)
    ffb = p["fc_final_b"][None, :]

    # constant segment / repeat matrices (constant-folded by XLA; MXU segmented reductions)
    Gseg = jnp.asarray(np.kron(np.eye(T, dtype=np.float32), np.ones((E, 1), np.float32)))
    Grep = jnp.asarray(np.kron(np.eye(T, dtype=np.float32), np.ones((1, E), np.float32)))
    Gmod = jnp.asarray(np.kron(np.ones((T, 1), np.float32), np.eye(E, dtype=np.float32)))

    vmem = pl.BlockSpec(memory_space=pltpu.MemorySpace.VMEM)
    smem = pl.BlockSpec(memory_space=pltpu.MemorySpace.SMEM)
    kern = functools.partial(_net_kernel, bs=bs, T=T, C1=C1, C2=C2,
                             L1=L1, Lout=Lout, E=E, D=D)

    vmem_args = (x_tb, w1mat, b1row, w2mat, b2row,
                 wenc, benc, whs,
                 w1dc, w1x, b1d, w2t,
                 wdl, bdl, fcw, ffw, ffb,
                 Gseg, Grep, Gmod)
    smem_args = (p["bn1_g"], p["bn1_b"], p["bn2_g"], p["bn2_b"],
                 wx, p["enc_attn_b"], p["dec_attn2_b"], p["fc_b"])

    # NOTE(v7x throughput): this is a serial T-step recurrence at bs=2; for throughput, batch
    # more independent sequences (bs>=8) rather than adding a grid — kept gridless by design.
    return pl.pallas_call(
        kern,
        out_shape=jax.ShapeDtypeStruct((bs, num_class), jnp.float32),
        in_specs=[vmem] * len(vmem_args) + [smem] * len(smem_args),
        out_specs=vmem,
    )(*vmem_args, *smem_args)


def init_params(key, out_features, time_length, input_size, E, D, num_class):
    keys = jax.random.split(key, 26)
    it = iter(keys)

    def n(shape, scale=0.2):
        return scale * jax.random.normal(next(it), shape, dtype=jnp.float32)

    return {
        "conv1_w": n((8, 2)), "conv1_b": n((8,), 0.1),
        "bn1_g": 1.0 + n((8,), 0.1), "bn1_b": n((8,), 0.1),
        "conv2_w": n((out_features, 8, 2)), "conv2_b": n((out_features,), 0.1),
        "bn2_g": 1.0 + n((out_features,), 0.1), "bn2_b": n((out_features,), 0.1),
        "enc_lstm_wih": n((4 * E, input_size)), "enc_lstm_whh": n((4 * E, E)),
        "enc_lstm_bih": n((4 * E,), 0.1), "enc_lstm_bhh": n((4 * E,), 0.1),
        "enc_attn_w": n((1, 2 * E + time_length)), "enc_attn_b": n((1,), 0.1),
        "dec_attn1_w": n((E, 2 * D + E)), "dec_attn1_b": n((E,), 0.1),
        "dec_attn2_w": n((1, E)), "dec_attn2_b": n((1,), 0.1),
        "dec_lstm_wih": n((4 * D, 1)), "dec_lstm_whh": n((4 * D, D)),
        "dec_lstm_bih": n((4 * D,), 0.1), "dec_lstm_bhh": n((4 * D,), 0.1),
        "fc_w": n((1, E), 1.0),                # fc.weight.data.normal_()
        "fc_b": n((1,), 0.1),
        "fc_final_w": n((num_class, D + E)), "fc_final_b": n((num_class,), 0.1),
    }


if __name__ == "__main__":
    out_features = 4
    num_sensors = 10
    conv_sensors = ((num_sensors - 1) - 2) // 2 + 1 - 1   # = 3 (length after conv/pool/conv)
    time_length = 8
    encoder_hidden_dim = 16
    decoder_hidden_dim = 16
    num_class = 5
    bs = 2
    input_size = out_features * conv_sensors              # encoder input size = 12

    key = jax.random.PRNGKey(0)
    kx, kp = jax.random.split(key)
    X = jax.random.normal(kx, (bs, time_length, num_sensors), dtype=jnp.float32)
    params = init_params(kp, out_features, time_length, input_size,
                         encoder_hidden_dim, decoder_hidden_dim, num_class)

    fwd = jax.jit(functools.partial(net_forward, num_class=num_class))
    y = fwd(X, params)
    jax.block_until_ready(y)
    assert y.shape == (bs, num_class) and y.dtype == jnp.float32
    print("KERNEL_OK")
</pallas_src>

<mosaic_0001>
module attributes {stable_mosaic.version = 11 : i64} {
  func.func @_net_kernel(%arg0: memref<16x10xf32, #tpu.memory_space<vmem>>, %arg1: memref<10x72xf32, #tpu.memory_space<vmem>>, %arg2: memref<1x72xf32, #tpu.memory_space<vmem>>, %arg3: memref<72x12xf32, #tpu.memory_space<vmem>>, %arg4: memref<1x12xf32, #tpu.memory_space<vmem>>, %arg5: memref<28x64xf32, #tpu.memory_space<vmem>>, %arg6: memref<1x64xf32, #tpu.memory_space<vmem>>, %arg7: memref<1x32xf32, #tpu.memory_space<vmem>>, %arg8: memref<32x16xf32, #tpu.memory_space<vmem>>, %arg9: memref<16x16xf32, #tpu.memory_space<vmem>>, %arg10: memref<1x16xf32, #tpu.memory_space<vmem>>, %arg11: memref<1x128xf32, #tpu.memory_space<vmem>>, %arg12: memref<17x64xf32, #tpu.memory_space<vmem>>, %arg13: memref<1x64xf32, #tpu.memory_space<vmem>>, %arg14: memref<1x16xf32, #tpu.memory_space<vmem>>, %arg15: memref<32x5xf32, #tpu.memory_space<vmem>>, %arg16: memref<1x5xf32, #tpu.memory_space<vmem>>, %arg17: memref<128x8xf32, #tpu.memory_space<vmem>>, %arg18: memref<8x128xf32, #tpu.memory_space<vmem>>, %arg19: memref<128x16xf32, #tpu.memory_space<vmem>>, %arg20: memref<8xf32, #tpu.memory_space<smem>>, %arg21: memref<8xf32, #tpu.memory_space<smem>>, %arg22: memref<4xf32, #tpu.memory_space<smem>>, %arg23: memref<4xf32, #tpu.memory_space<smem>>, %arg24: memref<8xf32, #tpu.memory_space<smem>>, %arg25: memref<1xf32, #tpu.memory_space<smem>>, %arg26: memref<1xf32, #tpu.memory_space<smem>>, %arg27: memref<1xf32, #tpu.memory_space<smem>>, %arg28: memref<2x5xf32, #tpu.memory_space<vmem>>) attributes {dimension_semantics = [], scalar_prefetch = 0 : i64, scratch_operands = 0 : i64, tpu.core_type = #tpu.core_type<tc>} {
    %c0 = arith.constant 0 : index
    %c0_0 = arith.constant 0 : index
    %0 = vector.load %arg0[%c0, %c0_0] : memref<16x10xf32, #tpu.memory_space<vmem>>, vector<16x10xf32>
    %c0_1 = arith.constant 0 : index
    %c0_2 = arith.constant 0 : index
    %1 = vector.load %arg1[%c0_1, %c0_2] : memref<10x72xf32, #tpu.memory_space<vmem>>, vector<10x72xf32>
    %cst = arith.constant dense<0.000000e+00> : vector<16x72xf32>
    %2 = tpu.matmul %0, %1, %cst {dimension_numbers = #tpu.dot_dimension_numbers<[1], [0], [0], [1], [0, 0, 1, 1], [], []>} : vector<16x10xf32>, vector<10x72xf32>, vector<16x72xf32> -> vector<16x72xf32>
    %c0_3 = arith.constant 0 : index
    %c0_4 = arith.constant 0 : index
    %3 = vector.load %arg2[%c0_3, %c0_4] : memref<1x72xf32, #tpu.memory_space<vmem>>, vector<1x72xf32>
    %4 = vector.broadcast %3 : vector<1x72xf32> to vector<16x72xf32>
    %5 = arith.addf %2, %4 : vector<16x72xf32>
    %6 = vector.extract_strided_slice %5 {offsets = [0, 0], sizes = [16, 9], strides = [1, 1]} : vector<16x72xf32> to vector<16x9xf32>
    %7 = vector.shape_cast %6 : vector<16x9xf32> to vector<1x16x9xf32>
    %cst_5 = arith.constant dense<0.000000e+00> : vector<1xf32>
    %8 = vector.multi_reduction <add>, %7, %cst_5 [1, 2] : vector<1x16x9xf32> to vector<1xf32>
    %9 = vector.shape_cast %8 : vector<1xf32> to vector<1x1x1xf32>
    %10 = vector.extract %9[0, 0, 0] : f32 from vector<1x1x1xf32>
    %11 = vector.broadcast %10 : f32 to vector<1x1xf32>
    %cst_6 = arith.constant 1.440000e+02 : f32
    %12 = vector.broadcast %cst_6 : f32 to vector<1x1xf32>
    %13 = arith.divf %11, %12 : vector<1x1xf32>
    %14 = vector.broadcast %13 : vector<1x1xf32> to vector<16x9xf32>
    %15 = arith.subf %6, %14 : vector<16x9xf32>
    %16 = arith.mulf %15, %15 : vector<16x9xf32>
    %17 = vector.shape_cast %16 : vector<16x9xf32> to vector<1x16x9xf32>
    %cst_7 = arith.constant dense<0.000000e+00> : vector<1xf32>
    %18 = vector.multi_reduction <add>, %17, %cst_7 [1, 2] : vector<1x16x9xf32> to vector<1xf32>
    %19 = vector.shape_cast %18 : vector<1xf32> to vector<1x1x1xf32>
    %20 = vector.extract %19[0, 0, 0] : f32 from vector<1x1x1xf32>
    %21 = vector.broadcast %20 : f32 to vector<1x1xf32>
    %cst_8 = arith.constant 1.440000e+02 : f32
    %22 = vector.broadcast %cst_8 : f32 to vector<1x1xf32>
    %23 = arith.divf %21, %22 : vector<1x1xf32>
    %24 = vector.broadcast %13 : vector<1x1xf32> to vector<16x9xf32>
    %25 = arith.subf %6, %24 : vector<16x9xf32>
    %cst_9 = arith.constant 9.99999974E-6 : f32
    %26 = vector.broadcast %cst_9 : f32 to vector<1x1xf32>
    %27 = arith.addf %23, %26 : vector<1x1xf32>
    %28 = math.rsqrt %27 : vector<1x1xf32>
    %29 = vector.broadcast %28 : vector<1x1xf32> to vector<16x9xf32>
    %30 = arith.mulf %25, %29 : vector<16x9xf32>
    %c0_10 = arith.constant 0 : index
    %31 = memref.load %arg20[%c0_10] : memref<8xf32, #tpu.memory_space<smem>>
    %32 = vector.broadcast %31 : f32 to vector<16x9xf32>
    %33 = arith.mulf %30, %32 : vector<16x9xf32>
    %c0_11 = arith.constant 0 : index
    %34 = memref.load %arg21[%c0_11] : memref<8xf32, #tpu.memory_space<smem>>
    %35 = vector.broadcast %34 : f32 to vector<16x9xf32>
    %36 = arith.addf %33, %35 : vector<16x9xf32>
    %cst_12 = arith.constant 0.000000e+00 : f32
    %37 = vector.broadcast %cst_12 : f32 to vector<16x9xf32>
    %38 = arith.maximumf %36, %37 : vector<16x9xf32>
    %39 = vector.extract_strided_slice %5 {offsets = [0, 9], sizes = [16, 9], strides = [1, 1]} : vector<16x72xf32> to vector<16x9xf32>
    %40 = vector.shape_cast %39 : vector<16x9xf32> to vector<1x16x9xf32>
    %cst_13 = arith.constant dense<0.000000e+00> : vector<1xf32>
    %41 = vector.multi_reduction <add>, %40, %cst_13 [1, 2] : vector<1x16x9xf32> to vector<1xf32>
    %42 = vector.shape_cast %41 : vector<1xf32> to vector<1x1x1xf32>
    %43 = vector.extract %42[0, 0, 0] : f32 from vector<1x1x1xf32>
    %44 = vector.broadcast %43 : f32 to vector<1x1xf32>
    %cst_14 = arith.constant 1.440000e+02 : f32
    %45 = vector.broadcast %cst_14 : f32 to vector<1x1xf32>
    %46 = arith.divf %44, %45 : vector<1x1xf32>
    %47 = vector.broadcast %46 : vector<1x1xf32> to vector<16x9xf32>
    %48 = arith.subf %39, %47 : vector<16x9xf32>
    %49 = arith.mulf %48, %48 : vector<16x9xf32>
    %50 = vector.shape_cast %49 : vector<16x9xf32> to vector<1x16x9xf32>
    %cst_15 = arith.constant dense<0.000000e+00> : vector<1xf32>
    %51 = vector.multi_reduction <add>, %50, %cst_15 [1, 2] : vector<1x16x9xf32> to vector<1xf32>
    %52 = vector.shape_cast %51 : vector<1xf32> to vector<1x1x1xf32>
    %53 = vector.extract %52[0, 0, 0] : f32 from vector<1x1x1xf32>
    %54 = vector.broadcast %53 : f32 to vector<1x1xf32>
    %cst_16 = arith.constant 1.440000e+02 : f32
    %55 = vector.broadcast %cst_16 : f32 to vector<1x1xf32>
    %56 = arith.divf %54, %55 : vector<1x1xf32>
    %57 = vector.broadcast %46 : vector<1x1xf32> to vector<16x9xf32>
    %58 = arith.subf %39, %57 : vector<16x9xf32>
    %cst_17 = arith.constant 9.99999974E-6 : f32
    %59 = vector.broadcast %cst_17 : f32 to vector<1x1xf32>
    %60 = arith.addf %56, %59 : vector<1x1xf32>
    %61 = math.rsqrt %60 : vector<1x1xf32>
    %62 = vector.broadcast %61 : vector<1x1xf32> to vector<16x9xf32>
    %63 = arith.mulf %58, %62 : vector<16x9xf32>
    %c1 = arith.constant 1 : index
    %64 = memref.load %arg20[%c1] : memref<8xf32, #tpu.memory_space<smem>>
    %65 = vector.broadcast %64 : f32 to vector<16x9xf32>
    %66 = arith.mulf %63, %65 : vector<16x9xf32>
    %c1_18 = arith.constant 1 : index
    %67 = memref.load %arg21[%c1_18] : memref<8xf32, #tpu.memory_space<smem>>
    %68 = vector.broadcast %67 : f32 to vector<16x9xf32>
    %69 = arith.addf %66, %68 : vector<16x9xf32>
    %cst_19 = arith.constant 0.000000e+00 : f32
    %70 = vector.broadcast %cst_19 : f32 to vector<16x9xf32>
    %71 = arith.maximumf %69, %70 : vector<16x9xf32>
    %72 = vector.extract_strided_slice %5 {offsets = [0, 18], sizes = [16, 9], strides = [1, 1]} : vector<16x72xf32> to vector<16x9xf32>
    %73 = vector.shape_cast %72 : vector<16x9xf32> to vector<1x16x9xf32>
    %cst_20 = arith.constant dense<0.000000e+00> : vector<1xf32>
    %74 = vector.multi_reduction <add>, %73, %cst_20 [1, 2] : vector<1x16x9xf32> to vector<1xf32>
    %75 = vector.shape_cast %74 : vector<1xf32> to vector<1x1x1xf32>
    %76 = vector.extract %75[0, 0, 0] : f32 from vector<1x1x1xf32>
    %77 = vector.broadcast %76 : f32 to vector<1x1xf32>
    %cst_21 = arith.constant 1.440000e+02 : f32
    %78 = vector.broadcast %cst_21 : f32 to vector<1x1xf32>
    %79 = arith.divf %77, %78 : vector<1x1xf32>
    %80 = vector.broadcast %79 : vector<1x1xf32> to vector<16x9xf32>
    %81 = arith.subf %72, %80 : vector<16x9xf32>
    %82 = arith.mulf %81, %81 : vector<16x9xf32>
    %83 = vector.shape_cast %82 : vector<16x9xf32> to vector<1x16x9xf32>
    %cst_22 = arith.constant dense<0.000000e+00> : vector<1xf32>
    %84 = vector.multi_reduction <add>, %83, %cst_22 [1, 2] : vector<1x16x9xf32> to vector<1xf32>
    %85 = vector.shape_cast %84 : vector<1xf32> to vector<1x1x1xf32>
    %86 = vector.extract %85[0, 0, 0] : f32 from vector<1x1x1xf32>
    %87 = vector.broadcast %86 : f32 to vector<1x1xf32>
    %cst_23 = arith.constant 1.440000e+02 : f32
    %88 = vector.broadcast %cst_23 : f32 to vector<1x1xf32>
    %89 = arith.divf %87, %88 : vector<1x1xf32>
    %90 = vector.broadcast %79 : vector<1x1xf32> to vector<16x9xf32>
    %91 = arith.subf %72, %90 : vector<16x9xf32>
    %cst_24 = arith.constant 9.99999974E-6 : f32
    %92 = vector.broadcast %cst_24 : f32 to vector<1x1xf32>
    %93 = arith.addf %89, %92 : vector<1x1xf32>
    %94 = math.rsqrt %93 : vector<1x1xf32>
    %95 = vector.broadcast %94 : vector<1x1xf32> to vector<16x9xf32>
    %96 = arith.mulf %91, %95 : vector<16x9xf32>
    %c2 = arith.constant 2 : index
    %97 = memref.load %arg20[%c2] : memref<8xf32, #tpu.memory_space<smem>>
    %98 = vector.broadcast %97 : f32 to vector<16x9xf32>
    %99 = arith.mulf %96, %98 : vector<16x9xf32>
    %c2_25 = arith.constant 2 : index
    %100 = memref.load %arg21[%c2_25] : memref<8xf32, #tpu.memory_space<smem>>
    %101 = vector.broadcast %100 : f32 to vector<16x9xf32>
    %102 = arith.addf %99, %101 : vector<16x9xf32>
    %cst_26 = arith.constant 0.000000e+00 : f32
    %103 = vector.broadcast %cst_26 : f32 to vector<16x9xf32>
    %104 = arith.maximumf %102, %103 : vector<16x9xf32>
    %105 = vector.extract_strided_slice %5 {offsets = [0, 27], sizes = [16, 9], strides = [1, 1]} : vector<16x72xf32> to vector<16x9xf32>
    %106 = vector.shape_cast %105 : vector<16x9xf32> to vector<1x16x9xf32>
    %cst_27 = arith.constant dense<0.000000e+00> : vector<1xf32>
    %107 = vector.multi_reduction <add>, %106, %cst_27 [1, 2] : vector<1x16x9xf32> to vector<1xf32>
    %108 = vector.shape_cast %107 : vector<1xf32> to vector<1x1x1xf32>
    %109 = vector.extract %108[0, 0, 0] : f32 from vector<1x1x1xf32>
    %110 = vector.broadcast %109 : f32 to vector<1x1xf32>
    %cst_28 = arith.constant 1.440000e+02 : f32
    %111 = vector.broadcast %cst_28 : f32 to vector<1x1xf32>
    %112 = arith.divf %110, %111 : vector<1x1xf32>
    %113 = vector.broadcast %112 : vector<1x1xf32> to vector<16x9xf32>
    %114 = arith.subf %105, %113 : vector<16x9xf32>
    %115 = arith.mulf %114, %114 : vector<16x9xf32>
    %116 = vector.shape_cast %115 : vector<16x9xf32> to vector<1x16x9xf32>
    %cst_29 = arith.constant dense<0.000000e+00> : vector<1xf32>
    %117 = vector.multi_reduction <add>, %116, %cst_29 [1, 2] : vector<1x16x9xf32> to vector<1xf32>
    %118 = vector.shape_cast %117 : vector<1xf32> to vector<1x1x1xf32>
    %119 = vector.extract %118[0, 0, 0] : f32 from vector<1x1x1xf32>
    %120 = vector.broadcast %119 : f32 to vector<1x1xf32>
    %cst_30 = arith.constant 1.440000e+02 : f32
    %121 = vector.broadcast %cst_30 : f32 to vector<1x1xf32>
    %122 = arith.divf %120, %121 : vector<1x1xf32>
    %123 = vector.broadcast %112 : vector<1x1xf32> to vector<16x9xf32>
    %124 = arith.subf %105, %123 : vector<16x9xf32>
    %cst_31 = arith.constant 9.99999974E-6 : f32
    %125 = vector.broadcast %cst_31 : f32 to vector<1x1xf32>
    %126 = arith.addf %122, %125 : vector<1x1xf32>
    %127 = math.rsqrt %126 : vector<1x1xf32>
    %128 = vector.broadcast %127 : vector<1x1xf32> to vector<16x9xf32>
    %129 = arith.mulf %124, %128 : vector<16x9xf32>
    %c3 = arith.constant 3 : index
    %130 = memref.load %arg20[%c3] : memref<8xf32, #tpu.memory_space<smem>>
    %131 = vector.broadcast %130 : f32 to vector<16x9xf32>
    %132 = arith.mulf %129, %131 : vector<16x9xf32>
    %c3_32 = arith.constant 3 : index
    %133 = memref.load %arg21[%c3_32] : memref<8xf32, #tpu.memory_space<smem>>
    %134 = vector.broadcast %133 : f32 to vector<16x9xf32>
    %135 = arith.addf %132, %134 : vector<16x9xf32>
    %cst_33 = arith.constant 0.000000e+00 : f32
    %136 = vector.broadcast %cst_33 : f32 to vector<16x9xf32>
    %137 = arith.maximumf %135, %136 : vector<16x9xf32>
    %138 = vector.extract_strided_slice %5 {offsets = [0, 36], sizes = [16, 9], strides = [1, 1]} : vector<16x72xf32> to vector<16x9xf32>
    %139 = vector.shape_cast %138 : vector<16x9xf32> to vector<1x16x9xf32>
    %cst_34 = arith.constant dense<0.000000e+00> : vector<1xf32>
    %140 = vector.multi_reduction <add>, %139, %cst_34 [1, 2] : vector<1x16x9xf32> to vector<1xf32>
    %141 = vector.shape_cast %140 : vector<1xf32> to vector<1x1x1xf32>
    %142 = vector.extract %141[0, 0, 0] : f32 from vector<1x1x1xf32>
    %143 = vector.broadcast %142 : f32 to vector<1x1xf32>
    %cst_35 = arith.constant 1.440000e+02 : f32
    %144 = vector.broadcast %cst_35 : f32 to vector<1x1xf32>
    %145 = arith.divf %143, %144 : vector<1x1xf32>
    %146 = vector.broadcast %145 : vector<1x1xf32> to vector<16x9xf32>
    %147 = arith.subf %138, %146 : vector<16x9xf32>
    %148 = arith.mulf %147, %147 : vector<16x9xf32>
    %149 = vector.shape_cast %148 : vector<16x9xf32> to vector<1x16x9xf32>
    %cst_36 = arith.constant dense<0.000000e+00> : vector<1xf32>
    %150 = vector.multi_reduction <add>, %149, %cst_36 [1, 2] : vector<1x16x9xf32> to vector<1xf32>
    %151 = vector.shape_cast %150 : vector<1xf32> to vector<1x1x1xf32>
    %152 = vector.extract %151[0, 0, 0] : f32 from vector<1x1x1xf32>
    %153 = vector.broadcast %152 : f32 to vector<1x1xf32>
    %cst_37 = arith.constant 1.440000e+02 : f32
    %154 = vector.broadcast %cst_37 : f32 to vector<1x1xf32>
    %155 = arith.divf %153, %154 : vector<1x1xf32>
    %156 = vector.broadcast %145 : vector<1x1xf32> to vector<16x9xf32>
    %157 = arith.subf %138, %156 : vector<16x9xf32>
    %cst_38 = arith.constant 9.99999974E-6 : f32
    %158 = vector.broadcast %cst_38 : f32 to vector<1x1xf32>
    %159 = arith.addf %155, %158 : vector<1x1xf32>
    %160 = math.rsqrt %159 : vector<1x1xf32>
    %161 = vector.broadcast %160 : vector<1x1xf32> to vector<16x9xf32>
    %162 = arith.mulf %157, %161 : vector<16x9xf32>
    %c4 = arith.constant 4 : index
    %163 = memref.load %arg20[%c4] : memref<8xf32, #tpu.memory_space<smem>>
    %164 = vector.broadcast %163 : f32 to vector<16x9xf32>
    %165 = arith.mulf %162, %164 : vector<16x9xf32>
    %c4_39 = arith.constant 4 : index
    %166 = memref.load %arg21[%c4_39] : memref<8xf32, #tpu.memory_space<smem>>
    %167 = vector.broadcast %166 : f32 to vector<16x9xf32>
    %168 = arith.addf %165, %167 : vector<16x9xf32>
    %cst_40 = arith.constant 0.000000e+00 : f32
    %169 = vector.broadcast %cst_40 : f32 to vector<16x9xf32>
    %170 = arith.maximumf %168, %169 : vector<16x9xf32>
    %171 = vector.extract_strided_slice %5 {offsets = [0, 45], sizes = [16, 9], strides = [1, 1]} : vector<16x72xf32> to vector<16x9xf32>
    %172 = vector.shape_cast %171 : vector<16x9xf32> to vector<1x16x9xf32>
    %cst_41 = arith.constant dense<0.000000e+00> : vector<1xf32>
    %173 = vector.multi_reduction <add>, %172, %cst_41 [1, 2] : vector<1x16x9xf32> to vector<1xf32>
    %174 = vector.shape_cast %173 : vector<1xf32> to vector<1x1x1xf32>
    %175 = vector.extract %174[0, 0, 0] : f32 from vector<1x1x1xf32>
    %176 = vector.broadcast %175 : f32 to vector<1x1xf32>
    %cst_42 = arith.constant 1.440000e+02 : f32
    %177 = vector.broadcast %cst_42 : f32 to vector<1x1xf32>
    %178 = arith.divf %176, %177 : vector<1x1xf32>
    %179 = vector.broadcast %178 : vector<1x1xf32> to vector<16x9xf32>
    %180 = arith.subf %171, %179 : vector<16x9xf32>
    %181 = arith.mulf %180, %180 : vector<16x9xf32>
    %182 = vector.shape_cast %181 : vector<16x9xf32> to vector<1x16x9xf32>
    %cst_43 = arith.constant dense<0.000000e+00> : vector<1xf32>
    %183 = vector.multi_reduction <add>, %182, %cst_43 [1, 2] : vector<1x16x9xf32> to vector<1xf32>
    %184 = vector.shape_cast %183 : vector<1xf32> to vector<1x1x1xf32>
    %185 = vector.extract %184[0, 0, 0] : f32 from vector<1x1x1xf32>
    %186 = vector.broadcast %185 : f32 to vector<1x1xf32>
    %cst_44 = arith.constant 1.440000e+02 : f32
    %187 = vector.broadcast %cst_44 : f32 to vector<1x1xf32>
    %188 = arith.divf %186, %187 : vector<1x1xf32>
    %189 = vector.broadcast %178 : vector<1x1xf32> to vector<16x9xf32>
    %190 = arith.subf %171, %189 : vector<16x9xf32>
    %cst_45 = arith.constant 9.99999974E-6 : f32
    %191 = vector.broadcast %cst_45 : f32 to vector<1x1xf32>
    %192 = arith.addf %188, %191 : vector<1x1xf32>
    %193 = math.rsqrt %192 : vector<1x1xf32>
    %194 = vector.broadcast %193 : vector<1x1xf32> to vector<16x9xf32>
    %195 = arith.mulf %190, %194 : vector<16x9xf32>
    %c5 = arith.constant 5 : index
    %196 = memref.load %arg20[%c5] : memref<8xf32, #tpu.memory_space<smem>>
    %197 = vector.broadcast %196 : f32 to vector<16x9xf32>
    %198 = arith.mulf %195, %197 : vector<16x9xf32>
    %c5_46 = arith.constant 5 : index
    %199 = memref.load %arg21[%c5_46] : memref<8xf32, #tpu.memory_space<smem>>
    %200 = vector.broadcast %199 : f32 to vector<16x9xf32>
    %201 = arith.addf %198, %200 : vector<16x9xf32>
    %cst_47 = arith.constant 0.000000e+00 : f32
    %202 = vector.broadcast %cst_47 : f32 to vector<16x9xf32>
    %203 = arith.maximumf %201, %202 : vector<16x9xf32>
    %204 = vector.extract_strided_slice %5 {offsets = [0, 54], sizes = [16, 9], strides = [1, 1]} : vector<16x72xf32> to vector<16x9xf32>
    %205 = vector.shape_cast %204 : vector<16x9xf32> to vector<1x16x9xf32>
    %cst_48 = arith.constant dense<0.000000e+00> : vector<1xf32>
    %206 = vector.multi_reduction <add>, %205, %cst_48 [1, 2] : vector<1x16x9xf32> to vector<1xf32>
    %207 = vector.shape_cast %206 : vector<1xf32> to vector<1x1x1xf32>
    %208 = vector.extract %207[0, 0, 0] : f32 from vector<1x1x1xf32>
    %209 = vector.broadcast %208 : f32 to vector<1x1xf32>
    %cst_49 = arith.constant 1.440000e+02 : f32
    %210 = vector.broadcast %cst_49 : f32 to vector<1x1xf32>
    %211 = arith.divf %209, %210 : vector<1x1xf32>
    %212 = vector.broadcast %211 : vector<1x1xf32> to vector<16x9xf32>
    %213 = arith.subf %204, %212 : vector<16x9xf32>
    %214 = arith.mulf %213, %213 : vector<16x9xf32>
    %215 = vector.shape_cast %214 : vector<16x9xf32> to vector<1x16x9xf32>
    %cst_50 = arith.constant dense<0.000000e+00> : vector<1xf32>
    %216 = vector.multi_reduction <add>, %215, %cst_50 [1, 2] : vector<1x16x9xf32> to vector<1xf32>
    %217 = vector.shape_cast %216 : vector<1xf32> to vector<1x1x1xf32>
    %218 = vector.extract %217[0, 0, 0] : f32 from vector<1x1x1xf32>
    %219 = vector.broadcast %218 : f32 to vector<1x1xf32>
    %cst_51 = arith.constant 1.440000e+02 : f32
    %220 = vector.broadcast %cst_51 : f32 to vector<1x1xf32>
    %221 = arith.divf %219, %220 : vector<1x1xf32>
    %222 = vector.broadcast %211 : vector<1x1xf32> to vector<16x9xf32>
    %223 = arith.subf %204, %222 : vector<16x9xf32>
    %cst_52 = arith.constant 9.99999974E-6 : f32
    %224 = vector.broadcast %cst_52 : f32 to vector<1x1xf32>
    %225 = arith.addf %221, %224 : vector<1x1xf32>
    %226 = math.rsqrt %225 : vector<1x1xf32>
    %227 = vector.broadcast %226 : vector<1x1xf32> to vector<16x9xf32>
    %228 = arith.mulf %223, %227 : vector<16x9xf32>
    %c6 = arith.constant 6 : index
    %229 = memref.load %arg20[%c6] : memref<8xf32, #tpu.memory_space<smem>>
    %230 = vector.broadcast %229 : f32 to vector<16x9xf32>
    %231 = arith.mulf %228, %230 : vector<16x9xf32>
    %c6_53 = arith.constant 6 : index
    %232 = memref.load %arg21[%c6_53] : memref<8xf32, #tpu.memory_space<smem>>
    %233 = vector.broadcast %232 : f32 to vector<16x9xf32>
    %234 = arith.addf %231, %233 : vector<16x9xf32>
    %cst_54 = arith.constant 0.000000e+00 : f32
    %235 = vector.broadcast %cst_54 : f32 to vector<16x9xf32>
    %236 = arith.maximumf %234, %235 : vector<16x9xf32>
    %237 = vector.extract_strided_slice %5 {offsets = [0, 63], sizes = [16, 9], strides = [1, 1]} : vector<16x72xf32> to vector<16x9xf32>
    %238 = vector.shape_cast %237 : vector<16x9xf32> to vector<1x16x9xf32>
    %cst_55 = arith.constant dense<0.000000e+00> : vector<1xf32>
    %239 = vector.multi_reduction <add>, %238, %cst_55 [1, 2] : vector<1x16x9xf32> to vector<1xf32>
    %240 = vector.shape_cast %239 : vector<1xf32> to vector<1x1x1xf32>
    %241 = vector.extract %240[0, 0, 0] : f32 from vector<1x1x1xf32>
    %242 = vector.broadcast %241 : f32 to vector<1x1xf32>
    %cst_56 = arith.constant 1.440000e+02 : f32
    %243 = vector.broadcast %cst_56 : f32 to vector<1x1xf32>
    %244 = arith.divf %242, %243 : vector<1x1xf32>
    %245 = vector.broadcast %244 : vector<1x1xf32> to vector<16x9xf32>
    %246 = arith.subf %237, %245 : vector<16x9xf32>
    %247 = arith.mulf %246, %246 : vector<16x9xf32>
    %248 = vector.shape_cast %247 : vector<16x9xf32> to vector<1x16x9xf32>
    %cst_57 = arith.constant dense<0.000000e+00> : vector<1xf32>
    %249 = vector.multi_reduction <add>, %248, %cst_57 [1, 2] : vector<1x16x9xf32> to vector<1xf32>
    %250 = vector.shape_cast %249 : vector<1xf32> to vector<1x1x1xf32>
    %251 = vector.extract %250[0, 0, 0] : f32 from vector<1x1x1xf32>
    %252 = vector.broadcast %251 : f32 to vector<1x1xf32>
    %cst_58 = arith.constant 1.440000e+02 : f32
    %253 = vector.broadcast %cst_58 : f32 to vector<1x1xf32>
    %254 = arith.divf %252, %253 : vector<1x1xf32>
    %255 = vector.broadcast %244 : vector<1x1xf32> to vector<16x9xf32>
    %256 = arith.subf %237, %255 : vector<16x9xf32>
    %cst_59 = arith.constant 9.99999974E-6 : f32
    %257 = vector.broadcast %cst_59 : f32 to vector<1x1xf32>
    %258 = arith.addf %254, %257 : vector<1x1xf32>
    %259 = math.rsqrt %258 : vector<1x1xf32>
    %260 = vector.broadcast %259 : vector<1x1xf32> to vector<16x9xf32>
    %261 = arith.mulf %256, %260 : vector<16x9xf32>
    %c7 = arith.constant 7 : index
    %262 = memref.load %arg20[%c7] : memref<8xf32, #tpu.memory_space<smem>>
    %263 = vector.broadcast %262 : f32 to vector<16x9xf32>
    %264 = arith.mulf %261, %263 : vector<16x9xf32>
    %c7_60 = arith.constant 7 : index
    %265 = memref.load %arg21[%c7_60] : memref<8xf32, #tpu.memory_space<smem>>
    %266 = vector.broadcast %265 : f32 to vector<16x9xf32>
    %267 = arith.addf %264, %266 : vector<16x9xf32>
    %cst_61 = arith.constant 0.000000e+00 : f32
    %268 = vector.broadcast %cst_61 : f32 to vector<16x9xf32>
    %269 = arith.maximumf %267, %268 : vector<16x9xf32>
    %270 = tpu.concatenate %38, %71, %104, %137, %170, %203, %236, %269 in 1 : vector<16x9xf32>, vector<16x9xf32>, vector<16x9xf32>, vector<16x9xf32>, vector<16x9xf32>, vector<16x9xf32>, vector<16x9xf32>, vector<16x9xf32> -> vector<16x72xf32>
    %c0_62 = arith.constant 0 : index
    %c0_63 = arith.constant 0 : index
    %271 = vector.load %arg3[%c0_62, %c0_63] : memref<72x12xf32, #tpu.memory_space<vmem>>, vector<72x12xf32>
    %cst_64 = arith.constant dense<0.000000e+00> : vector<16x12xf32>
    %272 = tpu.matmul %270, %271, %cst_64 {dimension_numbers = #tpu.dot_dimension_numbers<[1], [0], [0], [1], [0, 0, 1, 1], [], []>} : vector<16x72xf32>, vector<72x12xf32>, vector<16x12xf32> -> vector<16x12xf32>
    %c0_65 = arith.constant 0 : index
    %c0_66 = arith.constant 0 : index
    %273 = vector.load %arg4[%c0_65, %c0_66] : memref<1x12xf32, #tpu.memory_space<vmem>>, vector<1x12xf32>
    %274 = vector.broadcast %273 : vector<1x12xf32> to vector<16x12xf32>
    %275 = arith.addf %272, %274 : vector<16x12xf32>
    %276 = vector.extract_strided_slice %275 {offsets = [0, 0], sizes = [16, 3], strides = [1, 1]} : vector<16x12xf32> to vector<16x3xf32>
    %277 = vector.shape_cast %276 : vector<16x3xf32> to vector<1x16x3xf32>
    %cst_67 = arith.constant dense<0.000000e+00> : vector<1xf32>
    %278 = vector.multi_reduction <add>, %277, %cst_67 [1, 2] : vector<1x16x3xf32> to vector<1xf32>
    %279 = vector.shape_cast %278 : vector<1xf32> to vector<1x1x1xf32>
    %280 = vector.extract %279[0, 0, 0] : f32 from vector<1x1x1xf32>
    %281 = vector.broadcast %280 : f32 to vector<1x1xf32>
    %cst_68 = arith.constant 4.800000e+01 : f32
    %282 = vector.broadcast %cst_68 : f32 to vector<1x1xf32>
    %283 = arith.divf %281, %282 : vector<1x1xf32>
    %284 = vector.broadcast %283 : vector<1x1xf32> to vector<16x3xf32>
    %285 = arith.subf %276, %284 : vector<16x3xf32>
    %286 = arith.mulf %285, %285 : vector<16x3xf32>
    %287 = vector.shape_cast %286 : vector<16x3xf32> to vector<1x16x3xf32>
    %cst_69 = arith.constant dense<0.000000e+00> : vector<1xf32>
    %288 = vector.multi_reduction <add>, %287, %cst_69 [1, 2] : vector<1x16x3xf32> to vector<1xf32>
    %289 = vector.shape_cast %288 : vector<1xf32> to vector<1x1x1xf32>
    %290 = vector.extract %289[0, 0, 0] : f32 from vector<1x1x1xf32>
    %291 = vector.broadcast %290 : f32 to vector<1x1xf32>
    %cst_70 = arith.constant 4.800000e+01 : f32
    %292 = vector.broadcast %cst_70 : f32 to vector<1x1xf32>
    %293 = arith.divf %291, %292 : vector<1x1xf32>
    %294 = vector.broadcast %283 : vector<1x1xf32> to vector<16x3xf32>
    %295 = arith.subf %276, %294 : vector<16x3xf32>
    %cst_71 = arith.constant 9.99999974E-6 : f32
    %296 = vector.broadcast %cst_71 : f32 to vector<1x1xf32>
    %297 = arith.addf %293, %296 : vector<1x1xf32>
    %298 = math.rsqrt %297 : vector<1x1xf32>
    %299 = vector.broadcast %298 : vector<1x1xf32> to vector<16x3xf32>
    %300 = arith.mulf %295, %299 : vector<16x3xf32>
    %c0_72 = arith.constant 0 : index
    %301 = memref.load %arg22[%c0_72] : memref<4xf32, #tpu.memory_space<smem>>
    %302 = vector.broadcast %301 : f32 to vector<16x3xf32>
    %303 = arith.mulf %300, %302 : vector<16x3xf32>
    %c0_73 = arith.constant 0 : index
    %304 = memref.load %arg23[%c0_73] : memref<4xf32, #tpu.memory_space<smem>>
    %305 = vector.broadcast %304 : f32 to vector<16x3xf32>
    %306 = arith.addf %303, %305 : vector<16x3xf32>
    %cst_74 = arith.constant 0.000000e+00 : f32
    %307 = vector.broadcast %cst_74 : f32 to vector<16x3xf32>
    %308 = arith.maximumf %306, %307 : vector<16x3xf32>
    %309 = vector.extract_strided_slice %275 {offsets = [0, 3], sizes = [16, 3], strides = [1, 1]} : vector<16x12xf32> to vector<16x3xf32>
    %310 = vector.shape_cast %309 : vector<16x3xf32> to vector<1x16x3xf32>
    %cst_75 = arith.constant dense<0.000000e+00> : vector<1xf32>
    %311 = vector.multi_reduction <add>, %310, %cst_75 [1, 2] : vector<1x16x3xf32> to vector<1xf32>
    %312 = vector.shape_cast %311 : vector<1xf32> to vector<1x1x1xf32>
    %313 = vector.extract %312[0, 0, 0] : f32 from vector<1x1x1xf32>
    %314 = vector.broadcast %313 : f32 to vector<1x1xf32>
    %cst_76 = arith.constant 4.800000e+01 : f32
    %315 = vector.broadcast %cst_76 : f32 to vector<1x1xf32>
    %316 = arith.divf %314, %315 : vector<1x1xf32>
    %317 = vector.broadcast %316 : vector<1x1xf32> to vector<16x3xf32>
    %318 = arith.subf %309, %317 : vector<16x3xf32>
    %319 = arith.mulf %318, %318 : vector<16x3xf32>
    %320 = vector.shape_cast %319 : vector<16x3xf32> to vector<1x16x3xf32>
    %cst_77 = arith.constant dense<0.000000e+00> : vector<1xf32>
    %321 = vector.multi_reduction <add>, %320, %cst_77 [1, 2] : vector<1x16x3xf32> to vector<1xf32>
    %322 = vector.shape_cast %321 : vector<1xf32> to vector<1x1x1xf32>
    %323 = vector.extract %322[0, 0, 0] : f32 from vector<1x1x1xf32>
    %324 = vector.broadcast %323 : f32 to vector<1x1xf32>
    %cst_78 = arith.constant 4.800000e+01 : f32
    %325 = vector.broadcast %cst_78 : f32 to vector<1x1xf32>
    %326 = arith.divf %324, %325 : vector<1x1xf32>
    %327 = vector.broadcast %316 : vector<1x1xf32> to vector<16x3xf32>
    %328 = arith.subf %309, %327 : vector<16x3xf32>
    %cst_79 = arith.constant 9.99999974E-6 : f32
    %329 = vector.broadcast %cst_79 : f32 to vector<1x1xf32>
    %330 = arith.addf %326, %329 : vector<1x1xf32>
    %331 = math.rsqrt %330 : vector<1x1xf32>
    %332 = vector.broadcast %331 : vector<1x1xf32> to vector<16x3xf32>
    %333 = arith.mulf %328, %332 : vector<16x3xf32>
    %c1_80 = arith.constant 1 : index
    %334 = memref.load %arg22[%c1_80] : memref<4xf32, #tpu.memory_space<smem>>
    %335 = vector.broadcast %334 : f32 to vector<16x3xf32>
    %336 = arith.mulf %333, %335 : vector<16x3xf32>
    %c1_81 = arith.constant 1 : index
    %337 = memref.load %arg23[%c1_81] : memref<4xf32, #tpu.memory_space<smem>>
    %338 = vector.broadcast %337 : f32 to vector<16x3xf32>
    %339 = arith.addf %336, %338 : vector<16x3xf32>
    %cst_82 = arith.constant 0.000000e+00 : f32
    %340 = vector.broadcast %cst_82 : f32 to vector<16x3xf32>
    %341 = arith.maximumf %339, %340 : vector<16x3xf32>
    %342 = vector.extract_strided_slice %275 {offsets = [0, 6], sizes = [16, 3], strides = [1, 1]} : vector<16x12xf32> to vector<16x3xf32>
    %343 = vector.shape_cast %342 : vector<16x3xf32> to vector<1x16x3xf32>
    %cst_83 = arith.constant dense<0.000000e+00> : vector<1xf32>
    %344 = vector.multi_reduction <add>, %343, %cst_83 [1, 2] : vector<1x16x3xf32> to vector<1xf32>
    %345 = vector.shape_cast %344 : vector<1xf32> to vector<1x1x1xf32>
    %346 = vector.extract %345[0, 0, 0] : f32 from vector<1x1x1xf32>
    %347 = vector.broadcast %346 : f32 to vector<1x1xf32>
    %cst_84 = arith.constant 4.800000e+01 : f32
    %348 = vector.broadcast %cst_84 : f32 to vector<1x1xf32>
    %349 = arith.divf %347, %348 : vector<1x1xf32>
    %350 = vector.broadcast %349 : vector<1x1xf32> to vector<16x3xf32>
    %351 = arith.subf %342, %350 : vector<16x3xf32>
    %352 = arith.mulf %351, %351 : vector<16x3xf32>
    %353 = vector.shape_cast %352 : vector<16x3xf32> to vector<1x16x3xf32>
    %cst_85 = arith.constant dense<0.000000e+00> : vector<1xf32>
    %354 = vector.multi_reduction <add>, %353, %cst_85 [1, 2] : vector<1x16x3xf32> to vector<1xf32>
    %355 = vector.shape_cast %354 : vector<1xf32> to vector<1x1x1xf32>
    %356 = vector.extract %355[0, 0, 0] : f32 from vector<1x1x1xf32>
    %357 = vector.broadcast %356 : f32 to vector<1x1xf32>
    %cst_86 = arith.constant 4.800000e+01 : f32
    %358 = vector.broadcast %cst_86 : f32 to vector<1x1xf32>
    %359 = arith.divf %357, %358 : vector<1x1xf32>
    %360 = vector.broadcast %349 : vector<1x1xf32> to vector<16x3xf32>
    %361 = arith.subf %342, %360 : vector<16x3xf32>
    %cst_87 = arith.constant 9.99999974E-6 : f32
    %362 = vector.broadcast %cst_87 : f32 to vector<1x1xf32>
    %363 = arith.addf %359, %362 : vector<1x1xf32>
    %364 = math.rsqrt %363 : vector<1x1xf32>
    %365 = vector.broadcast %364 : vector<1x1xf32> to vector<16x3xf32>
    %366 = arith.mulf %361, %365 : vector<16x3xf32>
    %c2_88 = arith.constant 2 : index
    %367 = memref.load %arg22[%c2_88] : memref<4xf32, #tpu.memory_space<smem>>
    %368 = vector.broadcast %367 : f32 to vector<16x3xf32>
    %369 = arith.mulf %366, %368 : vector<16x3xf32>
    %c2_89 = arith.constant 2 : index
    %370 = memref.load %arg23[%c2_89] : memref<4xf32, #tpu.memory_space<smem>>
    %371 = vector.broadcast %370 : f32 to vector<16x3xf32>
    %372 = arith.addf %369, %371 : vector<16x3xf32>
    %cst_90 = arith.constant 0.000000e+00 : f32
    %373 = vector.broadcast %cst_90 : f32 to vector<16x3xf32>
    %374 = arith.maximumf %372, %373 : vector<16x3xf32>
    %375 = vector.extract_strided_slice %275 {offsets = [0, 9], sizes = [16, 3], strides = [1, 1]} : vector<16x12xf32> to vector<16x3xf32>
    %376 = vector.shape_cast %375 : vector<16x3xf32> to vector<1x16x3xf32>
    %cst_91 = arith.constant dense<0.000000e+00> : vector<1xf32>
    %377 = vector.multi_reduction <add>, %376, %cst_91 [1, 2] : vector<1x16x3xf32> to vector<1xf32>
    %378 = vector.shape_cast %377 : vector<1xf32> to vector<1x1x1xf32>
    %379 = vector.extract %378[0, 0, 0] : f32 from vector<1x1x1xf32>
    %380 = vector.broadcast %379 : f32 to vector<1x1xf32>
    %cst_92 = arith.constant 4.800000e+01 : f32
    %381 = vector.broadcast %cst_92 : f32 to vector<1x1xf32>
    %382 = arith.divf %380, %381 : vector<1x1xf32>
    %383 = vector.broadcast %382 : vector<1x1xf32> to vector<16x3xf32>
    %384 = arith.subf %375, %383 : vector<16x3xf32>
    %385 = arith.mulf %384, %384 : vector<16x3xf32>
    %386 = vector.shape_cast %385 : vector<16x3xf32> to vector<1x16x3xf32>
    %cst_93 = arith.constant dense<0.000000e+00> : vector<1xf32>
    %387 = vector.multi_reduction <add>, %386, %cst_93 [1, 2] : vector<1x16x3xf32> to vector<1xf32>
    %388 = vector.shape_cast %387 : vector<1xf32> to vector<1x1x1xf32>
    %389 = vector.extract %388[0, 0, 0] : f32 from vector<1x1x1xf32>
    %390 = vector.broadcast %389 : f32 to vector<1x1xf32>
    %cst_94 = arith.constant 4.800000e+01 : f32
    %391 = vector.broadcast %cst_94 : f32 to vector<1x1xf32>
    %392 = arith.divf %390, %391 : vector<1x1xf32>
    %393 = vector.broadcast %382 : vector<1x1xf32> to vector<16x3xf32>
    %394 = arith.subf %375, %393 : vector<16x3xf32>
    %cst_95 = arith.constant 9.99999974E-6 : f32
    %395 = vector.broadcast %cst_95 : f32 to vector<1x1xf32>
    %396 = arith.addf %392, %395 : vector<1x1xf32>
    %397 = math.rsqrt %396 : vector<1x1xf32>
    %398 = vector.broadcast %397 : vector<1x1xf32> to vector<16x3xf32>
    %399 = arith.mulf %394, %398 : vector<16x3xf32>
    %c3_96 = arith.constant 3 : index
    %400 = memref.load %arg22[%c3_96] : memref<4xf32, #tpu.memory_space<smem>>
    %401 = vector.broadcast %400 : f32 to vector<16x3xf32>
    %402 = arith.mulf %399, %401 : vector<16x3xf32>
    %c3_97 = arith.constant 3 : index
    %403 = memref.load %arg23[%c3_97] : memref<4xf32, #tpu.memory_space<smem>>
    %404 = vector.broadcast %403 : f32 to vector<16x3xf32>
    %405 = arith.addf %402, %404 : vector<16x3xf32>
    %cst_98 = arith.constant 0.000000e+00 : f32
    %406 = vector.broadcast %cst_98 : f32 to vector<16x3xf32>
    %407 = arith.maximumf %405, %406 : vector<16x3xf32>
    %408 = tpu.concatenate %308, %341, %374, %407 in 1 : vector<16x3xf32>, vector<16x3xf32>, vector<16x3xf32>, vector<16x3xf32> -> vector<16x12xf32>
    %409 = vector.extract_strided_slice %408 {offsets = [0, 0], sizes = [2, 12], strides = [1, 1]} : vector<16x12xf32> to vector<2x12xf32>
    %410 = vector.extract_strided_slice %408 {offsets = [2, 0], sizes = [2, 12], strides = [1, 1]} : vector<16x12xf32> to vector<2x12xf32>
    %411 = vector.extract_strided_slice %408 {offsets = [4, 0], sizes = [2, 12], strides = [1, 1]} : vector<16x12xf32> to vector<2x12xf32>
    %412 = vector.extract_strided_slice %408 {offsets = [6, 0], sizes = [2, 12], strides = [1, 1]} : vector<16x12xf32> to vector<2x12xf32>
    %413 = vector.extract_strided_slice %408 {offsets = [8, 0], sizes = [2, 12], strides = [1, 1]} : vector<16x12xf32> to vector<2x12xf32>
    %414 = vector.extract_strided_slice %408 {offsets = [10, 0], sizes = [2, 12], strides = [1, 1]} : vector<16x12xf32> to vector<2x12xf32>
    %415 = vector.extract_strided_slice %408 {offsets = [12, 0], sizes = [2, 12], strides = [1, 1]} : vector<16x12xf32> to vector<2x12xf32>
    %416 = vector.extract_strided_slice %408 {offsets = [14, 0], sizes = [2, 12], strides = [1, 1]} : vector<16x12xf32> to vector<2x12xf32>
    %c0_99 = arith.constant 0 : index
    %c0_100 = arith.constant 0 : index
    %417 = vector.load %arg7[%c0_99, %c0_100] : memref<1x32xf32, #tpu.memory_space<vmem>>, vector<1x16xf32>
    %418 = vector.shape_cast %417 : vector<1x16xf32> to vector<1x16xf32>
    %419 = vector.broadcast %418 : vector<1x16xf32> to vector<2x16xf32>
    %c0_101 = arith.constant 0 : index
    %c16 = arith.constant 16 : index
    %420 = vector.load %arg7[%c0_101, %c16] : memref<1x32xf32, #tpu.memory_space<vmem>>, vector<1x16xf32>
    %421 = vector.shape_cast %420 : vector<1x16xf32> to vector<1x16xf32>
    %422 = vector.broadcast %421 : vector<1x16xf32> to vector<2x16xf32>
    %c0_102 = arith.constant 0 : index
    %423 = memref.load %arg25[%c0_102] : memref<1xf32, #tpu.memory_space<smem>>
    %c0_103 = arith.constant 0 : index
    %c0_104 = arith.constant 0 : index
    %424 = vector.load %arg5[%c0_103, %c0_104] : memref<28x64xf32, #tpu.memory_space<vmem>>, vector<28x64xf32>
    %c0_105 = arith.constant 0 : index
    %c0_106 = arith.constant 0 : index
    %425 = vector.load %arg6[%c0_105, %c0_106] : memref<1x64xf32, #tpu.memory_space<vmem>>, vector<1x64xf32>
    %426 = vector.shape_cast %425 : vector<1x64xf32> to vector<1x64xf32>
    %427 = vector.broadcast %426 : vector<1x64xf32> to vector<2x64xf32>
    %c0_107 = arith.constant 0 : index
    %428 = memref.load %arg24[%c0_107] : memref<8xf32, #tpu.memory_space<smem>>
    %429 = vector.broadcast %428 : f32 to vector<2x12xf32>
    %430 = arith.mulf %429, %409 : vector<2x12xf32>
    %c1_108 = arith.constant 1 : index
    %431 = memref.load %arg24[%c1_108] : memref<8xf32, #tpu.memory_space<smem>>
    %432 = vector.broadcast %431 : f32 to vector<2x12xf32>
    %433 = arith.mulf %432, %410 : vector<2x12xf32>
    %434 = arith.addf %430, %433 : vector<2x12xf32>
    %c2_109 = arith.constant 2 : index
    %435 = memref.load %arg24[%c2_109] : memref<8xf32, #tpu.memory_space<smem>>
    %436 = vector.broadcast %435 : f32 to vector<2x12xf32>
    %437 = arith.mulf %436, %411 : vector<2x12xf32>
    %438 = arith.addf %434, %437 : vector<2x12xf32>
    %c3_110 = arith.constant 3 : index
    %439 = memref.load %arg24[%c3_110] : memref<8xf32, #tpu.memory_space<smem>>
    %440 = vector.broadcast %439 : f32 to vector<2x12xf32>
    %441 = arith.mulf %440, %412 : vector<2x12xf32>
    %442 = arith.addf %438, %441 : vector<2x12xf32>
    %c4_111 = arith.constant 4 : index
    %443 = memref.load %arg24[%c4_111] : memref<8xf32, #tpu.memory_space<smem>>
    %444 = vector.broadcast %443 : f32 to vector<2x12xf32>
    %445 = arith.mulf %444, %413 : vector<2x12xf32>
    %446 = arith.addf %442, %445 : vector<2x12xf32>
    %c5_112 = arith.constant 5 : index
    %447 = memref.load %arg24[%c5_112] : memref<8xf32, #tpu.memory_space<smem>>
    %448 = vector.broadcast %447 : f32 to vector<2x12xf32>
    %449 = arith.mulf %448, %414 : vector<2x12xf32>
    %450 = arith.addf %446, %449 : vector<2x12xf32>
    %c6_113 = arith.constant 6 : index
    %451 = memref.load %arg24[%c6_113] : memref<8xf32, #tpu.memory_space<smem>>
    %452 = vector.broadcast %451 : f32 to vector<2x12xf32>
    %453 = arith.mulf %452, %415 : vector<2x12xf32>
    %454 = arith.addf %450, %453 : vector<2x12xf32>
    %c7_114 = arith.constant 7 : index
    %455 = memref.load %arg24[%c7_114] : memref<8xf32, #tpu.memory_space<smem>>
    %456 = vector.broadcast %455 : f32 to vector<2x12xf32>
    %457 = arith.mulf %456, %416 : vector<2x12xf32>
    %458 = arith.addf %454, %457 : vector<2x12xf32>
    %cst_115 = arith.constant 0.000000e+00 : f32
    %459 = vector.broadcast %cst_115 : f32 to vector<2x16xf32>
    %cst_116 = arith.constant 0.000000e+00 : f32
    %460 = vector.broadcast %cst_116 : f32 to vector<2x16xf32>
    %461 = arith.mulf %459, %419 : vector<2x16xf32>
    %462 = arith.mulf %460, %422 : vector<2x16xf32>
    %463 = arith.addf %461, %462 : vector<2x16xf32>
    %cst_117 = arith.constant dense<0.000000e+00> : vector<2xf32>
    %464 = vector.multi_reduction <add>, %463, %cst_117 [1] : vector<2x16xf32> to vector<2xf32>
    %465 = vector.shape_cast %464 : vector<2xf32> to vector<2x1xf32>
    %466 = vector.broadcast %465 : vector<2x1xf32> to vector<2x12xf32>
    %467 = arith.addf %466, %458 : vector<2x12xf32>
    %468 = vector.broadcast %423 : f32 to vector<2x12xf32>
    %469 = arith.addf %467, %468 : vector<2x12xf32>
    %cst_118 = arith.constant dense<0xFF800000> : vector<2xf32>
    %470 = vector.multi_reduction <maximumf>, %469, %cst_118 [1] : vector<2x12xf32> to vector<2xf32>
    %471 = vector.shape_cast %470 : vector<2xf32> to vector<2x1xf32>
    %472 = vector.broadcast %471 : vector<2x1xf32> to vector<2x12xf32>
    %473 = arith.subf %469, %472 : vector<2x12xf32>
    %474 = math.exp %473 : vector<2x12xf32>
    %cst_119 = arith.constant dense<0.000000e+00> : vector<2xf32>
    %475 = vector.multi_reduction <add>, %474, %cst_119 [1] : vector<2x12xf32> to vector<2xf32>
    %476 = vector.shape_cast %475 : vector<2xf32> to vector<2x1xf32>
    %477 = tpu.reciprocal %476 {approx = true} : vector<2x1xf32> -> vector<2x1xf32>
    %478 = vector.broadcast %477 : vector<2x1xf32> to vector<2x12xf32>
    %479 = arith.mulf %474, %478 : vector<2x12xf32>
    %480 = arith.mulf %479, %409 : vector<2x12xf32>
    %481 = tpu.concatenate %480, %459 in 1 : vector<2x12xf32>, vector<2x16xf32> -> vector<2x28xf32>
    %cst_120 = arith.constant dense<0.000000e+00> : vector<2x64xf32>
    %482 = tpu.matmul %481, %424, %cst_120 {dimension_numbers = #tpu.dot_dimension_numbers<[1], [0], [0], [1], [0, 0, 1, 1], [], []>} : vector<2x28xf32>, vector<28x64xf32>, vector<2x64xf32> -> vector<2x64xf32>
    %483 = arith.addf %482, %427 : vector<2x64xf32>
    %484 = vector.extract_strided_slice %483 {offsets = [0, 0], sizes = [2, 16], strides = [1, 1]} : vector<2x64xf32> to vector<2x16xf32>
    %cst_121 = arith.constant 5.000000e-01 : f32
    %485 = vector.broadcast %cst_121 : f32 to vector<2x16xf32>
    %486 = arith.mulf %485, %484 : vector<2x16xf32>
    %487 = math.tanh %486 : vector<2x16xf32>
    %cst_122 = arith.constant 1.000000e+00 : f32
    %488 = vector.broadcast %cst_122 : f32 to vector<2x16xf32>
    %489 = arith.addf %487, %488 : vector<2x16xf32>
    %cst_123 = arith.constant 5.000000e-01 : f32
    %490 = vector.broadcast %cst_123 : f32 to vector<2x16xf32>
    %491 = arith.mulf %490, %489 : vector<2x16xf32>
    %492 = vector.extract_strided_slice %483 {offsets = [0, 16], sizes = [2, 16], strides = [1, 1]} : vector<2x64xf32> to vector<2x16xf32>
    %cst_124 = arith.constant 5.000000e-01 : f32
    %493 = vector.broadcast %cst_124 : f32 to vector<2x16xf32>
    %494 = arith.mulf %493, %492 : vector<2x16xf32>
    %495 = math.tanh %494 : vector<2x16xf32>
    %cst_125 = arith.constant 1.000000e+00 : f32
    %496 = vector.broadcast %cst_125 : f32 to vector<2x16xf32>
    %497 = arith.addf %495, %496 : vector<2x16xf32>
    %cst_126 = arith.constant 5.000000e-01 : f32
    %498 = vector.broadcast %cst_126 : f32 to vector<2x16xf32>
    %499 = arith.mulf %498, %497 : vector<2x16xf32>
    %500 = vector.extract_strided_slice %483 {offsets = [0, 32], sizes = [2, 16], strides = [1, 1]} : vector<2x64xf32> to vector<2x16xf32>
    %501 = math.tanh %500 : vector<2x16xf32>
    %502 = vector.extract_strided_slice %483 {offsets = [0, 48], sizes = [2, 16], strides = [1, 1]} : vector<2x64xf32> to vector<2x16xf32>
    %cst_127 = arith.constant 5.000000e-01 : f32
    %503 = vector.broadcast %cst_127 : f32 to vector<2x16xf32>
    %504 = arith.mulf %503, %502 : vector<2x16xf32>
    %505 = math.tanh %504 : vector<2x16xf32>
    %cst_128 = arith.constant 1.000000e+00 : f32
    %506 = vector.broadcast %cst_128 : f32 to vector<2x16xf32>
    %507 = arith.addf %505, %506 : vector<2x16xf32>
    %cst_129 = arith.constant 5.000000e-01 : f32
    %508 = vector.broadcast %cst_129 : f32 to vector<2x16xf32>
    %509 = arith.mulf %508, %507 : vector<2x16xf32>
    %510 = arith.mulf %499, %460 : vector<2x16xf32>
    %511 = arith.mulf %491, %501 : vector<2x16xf32>
    %512 = arith.addf %510, %511 : vector<2x16xf32>
    %513 = math.tanh %512 : vector<2x16xf32>
    %514 = arith.mulf %509, %513 : vector<2x16xf32>
    %515 = arith.mulf %514, %419 : vector<2x16xf32>
    %516 = arith.mulf %512, %422 : vector<2x16xf32>
    %517 = arith.addf %515, %516 : vector<2x16xf32>
    %cst_130 = arith.constant dense<0.000000e+00> : vector<2xf32>
    %518 = vector.multi_reduction <add>, %517, %cst_130 [1] : vector<2x16xf32> to vector<2xf32>
    %519 = vector.shape_cast %518 : vector<2xf32> to vector<2x1xf32>
    %520 = vector.broadcast %519 : vector<2x1xf32> to vector<2x12xf32>
    %521 = arith.addf %520, %458 : vector<2x12xf32>
    %522 = vector.broadcast %423 : f32 to vector<2x12xf32>
    %523 = arith.addf %521, %522 : vector<2x12xf32>
    %cst_131 = arith.constant dense<0xFF800000> : vector<2xf32>
    %524 = vector.multi_reduction <maximumf>, %523, %cst_131 [1] : vector<2x12xf32> to vector<2xf32>
    %525 = vector.shape_cast %524 : vector<2xf32> to vector<2x1xf32>
    %526 = vector.broadcast %525 : vector<2x1xf32> to vector<2x12xf32>
    %527 = arith.subf %523, %526 : vector<2x12xf32>
    %528 = math.exp %527 : vector<2x12xf32>
    %cst_132 = arith.constant dense<0.000000e+00> : vector<2xf32>
    %529 = vector.multi_reduction <add>, %528, %cst_132 [1] : vector<2x12xf32> to vector<2xf32>
    %530 = vector.shape_cast %529 : vector<2xf32> to vector<2x1xf32>
    %531 = tpu.reciprocal %530 {approx = true} : vector<2x1xf32> -> vector<2x1xf32>
    %532 = vector.broadcast %531 : vector<2x1xf32> to vector<2x12xf32>
    %533 = arith.mulf %528, %532 : vector<2x12xf32>
    %534 = arith.mulf %533, %410 : vector<2x12xf32>
    %535 = tpu.concatenate %534, %514 in 1 : vector<2x12xf32>, vector<2x16xf32> -> vector<2x28xf32>
    %cst_133 = arith.constant dense<0.000000e+00> : vector<2x64xf32>
    %536 = tpu.matmul %535, %424, %cst_133 {dimension_numbers = #tpu.dot_dimension_numbers<[1], [0], [0], [1], [0, 0, 1, 1], [], []>} : vector<2x28xf32>, vector<28x64xf32>, vector<2x64xf32> -> vector<2x64xf32>
    %537 = arith.addf %536, %427 : vector<2x64xf32>
    %538 = vector.extract_strided_slice %537 {offsets = [0, 0], sizes = [2, 16], strides = [1, 1]} : vector<2x64xf32> to vector<2x16xf32>
    %cst_134 = arith.constant 5.000000e-01 : f32
    %539 = vector.broadcast %cst_134 : f32 to vector<2x16xf32>
    %540 = arith.mulf %539, %538 : vector<2x16xf32>
    %541 = math.tanh %540 : vector<2x16xf32>
    %cst_135 = arith.constant 1.000000e+00 : f32
    %542 = vector.broadcast %cst_135 : f32 to vector<2x16xf32>
    %543 = arith.addf %541, %542 : vector<2x16xf32>
    %cst_136 = arith.constant 5.000000e-01 : f32
    %544 = vector.broadcast %cst_136 : f32 to vector<2x16xf32>
    %545 = arith.mulf %544, %543 : vector<2x16xf32>
    %546 = vector.extract_strided_slice %537 {offsets = [0, 16], sizes = [2, 16], strides = [1, 1]} : vector<2x64xf32> to vector<2x16xf32>
    %cst_137 = arith.constant 5.000000e-01 : f32
    %547 = vector.broadcast %cst_137 : f32 to vector<2x16xf32>
    %548 = arith.mulf %547, %546 : vector<2x16xf32>
    %549 = math.tanh %548 : vector<2x16xf32>
    %cst_138 = arith.constant 1.000000e+00 : f32
    %550 = vector.broadcast %cst_138 : f32 to vector<2x16xf32>
    %551 = arith.addf %549, %550 : vector<2x16xf32>
    %cst_139 = arith.constant 5.000000e-01 : f32
    %552 = vector.broadcast %cst_139 : f32 to vector<2x16xf32>
    %553 = arith.mulf %552, %551 : vector<2x16xf32>
    %554 = vector.extract_strided_slice %537 {offsets = [0, 32], sizes = [2, 16], strides = [1, 1]} : vector<2x64xf32> to vector<2x16xf32>
    %555 = math.tanh %554 : vector<2x16xf32>
    %556 = vector.extract_strided_slice %537 {offsets = [0, 48], sizes = [2, 16], strides = [1, 1]} : vector<2x64xf32> to vector<2x16xf32>
    %cst_140 = arith.constant 5.000000e-01 : f32
    %557 = vector.broadcast %cst_140 : f32 to vector<2x16xf32>
    %558 = arith.mulf %557, %556 : vector<2x16xf32>
    %559 = math.tanh %558 : vector<2x16xf32>
    %cst_141 = arith.constant 1.000000e+00 : f32
    %560 = vector.broadcast %cst_141 : f32 to vector<2x16xf32>
    %561 = arith.addf %559, %560 : vector<2x16xf32>
    %cst_142 = arith.constant 5.000000e-01 : f32
    %562 = vector.broadcast %cst_142 : f32 to vector<2x16xf32>
    %563 = arith.mulf %562, %561 : vector<2x16xf32>
    %564 = arith.mulf %553, %512 : vector<2x16xf32>
    %565 = arith.mulf %545, %555 : vector<2x16xf32>
    %566 = arith.addf %564, %565 : vector<2x16xf32>
    %567 = math.tanh %566 : vector<2x16xf32>
    %568 = arith.mulf %563, %567 : vector<2x16xf32>
    %569 = arith.mulf %568, %419 : vector<2x16xf32>
    %570 = arith.mulf %566, %422 : vector<2x16xf32>
    %571 = arith.addf %569, %570 : vector<2x16xf32>
    %cst_143 = arith.constant dense<0.000000e+00> : vector<2xf32>
    %572 = vector.multi_reduction <add>, %571, %cst_143 [1] : vector<2x16xf32> to vector<2xf32>
    %573 = vector.shape_cast %572 : vector<2xf32> to vector<2x1xf32>
    %574 = vector.broadcast %573 : vector<2x1xf32> to vector<2x12xf32>
    %575 = arith.addf %574, %458 : vector<2x12xf32>
    %576 = vector.broadcast %423 : f32 to vector<2x12xf32>
    %577 = arith.addf %575, %576 : vector<2x12xf32>
    %cst_144 = arith.constant dense<0xFF800000> : vector<2xf32>
    %578 = vector.multi_reduction <maximumf>, %577, %cst_144 [1] : vector<2x12xf32> to vector<2xf32>
    %579 = vector.shape_cast %578 : vector<2xf32> to vector<2x1xf32>
    %580 = vector.broadcast %579 : vector<2x1xf32> to vector<2x12xf32>
    %581 = arith.subf %577, %580 : vector<2x12xf32>
    %582 = math.exp %581 : vector<2x12xf32>
    %cst_145 = arith.constant dense<0.000000e+00> : vector<2xf32>
    %583 = vector.multi_reduction <add>, %582, %cst_145 [1] : vector<2x12xf32> to vector<2xf32>
    %584 = vector.shape_cast %583 : vector<2xf32> to vector<2x1xf32>
    %585 = tpu.reciprocal %584 {approx = true} : vector<2x1xf32> -> vector<2x1xf32>
    %586 = vector.broadcast %585 : vector<2x1xf32> to vector<2x12xf32>
    %587 = arith.mulf %582, %586 : vector<2x12xf32>
    %588 = arith.mulf %587, %411 : vector<2x12xf32>
    %589 = tpu.concatenate %588, %568 in 1 : vector<2x12xf32>, vector<2x16xf32> -> vector<2x28xf32>
    %cst_146 = arith.constant dense<0.000000e+00> : vector<2x64xf32>
    %590 = tpu.matmul %589, %424, %cst_146 {dimension_numbers = #tpu.dot_dimension_numbers<[1], [0], [0], [1], [0, 0, 1, 1], [], []>} : vector<2x28xf32>, vector<28x64xf32>, vector<2x64xf32> -> vector<2x64xf32>
    %591 = arith.addf %590, %427 : vector<2x64xf32>
    %592 = vector.extract_strided_slice %591 {offsets = [0, 0], sizes = [2, 16], strides = [1, 1]} : vector<2x64xf32> to vector<2x16xf32>
    %cst_147 = arith.constant 5.000000e-01 : f32
    %593 = vector.broadcast %cst_147 : f32 to vector<2x16xf32>
    %594 = arith.mulf %593, %592 : vector<2x16xf32>
    %595 = math.tanh %594 : vector<2x16xf32>
    %cst_148 = arith.constant 1.000000e+00 : f32
    %596 = vector.broadcast %cst_148 : f32 to vector<2x16xf32>
    %597 = arith.addf %595, %596 : vector<2x16xf32>
    %cst_149 = arith.constant 5.000000e-01 : f32
    %598 = vector.broadcast %cst_149 : f32 to vector<2x16xf32>
    %599 = arith.mulf %598, %597 : vector<2x16xf32>
    %600 = vector.extract_strided_slice %591 {offsets = [0, 16], sizes = [2, 16], strides = [1, 1]} : vector<2x64xf32> to vector<2x16xf32>
    %cst_150 = arith.constant 5.000000e-01 : f32
    %601 = vector.broadcast %cst_150 : f32 to vector<2x16xf32>
    %602 = arith.mulf %601, %600 : vector<2x16xf32>
    %603 = math.tanh %602 : vector<2x16xf32>
    %cst_151 = arith.constant 1.000000e+00 : f32
    %604 = vector.broadcast %cst_151 : f32 to vector<2x16xf32>
    %605 = arith.addf %603, %604 : vector<2x16xf32>
    %cst_152 = arith.constant 5.000000e-01 : f32
    %606 = vector.broadcast %cst_152 : f32 to vector<2x16xf32>
    %607 = arith.mulf %606, %605 : vector<2x16xf32>
    %608 = vector.extract_strided_slice %591 {offsets = [0, 32], sizes = [2, 16], strides = [1, 1]} : vector<2x64xf32> to vector<2x16xf32>
    %609 = math.tanh %608 : vector<2x16xf32>
    %610 = vector.extract_strided_slice %591 {offsets = [0, 48], sizes = [2, 16], strides = [1, 1]} : vector<2x64xf32> to vector<2x16xf32>
    %cst_153 = arith.constant 5.000000e-01 : f32
    %611 = vector.broadcast %cst_153 : f32 to vector<2x16xf32>
    %612 = arith.mulf %611, %610 : vector<2x16xf32>
    %613 = math.tanh %612 : vector<2x16xf32>
    %cst_154 = arith.constant 1.000000e+00 : f32
    %614 = vector.broadcast %cst_154 : f32 to vector<2x16xf32>
    %615 = arith.addf %613, %614 : vector<2x16xf32>
    %cst_155 = arith.constant 5.000000e-01 : f32
    %616 = vector.broadcast %cst_155 : f32 to vector<2x16xf32>
    %617 = arith.mulf %616, %615 : vector<2x16xf32>
    %618 = arith.mulf %607, %566 : vector<2x16xf32>
    %619 = arith.mulf %599, %609 : vector<2x16xf32>
    %620 = arith.addf %618, %619 : vector<2x16xf32>
    %621 = math.tanh %620 : vector<2x16xf32>
    %622 = arith.mulf %617, %621 : vector<2x16xf32>
    %623 = arith.mulf %622, %419 : vector<2x16xf32>
    %624 = arith.mulf %620, %422 : vector<2x16xf32>
    %625 = arith.addf %623, %624 : vector<2x16xf32>
    %cst_156 = arith.constant dense<0.000000e+00> : vector<2xf32>
    %626 = vector.multi_reduction <add>, %625, %cst_156 [1] : vector<2x16xf32> to vector<2xf32>
    %627 = vector.shape_cast %626 : vector<2xf32> to vector<2x1xf32>
    %628 = vector.broadcast %627 : vector<2x1xf32> to vector<2x12xf32>
    %629 = arith.addf %628, %458 : vector<2x12xf32>
    %630 = vector.broadcast %423 : f32 to vector<2x12xf32>
    %631 = arith.addf %629, %630 : vector<2x12xf32>
    %cst_157 = arith.constant dense<0xFF800000> : vector<2xf32>
    %632 = vector.multi_reduction <maximumf>, %631, %cst_157 [1] : vector<2x12xf32> to vector<2xf32>
    %633 = vector.shape_cast %632 : vector<2xf32> to vector<2x1xf32>
    %634 = vector.broadcast %633 : vector<2x1xf32> to vector<2x12xf32>
    %635 = arith.subf %631, %634 : vector<2x12xf32>
    %636 = math.exp %635 : vector<2x12xf32>
    %cst_158 = arith.constant dense<0.000000e+00> : vector<2xf32>
    %637 = vector.multi_reduction <add>, %636, %cst_158 [1] : vector<2x12xf32> to vector<2xf32>
    %638 = vector.shape_cast %637 : vector<2xf32> to vector<2x1xf32>
    %639 = tpu.reciprocal %638 {approx = true} : vector<2x1xf32> -> vector<2x1xf32>
    %640 = vector.broadcast %639 : vector<2x1xf32> to vector<2x12xf32>
    %641 = arith.mulf %636, %640 : vector<2x12xf32>
    %642 = arith.mulf %641, %412 : vector<2x12xf32>
    %643 = tpu.concatenate %642, %622 in 1 : vector<2x12xf32>, vector<2x16xf32> -> vector<2x28xf32>
    %cst_159 = arith.constant dense<0.000000e+00> : vector<2x64xf32>
    %644 = tpu.matmul %643, %424, %cst_159 {dimension_numbers = #tpu.dot_dimension_numbers<[1], [0], [0], [1], [0, 0, 1, 1], [], []>} : vector<2x28xf32>, vector<28x64xf32>, vector<2x64xf32> -> vector<2x64xf32>
    %645 = arith.addf %644, %427 : vector<2x64xf32>
    %646 = vector.extract_strided_slice %645 {offsets = [0, 0], sizes = [2, 16], strides = [1, 1]} : vector<2x64xf32> to vector<2x16xf32>
    %cst_160 = arith.constant 5.000000e-01 : f32
    %647 = vector.broadcast %cst_160 : f32 to vector<2x16xf32>
    %648 = arith.mulf %647, %646 : vector<2x16xf32>
    %649 = math.tanh %648 : vector<2x16xf32>
    %cst_161 = arith.constant 1.000000e+00 : f32
    %650 = vector.broadcast %cst_161 : f32 to vector<2x16xf32>
    %651 = arith.addf %649, %650 : vector<2x16xf32>
    %cst_162 = arith.constant 5.000000e-01 : f32
    %652 = vector.broadcast %cst_162 : f32 to vector<2x16xf32>
    %653 = arith.mulf %652, %651 : vector<2x16xf32>
    %654 = vector.extract_strided_slice %645 {offsets = [0, 16], sizes = [2, 16], strides = [1, 1]} : vector<2x64xf32> to vector<2x16xf32>
    %cst_163 = arith.constant 5.000000e-01 : f32
    %655 = vector.broadcast %cst_163 : f32 to vector<2x16xf32>
    %656 = arith.mulf %655, %654 : vector<2x16xf32>
    %657 = math.tanh %656 : vector<2x16xf32>
    %cst_164 = arith.constant 1.000000e+00 : f32
    %658 = vector.broadcast %cst_164 : f32 to vector<2x16xf32>
    %659 = arith.addf %657, %658 : vector<2x16xf32>
    %cst_165 = arith.constant 5.000000e-01 : f32
    %660 = vector.broadcast %cst_165 : f32 to vector<2x16xf32>
    %661 = arith.mulf %660, %659 : vector<2x16xf32>
    %662 = vector.extract_strided_slice %645 {offsets = [0, 32], sizes = [2, 16], strides = [1, 1]} : vector<2x64xf32> to vector<2x16xf32>
    %663 = math.tanh %662 : vector<2x16xf32>
    %664 = vector.extract_strided_slice %645 {offsets = [0, 48], sizes = [2, 16], strides = [1, 1]} : vector<2x64xf32> to vector<2x16xf32>
    %cst_166 = arith.constant 5.000000e-01 : f32
    %665 = vector.broadcast %cst_166 : f32 to vector<2x16xf32>
    %666 = arith.mulf %665, %664 : vector<2x16xf32>
    %667 = math.tanh %666 : vector<2x16xf32>
    %cst_167 = arith.constant 1.000000e+00 : f32
    %668 = vector.broadcast %cst_167 : f32 to vector<2x16xf32>
    %669 = arith.addf %667, %668 : vector<2x16xf32>
    %cst_168 = arith.constant 5.000000e-01 : f32
    %670 = vector.broadcast %cst_168 : f32 to vector<2x16xf32>
    %671 = arith.mulf %670, %669 : vector<2x16xf32>
    %672 = arith.mulf %661, %620 : vector<2x16xf32>
    %673 = arith.mulf %653, %663 : vector<2x16xf32>
    %674 = arith.addf %672, %673 : vector<2x16xf32>
    %675 = math.tanh %674 : vector<2x16xf32>
    %676 = arith.mulf %671, %675 : vector<2x16xf32>
    %677 = arith.mulf %676, %419 : vector<2x16xf32>
    %678 = arith.mulf %674, %422 : vector<2x16xf32>
    %679 = arith.addf %677, %678 : vector<2x16xf32>
    %cst_169 = arith.constant dense<0.000000e+00> : vector<2xf32>
    %680 = vector.multi_reduction <add>, %679, %cst_169 [1] : vector<2x16xf32> to vector<2xf32>
    %681 = vector.shape_cast %680 : vector<2xf32> to vector<2x1xf32>
    %682 = vector.broadcast %681 : vector<2x1xf32> to vector<2x12xf32>
    %683 = arith.addf %682, %458 : vector<2x12xf32>
    %684 = vector.broadcast %423 : f32 to vector<2x12xf32>
    %685 = arith.addf %683, %684 : vector<2x12xf32>
    %cst_170 = arith.constant dense<0xFF800000> : vector<2xf32>
    %686 = vector.multi_reduction <maximumf>, %685, %cst_170 [1] : vector<2x12xf32> to vector<2xf32>
    %687 = vector.shape_cast %686 : vector<2xf32> to vector<2x1xf32>
    %688 = vector.broadcast %687 : vector<2x1xf32> to vector<2x12xf32>
    %689 = arith.subf %685, %688 : vector<2x12xf32>
    %690 = math.exp %689 : vector<2x12xf32>
    %cst_171 = arith.constant dense<0.000000e+00> : vector<2xf32>
    %691 = vector.multi_reduction <add>, %690, %cst_171 [1] : vector<2x12xf32> to vector<2xf32>
    %692 = vector.shape_cast %691 : vector<2xf32> to vector<2x1xf32>
    %693 = tpu.reciprocal %692 {approx = true} : vector<2x1xf32> -> vector<2x1xf32>
    %694 = vector.broadcast %693 : vector<2x1xf32> to vector<2x12xf32>
    %695 = arith.mulf %690, %694 : vector<2x12xf32>
    %696 = arith.mulf %695, %413 : vector<2x12xf32>
    %697 = tpu.concatenate %696, %676 in 1 : vector<2x12xf32>, vector<2x16xf32> -> vector<2x28xf32>
    %cst_172 = arith.constant dense<0.000000e+00> : vector<2x64xf32>
    %698 = tpu.matmul %697, %424, %cst_172 {dimension_numbers = #tpu.dot_dimension_numbers<[1], [0], [0], [1], [0, 0, 1, 1], [], []>} : vector<2x28xf32>, vector<28x64xf32>, vector<2x64xf32> -> vector<2x64xf32>
    %699 = arith.addf %698, %427 : vector<2x64xf32>
    %700 = vector.extract_strided_slice %699 {offsets = [0, 0], sizes = [2, 16], strides = [1, 1]} : vector<2x64xf32> to vector<2x16xf32>
    %cst_173 = arith.constant 5.000000e-01 : f32
    %701 = vector.broadcast %cst_173 : f32 to vector<2x16xf32>
    %702 = arith.mulf %701, %700 : vector<2x16xf32>
    %703 = math.tanh %702 : vector<2x16xf32>
    %cst_174 = arith.constant 1.000000e+00 : f32
    %704 = vector.broadcast %cst_174 : f32 to vector<2x16xf32>
    %705 = arith.addf %703, %704 : vector<2x16xf32>
    %cst_175 = arith.constant 5.000000e-01 : f32
    %706 = vector.broadcast %cst_175 : f32 to vector<2x16xf32>
    %707 = arith.mulf %706, %705 : vector<2x16xf32>
    %708 = vector.extract_strided_slice %699 {offsets = [0, 16], sizes = [2, 16], strides = [1, 1]} : vector<2x64xf32> to vector<2x16xf32>
    %cst_176 = arith.constant 5.000000e-01 : f32
    %709 = vector.broadcast %cst_176 : f32 to vector<2x16xf32>
    %710 = arith.mulf %709, %708 : vector<2x16xf32>
    %711 = math.tanh %710 : vector<2x16xf32>
    %cst_177 = arith.constant 1.000000e+00 : f32
    %712 = vector.broadcast %cst_177 : f32 to vector<2x16xf32>
    %713 = arith.addf %711, %712 : vector<2x16xf32>
    %cst_178 = arith.constant 5.000000e-01 : f32
    %714 = vector.broadcast %cst_178 : f32 to vector<2x16xf32>
    %715 = arith.mulf %714, %713 : vector<2x16xf32>
    %716 = vector.extract_strided_slice %699 {offsets = [0, 32], sizes = [2, 16], strides = [1, 1]} : vector<2x64xf32> to vector<2x16xf32>
    %717 = math.tanh %716 : vector<2x16xf32>
    %718 = vector.extract_strided_slice %699 {offsets = [0, 48], sizes = [2, 16], strides = [1, 1]} : vector<2x64xf32> to vector<2x16xf32>
    %cst_179 = arith.constant 5.000000e-01 : f32
    %719 = vector.broadcast %cst_179 : f32 to vector<2x16xf32>
    %720 = arith.mulf %719, %718 : vector<2x16xf32>
    %721 = math.tanh %720 : vector<2x16xf32>
    %cst_180 = arith.constant 1.000000e+00 : f32
    %722 = vector.broadcast %cst_180 : f32 to vector<2x16xf32>
    %723 = arith.addf %721, %722 : vector<2x16xf32>
    %cst_181 = arith.constant 5.000000e-01 : f32
    %724 = vector.broadcast %cst_181 : f32 to vector<2x16xf32>
    %725 = arith.mulf %724, %723 : vector<2x16xf32>
    %726 = arith.mulf %715, %674 : vector<2x16xf32>
    %727 = arith.mulf %707, %717 : vector<2x16xf32>
    %728 = arith.addf %726, %727 : vector<2x16xf32>
    %729 = math.tanh %728 : vector<2x16xf32>
    %730 = arith.mulf %725, %729 : vector<2x16xf32>
    %731 = arith.mulf %730, %419 : vector<2x16xf32>
    %732 = arith.mulf %728, %422 : vector<2x16xf32>
    %733 = arith.addf %731, %732 : vector<2x16xf32>
    %cst_182 = arith.constant dense<0.000000e+00> : vector<2xf32>
    %734 = vector.multi_reduction <add>, %733, %cst_182 [1] : vector<2x16xf32> to vector<2xf32>
    %735 = vector.shape_cast %734 : vector<2xf32> to vector<2x1xf32>
    %736 = vector.broadcast %735 : vector<2x1xf32> to vector<2x12xf32>
    %737 = arith.addf %736, %458 : vector<2x12xf32>
    %738 = vector.broadcast %423 : f32 to vector<2x12xf32>
    %739 = arith.addf %737, %738 : vector<2x12xf32>
    %cst_183 = arith.constant dense<0xFF800000> : vector<2xf32>
    %740 = vector.multi_reduction <maximumf>, %739, %cst_183 [1] : vector<2x12xf32> to vector<2xf32>
    %741 = vector.shape_cast %740 : vector<2xf32> to vector<2x1xf32>
    %742 = vector.broadcast %741 : vector<2x1xf32> to vector<2x12xf32>
    %743 = arith.subf %739, %742 : vector<2x12xf32>
    %744 = math.exp %743 : vector<2x12xf32>
    %cst_184 = arith.constant dense<0.000000e+00> : vector<2xf32>
    %745 = vector.multi_reduction <add>, %744, %cst_184 [1] : vector<2x12xf32> to vector<2xf32>
    %746 = vector.shape_cast %745 : vector<2xf32> to vector<2x1xf32>
    %747 = tpu.reciprocal %746 {approx = true} : vector<2x1xf32> -> vector<2x1xf32>
    %748 = vector.broadcast %747 : vector<2x1xf32> to vector<2x12xf32>
    %749 = arith.mulf %744, %748 : vector<2x12xf32>
    %750 = arith.mulf %749, %414 : vector<2x12xf32>
    %751 = tpu.concatenate %750, %730 in 1 : vector<2x12xf32>, vector<2x16xf32> -> vector<2x28xf32>
    %cst_185 = arith.constant dense<0.000000e+00> : vector<2x64xf32>
    %752 = tpu.matmul %751, %424, %cst_185 {dimension_numbers = #tpu.dot_dimension_numbers<[1], [0], [0], [1], [0, 0, 1, 1], [], []>} : vector<2x28xf32>, vector<28x64xf32>, vector<2x64xf32> -> vector<2x64xf32>
    %753 = arith.addf %752, %427 : vector<2x64xf32>
    %754 = vector.extract_strided_slice %753 {offsets = [0, 0], sizes = [2, 16], strides = [1, 1]} : vector<2x64xf32> to vector<2x16xf32>
    %cst_186 = arith.constant 5.000000e-01 : f32
    %755 = vector.broadcast %cst_186 : f32 to vector<2x16xf32>
    %756 = arith.mulf %755, %754 : vector<2x16xf32>
    %757 = math.tanh %756 : vector<2x16xf32>
    %cst_187 = arith.constant 1.000000e+00 : f32
    %758 = vector.broadcast %cst_187 : f32 to vector<2x16xf32>
    %759 = arith.addf %757, %758 : vector<2x16xf32>
    %cst_188 = arith.constant 5.000000e-01 : f32
    %760 = vector.broadcast %cst_188 : f32 to vector<2x16xf32>
    %761 = arith.mulf %760, %759 : vector<2x16xf32>
    %762 = vector.extract_strided_slice %753 {offsets = [0, 16], sizes = [2, 16], strides = [1, 1]} : vector<2x64xf32> to vector<2x16xf32>
    %cst_189 = arith.constant 5.000000e-01 : f32
    %763 = vector.broadcast %cst_189 : f32 to vector<2x16xf32>
    %764 = arith.mulf %763, %762 : vector<2x16xf32>
    %765 = math.tanh %764 : vector<2x16xf32>
    %cst_190 = arith.constant 1.000000e+00 : f32
    %766 = vector.broadcast %cst_190 : f32 to vector<2x16xf32>
    %767 = arith.addf %765, %766 : vector<2x16xf32>
    %cst_191 = arith.constant 5.000000e-01 : f32
    %768 = vector.broadcast %cst_191 : f32 to vector<2x16xf32>
    %769 = arith.mulf %768, %767 : vector<2x16xf32>
    %770 = vector.extract_strided_slice %753 {offsets = [0, 32], sizes = [2, 16], strides = [1, 1]} : vector<2x64xf32> to vector<2x16xf32>
    %771 = math.tanh %770 : vector<2x16xf32>
    %772 = vector.extract_strided_slice %753 {offsets = [0, 48], sizes = [2, 16], strides = [1, 1]} : vector<2x64xf32> to vector<2x16xf32>
    %cst_192 = arith.constant 5.000000e-01 : f32
    %773 = vector.broadcast %cst_192 : f32 to vector<2x16xf32>
    %774 = arith.mulf %773, %772 : vector<2x16xf32>
    %775 = math.tanh %774 : vector<2x16xf32>
    %cst_193 = arith.constant 1.000000e+00 : f32
    %776 = vector.broadcast %cst_193 : f32 to vector<2x16xf32>
    %777 = arith.addf %775, %776 : vector<2x16xf32>
    %cst_194 = arith.constant 5.000000e-01 : f32
    %778 = vector.broadcast %cst_194 : f32 to vector<2x16xf32>
    %779 = arith.mulf %778, %777 : vector<2x16xf32>
    %780 = arith.mulf %769, %728 : vector<2x16xf32>
    %781 = arith.mulf %761, %771 : vector<2x16xf32>
    %782 = arith.addf %780, %781 : vector<2x16xf32>
    %783 = math.tanh %782 : vector<2x16xf32>
    %784 = arith.mulf %779, %783 : vector<2x16xf32>
    %785 = arith.mulf %784, %419 : vector<2x16xf32>
    %786 = arith.mulf %782, %422 : vector<2x16xf32>
    %787 = arith.addf %785, %786 : vector<2x16xf32>
    %cst_195 = arith.constant dense<0.000000e+00> : vector<2xf32>
    %788 = vector.multi_reduction <add>, %787, %cst_195 [1] : vector<2x16xf32> to vector<2xf32>
    %789 = vector.shape_cast %788 : vector<2xf32> to vector<2x1xf32>
    %790 = vector.broadcast %789 : vector<2x1xf32> to vector<2x12xf32>
    %791 = arith.addf %790, %458 : vector<2x12xf32>
    %792 = vector.broadcast %423 : f32 to vector<2x12xf32>
    %793 = arith.addf %791, %792 : vector<2x12xf32>
    %cst_196 = arith.constant dense<0xFF800000> : vector<2xf32>
    %794 = vector.multi_reduction <maximumf>, %793, %cst_196 [1] : vector<2x12xf32> to vector<2xf32>
    %795 = vector.shape_cast %794 : vector<2xf32> to vector<2x1xf32>
    %796 = vector.broadcast %795 : vector<2x1xf32> to vector<2x12xf32>
    %797 = arith.subf %793, %796 : vector<2x12xf32>
    %798 = math.exp %797 : vector<2x12xf32>
    %cst_197 = arith.constant dense<0.000000e+00> : vector<2xf32>
    %799 = vector.multi_reduction <add>, %798, %cst_197 [1] : vector<2x12xf32> to vector<2xf32>
    %800 = vector.shape_cast %799 : vector<2xf32> to vector<2x1xf32>
    %801 = tpu.reciprocal %800 {approx = true} : vector<2x1xf32> -> vector<2x1xf32>
    %802 = vector.broadcast %801 : vector<2x1xf32> to vector<2x12xf32>
    %803 = arith.mulf %798, %802 : vector<2x12xf32>
    %804 = arith.mulf %803, %415 : vector<2x12xf32>
    %805 = tpu.concatenate %804, %784 in 1 : vector<2x12xf32>, vector<2x16xf32> -> vector<2x28xf32>
    %cst_198 = arith.constant dense<0.000000e+00> : vector<2x64xf32>
    %806 = tpu.matmul %805, %424, %cst_198 {dimension_numbers = #tpu.dot_dimension_numbers<[1], [0], [0], [1], [0, 0, 1, 1], [], []>} : vector<2x28xf32>, vector<28x64xf32>, vector<2x64xf32> -> vector<2x64xf32>
    %807 = arith.addf %806, %427 : vector<2x64xf32>
    %808 = vector.extract_strided_slice %807 {offsets = [0, 0], sizes = [2, 16], strides = [1, 1]} : vector<2x64xf32> to vector<2x16xf32>
    %cst_199 = arith.constant 5.000000e-01 : f32
    %809 = vector.broadcast %cst_199 : f32 to vector<2x16xf32>
    %810 = arith.mulf %809, %808 : vector<2x16xf32>
    %811 = math.tanh %810 : vector<2x16xf32>
    %cst_200 = arith.constant 1.000000e+00 : f32
    %812 = vector.broadcast %cst_200 : f32 to vector<2x16xf32>
    %813 = arith.addf %811, %812 : vector<2x16xf32>
    %cst_201 = arith.constant 5.000000e-01 : f32
    %814 = vector.broadcast %cst_201 : f32 to vector<2x16xf32>
    %815 = arith.mulf %814, %813 : vector<2x16xf32>
    %816 = vector.extract_strided_slice %807 {offsets = [0, 16], sizes = [2, 16], strides = [1, 1]} : vector<2x64xf32> to vector<2x16xf32>
    %cst_202 = arith.constant 5.000000e-01 : f32
    %817 = vector.broadcast %cst_202 : f32 to vector<2x16xf32>
    %818 = arith.mulf %817, %816 : vector<2x16xf32>
    %819 = math.tanh %818 : vector<2x16xf32>
    %cst_203 = arith.constant 1.000000e+00 : f32
    %820 = vector.broadcast %cst_203 : f32 to vector<2x16xf32>
    %821 = arith.addf %819, %820 : vector<2x16xf32>
    %cst_204 = arith.constant 5.000000e-01 : f32
    %822 = vector.broadcast %cst_204 : f32 to vector<2x16xf32>
    %823 = arith.mulf %822, %821 : vector<2x16xf32>
    %824 = vector.extract_strided_slice %807 {offsets = [0, 32], sizes = [2, 16], strides = [1, 1]} : vector<2x64xf32> to vector<2x16xf32>
    %825 = math.tanh %824 : vector<2x16xf32>
    %826 = vector.extract_strided_slice %807 {offsets = [0, 48], sizes = [2, 16], strides = [1, 1]} : vector<2x64xf32> to vector<2x16xf32>
    %cst_205 = arith.constant 5.000000e-01 : f32
    %827 = vector.broadcast %cst_205 : f32 to vector<2x16xf32>
    %828 = arith.mulf %827, %826 : vector<2x16xf32>
    %829 = math.tanh %828 : vector<2x16xf32>
    %cst_206 = arith.constant 1.000000e+00 : f32
    %830 = vector.broadcast %cst_206 : f32 to vector<2x16xf32>
    %831 = arith.addf %829, %830 : vector<2x16xf32>
    %cst_207 = arith.constant 5.000000e-01 : f32
    %832 = vector.broadcast %cst_207 : f32 to vector<2x16xf32>
    %833 = arith.mulf %832, %831 : vector<2x16xf32>
    %834 = arith.mulf %823, %782 : vector<2x16xf32>
    %835 = arith.mulf %815, %825 : vector<2x16xf32>
    %836 = arith.addf %834, %835 : vector<2x16xf32>
    %837 = math.tanh %836 : vector<2x16xf32>
    %838 = arith.mulf %833, %837 : vector<2x16xf32>
    %839 = arith.mulf %838, %419 : vector<2x16xf32>
    %840 = arith.mulf %836, %422 : vector<2x16xf32>
    %841 = arith.addf %839, %840 : vector<2x16xf32>
    %cst_208 = arith.constant dense<0.000000e+00> : vector<2xf32>
    %842 = vector.multi_reduction <add>, %841, %cst_208 [1] : vector<2x16xf32> to vector<2xf32>
    %843 = vector.shape_cast %842 : vector<2xf32> to vector<2x1xf32>
    %844 = vector.broadcast %843 : vector<2x1xf32> to vector<2x12xf32>
    %845 = arith.addf %844, %458 : vector<2x12xf32>
    %846 = vector.broadcast %423 : f32 to vector<2x12xf32>
    %847 = arith.addf %845, %846 : vector<2x12xf32>
    %cst_209 = arith.constant dense<0xFF800000> : vector<2xf32>
    %848 = vector.multi_reduction <maximumf>, %847, %cst_209 [1] : vector<2x12xf32> to vector<2xf32>
    %849 = vector.shape_cast %848 : vector<2xf32> to vector<2x1xf32>
    %850 = vector.broadcast %849 : vector<2x1xf32> to vector<2x12xf32>
    %851 = arith.subf %847, %850 : vector<2x12xf32>
    %852 = math.exp %851 : vector<2x12xf32>
    %cst_210 = arith.constant dense<0.000000e+00> : vector<2xf32>
    %853 = vector.multi_reduction <add>, %852, %cst_210 [1] : vector<2x12xf32> to vector<2xf32>
    %854 = vector.shape_cast %853 : vector<2xf32> to vector<2x1xf32>
    %855 = tpu.reciprocal %854 {approx = true} : vector<2x1xf32> -> vector<2x1xf32>
    %856 = vector.broadcast %855 : vector<2x1xf32> to vector<2x12xf32>
    %857 = arith.mulf %852, %856 : vector<2x12xf32>
    %858 = arith.mulf %857, %416 : vector<2x12xf32>
    %859 = tpu.concatenate %858, %838 in 1 : vector<2x12xf32>, vector<2x16xf32> -> vector<2x28xf32>
    %cst_211 = arith.constant dense<0.000000e+00> : vector<2x64xf32>
    %860 = tpu.matmul %859, %424, %cst_211 {dimension_numbers = #tpu.dot_dimension_numbers<[1], [0], [0], [1], [0, 0, 1, 1], [], []>} : vector<2x28xf32>, vector<28x64xf32>, vector<2x64xf32> -> vector<2x64xf32>
    %861 = arith.addf %860, %427 : vector<2x64xf32>
    %862 = vector.extract_strided_slice %861 {offsets = [0, 0], sizes = [2, 16], strides = [1, 1]} : vector<2x64xf32> to vector<2x16xf32>
    %cst_212 = arith.constant 5.000000e-01 : f32
    %863 = vector.broadcast %cst_212 : f32 to vector<2x16xf32>
    %864 = arith.mulf %863, %862 : vector<2x16xf32>
    %865 = math.tanh %864 : vector<2x16xf32>
    %cst_213 = arith.constant 1.000000e+00 : f32
    %866 = vector.broadcast %cst_213 : f32 to vector<2x16xf32>
    %867 = arith.addf %865, %866 : vector<2x16xf32>
    %cst_214 = arith.constant 5.000000e-01 : f32
    %868 = vector.broadcast %cst_214 : f32 to vector<2x16xf32>
    %869 = arith.mulf %868, %867 : vector<2x16xf32>
    %870 = vector.extract_strided_slice %861 {offsets = [0, 16], sizes = [2, 16], strides = [1, 1]} : vector<2x64xf32> to vector<2x16xf32>
    %cst_215 = arith.constant 5.000000e-01 : f32
    %871 = vector.broadcast %cst_215 : f32 to vector<2x16xf32>
    %872 = arith.mulf %871, %870 : vector<2x16xf32>
    %873 = math.tanh %872 : vector<2x16xf32>
    %cst_216 = arith.constant 1.000000e+00 : f32
    %874 = vector.broadcast %cst_216 : f32 to vector<2x16xf32>
    %875 = arith.addf %873, %874 : vector<2x16xf32>
    %cst_217 = arith.constant 5.000000e-01 : f32
    %876 = vector.broadcast %cst_217 : f32 to vector<2x16xf32>
    %877 = arith.mulf %876, %875 : vector<2x16xf32>
    %878 = vector.extract_strided_slice %861 {offsets = [0, 32], sizes = [2, 16], strides = [1, 1]} : vector<2x64xf32> to vector<2x16xf32>
    %879 = math.tanh %878 : vector<2x16xf32>
    %880 = vector.extract_strided_slice %861 {offsets = [0, 48], sizes = [2, 16], strides = [1, 1]} : vector<2x64xf32> to vector<2x16xf32>
    %cst_218 = arith.constant 5.000000e-01 : f32
    %881 = vector.broadcast %cst_218 : f32 to vector<2x16xf32>
    %882 = arith.mulf %881, %880 : vector<2x16xf32>
    %883 = math.tanh %882 : vector<2x16xf32>
    %cst_219 = arith.constant 1.000000e+00 : f32
    %884 = vector.broadcast %cst_219 : f32 to vector<2x16xf32>
    %885 = arith.addf %883, %884 : vector<2x16xf32>
    %cst_220 = arith.constant 5.000000e-01 : f32
    %886 = vector.broadcast %cst_220 : f32 to vector<2x16xf32>
    %887 = arith.mulf %886, %885 : vector<2x16xf32>
    %888 = arith.mulf %877, %836 : vector<2x16xf32>
    %889 = arith.mulf %869, %879 : vector<2x16xf32>
    %890 = arith.addf %888, %889 : vector<2x16xf32>
    %891 = math.tanh %890 : vector<2x16xf32>
    %892 = arith.mulf %887, %891 : vector<2x16xf32>
    %893 = tpu.concatenate %514, %568, %622, %676, %730, %784, %838, %892 in 1 : vector<2x16xf32>, vector<2x16xf32>, vector<2x16xf32>, vector<2x16xf32>, vector<2x16xf32>, vector<2x16xf32>, vector<2x16xf32>, vector<2x16xf32> -> vector<2x128xf32>
    %c0_221 = arith.constant 0 : index
    %c0_222 = arith.constant 0 : index
    %894 = vector.load %arg9[%c0_221, %c0_222] : memref<16x16xf32, #tpu.memory_space<vmem>>, vector<16x16xf32>
    %cst_223 = arith.constant dense<0.000000e+00> : vector<2x16xf32>
    %895 = tpu.matmul %514, %894, %cst_223 {dimension_numbers = #tpu.dot_dimension_numbers<[1], [0], [0], [1], [0, 0, 1, 1], [], []>} : vector<2x16xf32>, vector<16x16xf32>, vector<2x16xf32> -> vector<2x16xf32>
    %cst_224 = arith.constant dense<0.000000e+00> : vector<2x16xf32>
    %896 = tpu.matmul %568, %894, %cst_224 {dimension_numbers = #tpu.dot_dimension_numbers<[1], [0], [0], [1], [0, 0, 1, 1], [], []>} : vector<2x16xf32>, vector<16x16xf32>, vector<2x16xf32> -> vector<2x16xf32>
    %cst_225 = arith.constant dense<0.000000e+00> : vector<2x16xf32>
    %897 = tpu.matmul %622, %894, %cst_225 {dimension_numbers = #tpu.dot_dimension_numbers<[1], [0], [0], [1], [0, 0, 1, 1], [], []>} : vector<2x16xf32>, vector<16x16xf32>, vector<2x16xf32> -> vector<2x16xf32>
    %cst_226 = arith.constant dense<0.000000e+00> : vector<2x16xf32>
    %898 = tpu.matmul %676, %894, %cst_226 {dimension_numbers = #tpu.dot_dimension_numbers<[1], [0], [0], [1], [0, 0, 1, 1], [], []>} : vector<2x16xf32>, vector<16x16xf32>, vector<2x16xf32> -> vector<2x16xf32>
    %cst_227 = arith.constant dense<0.000000e+00> : vector<2x16xf32>
    %899 = tpu.matmul %730, %894, %cst_227 {dimension_numbers = #tpu.dot_dimension_numbers<[1], [0], [0], [1], [0, 0, 1, 1], [], []>} : vector<2x16xf32>, vector<16x16xf32>, vector<2x16xf32> -> vector<2x16xf32>
    %cst_228 = arith.constant dense<0.000000e+00> : vector<2x16xf32>
    %900 = tpu.matmul %784, %894, %cst_228 {dimension_numbers = #tpu.dot_dimension_numbers<[1], [0], [0], [1], [0, 0, 1, 1], [], []>} : vector<2x16xf32>, vector<16x16xf32>, vector<2x16xf32> -> vector<2x16xf32>
    %cst_229 = arith.constant dense<0.000000e+00> : vector<2x16xf32>
    %901 = tpu.matmul %838, %894, %cst_229 {dimension_numbers = #tpu.dot_dimension_numbers<[1], [0], [0], [1], [0, 0, 1, 1], [], []>} : vector<2x16xf32>, vector<16x16xf32>, vector<2x16xf32> -> vector<2x16xf32>
    %cst_230 = arith.constant dense<0.000000e+00> : vector<2x16xf32>
    %902 = tpu.matmul %892, %894, %cst_230 {dimension_numbers = #tpu.dot_dimension_numbers<[1], [0], [0], [1], [0, 0, 1, 1], [], []>} : vector<2x16xf32>, vector<16x16xf32>, vector<2x16xf32> -> vector<2x16xf32>
    %903 = tpu.concatenate %895, %896, %897, %898, %899, %900, %901, %902 in 1 : vector<2x16xf32>, vector<2x16xf32>, vector<2x16xf32>, vector<2x16xf32>, vector<2x16xf32>, vector<2x16xf32>, vector<2x16xf32>, vector<2x16xf32> -> vector<2x128xf32>
    %c0_231 = arith.constant 0 : index
    %c0_232 = arith.constant 0 : index
    %904 = vector.load %arg8[%c0_231, %c0_232] : memref<32x16xf32, #tpu.memory_space<vmem>>, vector<32x16xf32>
    %c0_233 = arith.constant 0 : index
    %c0_234 = arith.constant 0 : index
    %905 = vector.load %arg10[%c0_233, %c0_234] : memref<1x16xf32, #tpu.memory_space<vmem>>, vector<1x16xf32>
    %906 = vector.shape_cast %905 : vector<1x16xf32> to vector<1x16xf32>
    %907 = vector.broadcast %906 : vector<1x16xf32> to vector<2x16xf32>
    %c0_235 = arith.constant 0 : index
    %c0_236 = arith.constant 0 : index
    %908 = vector.load %arg11[%c0_235, %c0_236] : memref<1x128xf32, #tpu.memory_space<vmem>>, vector<1x128xf32>
    %909 = vector.shape_cast %908 : vector<1x128xf32> to vector<1x128xf32>
    %910 = vector.broadcast %909 : vector<1x128xf32> to vector<2x128xf32>
    %c0_237 = arith.constant 0 : index
    %c0_238 = arith.constant 0 : index
    %911 = vector.load %arg17[%c0_237, %c0_238] : memref<128x8xf32, #tpu.memory_space<vmem>>, vector<128x8xf32>
    %c0_239 = arith.constant 0 : index
    %c0_240 = arith.constant 0 : index
    %912 = vector.load %arg18[%c0_239, %c0_240] : memref<8x128xf32, #tpu.memory_space<vmem>>, vector<8x128xf32>
    %c0_241 = arith.constant 0 : index
    %c0_242 = arith.constant 0 : index
    %913 = vector.load %arg19[%c0_241, %c0_242] : memref<128x16xf32, #tpu.memory_space<vmem>>, vector<128x16xf32>
    %c0_243 = arith.constant 0 : index
    %c0_244 = arith.constant 0 : index
    %914 = vector.load %arg12[%c0_243, %c0_244] : memref<17x64xf32, #tpu.memory_space<vmem>>, vector<17x64xf32>
    %c0_245 = arith.constant 0 : index
    %c0_246 = arith.constant 0 : index
    %915 = vector.load %arg13[%c0_245, %c0_246] : memref<1x64xf32, #tpu.memory_space<vmem>>, vector<1x64xf32>
    %916 = vector.shape_cast %915 : vector<1x64xf32> to vector<1x64xf32>
    %917 = vector.broadcast %916 : vector<1x64xf32> to vector<2x64xf32>
    %c0_247 = arith.constant 0 : index
    %c0_248 = arith.constant 0 : index
    %918 = vector.load %arg14[%c0_247, %c0_248] : memref<1x16xf32, #tpu.memory_space<vmem>>, vector<1x16xf32>
    %919 = vector.shape_cast %918 : vector<1x16xf32> to vector<1x16xf32>
    %920 = vector.broadcast %919 : vector<1x16xf32> to vector<2x16xf32>
    %c0_249 = arith.constant 0 : index
    %921 = memref.load %arg26[%c0_249] : memref<1xf32, #tpu.memory_space<smem>>
    %c0_250 = arith.constant 0 : index
    %922 = memref.load %arg27[%c0_250] : memref<1xf32, #tpu.memory_space<smem>>
    %cst_251 = arith.constant 0.000000e+00 : f32
    %923 = vector.broadcast %cst_251 : f32 to vector<2x16xf32>
    %cst_252 = arith.constant 0.000000e+00 : f32
    %924 = vector.broadcast %cst_252 : f32 to vector<2x16xf32>
    %925 = tpu.concatenate %923, %924 in 1 : vector<2x16xf32>, vector<2x16xf32> -> vector<2x32xf32>
    %cst_253 = arith.constant dense<0.000000e+00> : vector<2x16xf32>
    %926 = tpu.matmul %925, %904, %cst_253 {dimension_numbers = #tpu.dot_dimension_numbers<[1], [0], [0], [1], [0, 0, 1, 1], [], []>} : vector<2x32xf32>, vector<32x16xf32>, vector<2x16xf32> -> vector<2x16xf32>
    %927 = arith.addf %926, %907 : vector<2x16xf32>
    %928 = tpu.concatenate %927, %927, %927, %927, %927, %927, %927, %927 in 1 : vector<2x16xf32>, vector<2x16xf32>, vector<2x16xf32>, vector<2x16xf32>, vector<2x16xf32>, vector<2x16xf32>, vector<2x16xf32>, vector<2x16xf32> -> vector<2x128xf32>
    %929 = arith.addf %928, %903 : vector<2x128xf32>
    %930 = math.tanh %929 : vector<2x128xf32>
    %931 = arith.mulf %930, %910 : vector<2x128xf32>
    %cst_254 = arith.constant dense<0.000000e+00> : vector<2x8xf32>
    %932 = tpu.matmul %931, %911, %cst_254 {dimension_numbers = #tpu.dot_dimension_numbers<[1], [0], [0], [1], [0, 0, 1, 1], [], []>} : vector<2x128xf32>, vector<128x8xf32>, vector<2x8xf32> -> vector<2x8xf32>
    %933 = vector.broadcast %921 : f32 to vector<2x8xf32>
    %934 = arith.addf %932, %933 : vector<2x8xf32>
    %cst_255 = arith.constant dense<0xFF800000> : vector<2xf32>
    %935 = vector.multi_reduction <maximumf>, %934, %cst_255 [1] : vector<2x8xf32> to vector<2xf32>
    %936 = vector.shape_cast %935 : vector<2xf32> to vector<2x1xf32>
    %937 = vector.broadcast %936 : vector<2x1xf32> to vector<2x8xf32>
    %938 = arith.subf %934, %937 : vector<2x8xf32>
    %939 = math.exp %938 : vector<2x8xf32>
    %cst_256 = arith.constant dense<0.000000e+00> : vector<2xf32>
    %940 = vector.multi_reduction <add>, %939, %cst_256 [1] : vector<2x8xf32> to vector<2xf32>
    %941 = vector.shape_cast %940 : vector<2xf32> to vector<2x1xf32>
    %942 = tpu.reciprocal %941 {approx = true} : vector<2x1xf32> -> vector<2x1xf32>
    %943 = vector.broadcast %942 : vector<2x1xf32> to vector<2x8xf32>
    %944 = arith.mulf %939, %943 : vector<2x8xf32>
    %cst_257 = arith.constant dense<0.000000e+00> : vector<2x128xf32>
    %945 = tpu.matmul %944, %912, %cst_257 {dimension_numbers = #tpu.dot_dimension_numbers<[1], [0], [0], [1], [0, 0, 1, 1], [], []>} : vector<2x8xf32>, vector<8x128xf32>, vector<2x128xf32> -> vector<2x128xf32>
    %946 = arith.mulf %945, %893 : vector<2x128xf32>
    %cst_258 = arith.constant dense<0.000000e+00> : vector<2x16xf32>
    %947 = tpu.matmul %946, %913, %cst_258 {dimension_numbers = #tpu.dot_dimension_numbers<[1], [0], [0], [1], [0, 0, 1, 1], [], []>} : vector<2x128xf32>, vector<128x16xf32>, vector<2x16xf32> -> vector<2x16xf32>
    %948 = arith.mulf %947, %920 : vector<2x16xf32>
    %cst_259 = arith.constant dense<0.000000e+00> : vector<2xf32>
    %949 = vector.multi_reduction <add>, %948, %cst_259 [1] : vector<2x16xf32> to vector<2xf32>
    %950 = vector.shape_cast %949 : vector<2xf32> to vector<2x1xf32>
    %951 = vector.broadcast %922 : f32 to vector<2x1xf32>
    %952 = arith.addf %950, %951 : vector<2x1xf32>
    %953 = tpu.concatenate %952, %923 in 1 : vector<2x1xf32>, vector<2x16xf32> -> vector<2x17xf32>
    %cst_260 = arith.constant dense<0.000000e+00> : vector<2x64xf32>
    %954 = tpu.matmul %953, %914, %cst_260 {dimension_numbers = #tpu.dot_dimension_numbers<[1], [0], [0], [1], [0, 0, 1, 1], [], []>} : vector<2x17xf32>, vector<17x64xf32>, vector<2x64xf32> -> vector<2x64xf32>
    %955 = arith.addf %954, %917 : vector<2x64xf32>
    %956 = vector.extract_strided_slice %955 {offsets = [0, 0], sizes = [2, 16], strides = [1, 1]} : vector<2x64xf32> to vector<2x16xf32>
    %cst_261 = arith.constant 5.000000e-01 : f32
    %957 = vector.broadcast %cst_261 : f32 to vector<2x16xf32>
    %958 = arith.mulf %957, %956 : vector<2x16xf32>
    %959 = math.tanh %958 : vector<2x16xf32>
    %cst_262 = arith.constant 1.000000e+00 : f32
    %960 = vector.broadcast %cst_262 : f32 to vector<2x16xf32>
    %961 = arith.addf %959, %960 : vector<2x16xf32>
    %cst_263 = arith.constant 5.000000e-01 : f32
    %962 = vector.broadcast %cst_263 : f32 to vector<2x16xf32>
    %963 = arith.mulf %962, %961 : vector<2x16xf32>
    %964 = vector.extract_strided_slice %955 {offsets = [0, 16], sizes = [2, 16], strides = [1, 1]} : vector<2x64xf32> to vector<2x16xf32>
    %cst_264 = arith.constant 5.000000e-01 : f32
    %965 = vector.broadcast %cst_264 : f32 to vector<2x16xf32>
    %966 = arith.mulf %965, %964 : vector<2x16xf32>
    %967 = math.tanh %966 : vector<2x16xf32>
    %cst_265 = arith.constant 1.000000e+00 : f32
    %968 = vector.broadcast %cst_265 : f32 to vector<2x16xf32>
    %969 = arith.addf %967, %968 : vector<2x16xf32>
    %cst_266 = arith.constant 5.000000e-01 : f32
    %970 = vector.broadcast %cst_266 : f32 to vector<2x16xf32>
    %971 = arith.mulf %970, %969 : vector<2x16xf32>
    %972 = vector.extract_strided_slice %955 {offsets = [0, 32], sizes = [2, 16], strides = [1, 1]} : vector<2x64xf32> to vector<2x16xf32>
    %973 = math.tanh %972 : vector<2x16xf32>
    %974 = vector.extract_strided_slice %955 {offsets = [0, 48], sizes = [2, 16], strides = [1, 1]} : vector<2x64xf32> to vector<2x16xf32>
    %cst_267 = arith.constant 5.000000e-01 : f32
    %975 = vector.broadcast %cst_267 : f32 to vector<2x16xf32>
    %976 = arith.mulf %975, %974 : vector<2x16xf32>
    %977 = math.tanh %976 : vector<2x16xf32>
    %cst_268 = arith.constant 1.000000e+00 : f32
    %978 = vector.broadcast %cst_268 : f32 to vector<2x16xf32>
    %979 = arith.addf %977, %978 : vector<2x16xf32>
    %cst_269 = arith.constant 5.000000e-01 : f32
    %980 = vector.broadcast %cst_269 : f32 to vector<2x16xf32>
    %981 = arith.mulf %980, %979 : vector<2x16xf32>
    %982 = arith.mulf %971, %924 : vector<2x16xf32>
    %983 = arith.mulf %963, %973 : vector<2x16xf32>
    %984 = arith.addf %982, %983 : vector<2x16xf32>
    %985 = math.tanh %984 : vector<2x16xf32>
    %986 = arith.mulf %981, %985 : vector<2x16xf32>
    %987 = tpu.concatenate %986, %984 in 1 : vector<2x16xf32>, vector<2x16xf32> -> vector<2x32xf32>
    %cst_270 = arith.constant dense<0.000000e+00> : vector<2x16xf32>
    %988 = tpu.matmul %987, %904, %cst_270 {dimension_numbers = #tpu.dot_dimension_numbers<[1], [0], [0], [1], [0, 0, 1, 1], [], []>} : vector<2x32xf32>, vector<32x16xf32>, vector<2x16xf32> -> vector<2x16xf32>
    %989 = arith.addf %988, %907 : vector<2x16xf32>
    %990 = tpu.concatenate %989, %989, %989, %989, %989, %989, %989, %989 in 1 : vector<2x16xf32>, vector<2x16xf32>, vector<2x16xf32>, vector<2x16xf32>, vector<2x16xf32>, vector<2x16xf32>, vector<2x16xf32>, vector<2x16xf32> -> vector<2x128xf32>
    %991 = arith.addf %990, %903 : vector<2x128xf32>
    %992 = math.tanh %991 : vector<2x128xf32>
    %993 = arith.mulf %992, %910 : vector<2x128xf32>
    %cst_271 = arith.constant dense<0.000000e+00> : vector<2x8xf32>
    %994 = tpu.matmul %993, %911, %cst_271 {dimension_numbers = #tpu.dot_dimension_numbers<[1], [0], [0], [1], [0, 0, 1, 1], [], []>} : vector<2x128xf32>, vector<128x8xf32>, vector<2x8xf32> -> vector<2x8xf32>
    %995 = vector.broadcast %921 : f32 to vector<2x8xf32>
    %996 = arith.addf %994, %995 : vector<2x8xf32>
    %cst_272 = arith.constant dense<0xFF800000> : vector<2xf32>
    %997 = vector.multi_reduction <maximumf>, %996, %cst_272 [1] : vector<2x8xf32> to vector<2xf32>
    %998 = vector.shape_cast %997 : vector<2xf32> to vector<2x1xf32>
    %999 = vector.broadcast %998 : vector<2x1xf32> to vector<2x8xf32>
    %1000 = arith.subf %996, %999 : vector<2x8xf32>
    %1001 = math.exp %1000 : vector<2x8xf32>
    %cst_273 = arith.constant dense<0.000000e+00> : vector<2xf32>
    %1002 = vector.multi_reduction <add>, %1001, %cst_273 [1] : vector<2x8xf32> to vector<2xf32>
    %1003 = vector.shape_cast %1002 : vector<2xf32> to vector<2x1xf32>
    %1004 = tpu.reciprocal %1003 {approx = true} : vector<2x1xf32> -> vector<2x1xf32>
    %1005 = vector.broadcast %1004 : vector<2x1xf32> to vector<2x8xf32>
    %1006 = arith.mulf %1001, %1005 : vector<2x8xf32>
    %cst_274 = arith.constant dense<0.000000e+00> : vector<2x128xf32>
    %1007 = tpu.matmul %1006, %912, %cst_274 {dimension_numbers = #tpu.dot_dimension_numbers<[1], [0], [0], [1], [0, 0, 1, 1], [], []>} : vector<2x8xf32>, vector<8x128xf32>, vector<2x128xf32> -> vector<2x128xf32>
    %1008 = arith.mulf %1007, %893 : vector<2x128xf32>
    %cst_275 = arith.constant dense<0.000000e+00> : vector<2x16xf32>
    %1009 = tpu.matmul %1008, %913, %cst_275 {dimension_numbers = #tpu.dot_dimension_numbers<[1], [0], [0], [1], [0, 0, 1, 1], [], []>} : vector<2x128xf32>, vector<128x16xf32>, vector<2x16xf32> -> vector<2x16xf32>
    %1010 = arith.mulf %1009, %920 : vector<2x16xf32>
    %cst_276 = arith.constant dense<0.000000e+00> : vector<2xf32>
    %1011 = vector.multi_reduction <add>, %1010, %cst_276 [1] : vector<2x16xf32> to vector<2xf32>
    %1012 = vector.shape_cast %1011 : vector<2xf32> to vector<2x1xf32>
    %1013 = vector.broadcast %922 : f32 to vector<2x1xf32>
    %1014 = arith.addf %1012, %1013 : vector<2x1xf32>
    %1015 = tpu.concatenate %1014, %986 in 1 : vector<2x1xf32>, vector<2x16xf32> -> vector<2x17xf32>
    %cst_277 = arith.constant dense<0.000000e+00> : vector<2x64xf32>
    %1016 = tpu.matmul %1015, %914, %cst_277 {dimension_numbers = #tpu.dot_dimension_numbers<[1], [0], [0], [1], [0, 0, 1, 1], [], []>} : vector<2x17xf32>, vector<17x64xf32>, vector<2x64xf32> -> vector<2x64xf32>
    %1017 = arith.addf %1016, %917 : vector<2x64xf32>
    %1018 = vector.extract_strided_slice %1017 {offsets = [0, 0], sizes = [2, 16], strides = [1, 1]} : vector<2x64xf32> to vector<2x16xf32>
    %cst_278 = arith.constant 5.000000e-01 : f32
    %1019 = vector.broadcast %cst_278 : f32 to vector<2x16xf32>
    %1020 = arith.mulf %1019, %1018 : vector<2x16xf32>
    %1021 = math.tanh %1020 : vector<2x16xf32>
    %cst_279 = arith.constant 1.000000e+00 : f32
    %1022 = vector.broadcast %cst_279 : f32 to vector<2x16xf32>
    %1023 = arith.addf %1021, %1022 : vector<2x16xf32>
    %cst_280 = arith.constant 5.000000e-01 : f32
    %1024 = vector.broadcast %cst_280 : f32 to vector<2x16xf32>
    %1025 = arith.mulf %1024, %1023 : vector<2x16xf32>
    %1026 = vector.extract_strided_slice %1017 {offsets = [0, 16], sizes = [2, 16], strides = [1, 1]} : vector<2x64xf32> to vector<2x16xf32>
    %cst_281 = arith.constant 5.000000e-01 : f32
    %1027 = vector.broadcast %cst_281 : f32 to vector<2x16xf32>
    %1028 = arith.mulf %1027, %1026 : vector<2x16xf32>
    %1029 = math.tanh %1028 : vector<2x16xf32>
    %cst_282 = arith.constant 1.000000e+00 : f32
    %1030 = vector.broadcast %cst_282 : f32 to vector<2x16xf32>
    %1031 = arith.addf %1029, %1030 : vector<2x16xf32>
    %cst_283 = arith.constant 5.000000e-01 : f32
    %1032 = vector.broadcast %cst_283 : f32 to vector<2x16xf32>
    %1033 = arith.mulf %1032, %1031 : vector<2x16xf32>
    %1034 = vector.extract_strided_slice %1017 {offsets = [0, 32], sizes = [2, 16], strides = [1, 1]} : vector<2x64xf32> to vector<2x16xf32>
    %1035 = math.tanh %1034 : vector<2x16xf32>
    %1036 = vector.extract_strided_slice %1017 {offsets = [0, 48], sizes = [2, 16], strides = [1, 1]} : vector<2x64xf32> to vector<2x16xf32>
    %cst_284 = arith.constant 5.000000e-01 : f32
    %1037 = vector.broadcast %cst_284 : f32 to vector<2x16xf32>
    %1038 = arith.mulf %1037, %1036 : vector<2x16xf32>
    %1039 = math.tanh %1038 : vector<2x16xf32>
    %cst_285 = arith.constant 1.000000e+00 : f32
    %1040 = vector.broadcast %cst_285 : f32 to vector<2x16xf32>
    %1041 = arith.addf %1039, %1040 : vector<2x16xf32>
    %cst_286 = arith.constant 5.000000e-01 : f32
    %1042 = vector.broadcast %cst_286 : f32 to vector<2x16xf32>
    %1043 = arith.mulf %1042, %1041 : vector<2x16xf32>
    %1044 = arith.mulf %1033, %984 : vector<2x16xf32>
    %1045 = arith.mulf %1025, %1035 : vector<2x16xf32>
    %1046 = arith.addf %1044, %1045 : vector<2x16xf32>
    %1047 = math.tanh %1046 : vector<2x16xf32>
    %1048 = arith.mulf %1043, %1047 : vector<2x16xf32>
    %1049 = tpu.concatenate %1048, %1046 in 1 : vector<2x16xf32>, vector<2x16xf32> -> vector<2x32xf32>
    %cst_287 = arith.constant dense<0.000000e+00> : vector<2x16xf32>
    %1050 = tpu.matmul %1049, %904, %cst_287 {dimension_numbers = #tpu.dot_dimension_numbers<[1], [0], [0], [1], [0, 0, 1, 1], [], []>} : vector<2x32xf32>, vector<32x16xf32>, vector<2x16xf32> -> vector<2x16xf32>
    %1051 = arith.addf %1050, %907 : vector<2x16xf32>
    %1052 = tpu.concatenate %1051, %1051, %1051, %1051, %1051, %1051, %1051, %1051 in 1 : vector<2x16xf32>, vector<2x16xf32>, vector<2x16xf32>, vector<2x16xf32>, vector<2x16xf32>, vector<2x16xf32>, vector<2x16xf32>, vector<2x16xf32> -> vector<2x128xf32>
    %1053 = arith.addf %1052, %903 : vector<2x128xf32>
    %1054 = math.tanh %1053 : vector<2x128xf32>
    %1055 = arith.mulf %1054, %910 : vector<2x128xf32>
    %cst_288 = arith.constant dense<0.000000e+00> : vector<2x8xf32>
    %1056 = tpu.matmul %1055, %911, %cst_288 {dimension_numbers = #tpu.dot_dimension_numbers<[1], [0], [0], [1], [0, 0, 1, 1], [], []>} : vector<2x128xf32>, vector<128x8xf32>, vector<2x8xf32> -> vector<2x8xf32>
    %1057 = vector.broadcast %921 : f32 to vector<2x8xf32>
    %1058 = arith.addf %1056, %1057 : vector<2x8xf32>
    %cst_289 = arith.constant dense<0xFF800000> : vector<2xf32>
    %1059 = vector.multi_reduction <maximumf>, %1058, %cst_289 [1] : vector<2x8xf32> to vector<2xf32>
    %1060 = vector.shape_cast %1059 : vector<2xf32> to vector<2x1xf32>
    %1061 = vector.broadcast %1060 : vector<2x1xf32> to vector<2x8xf32>
    %1062 = arith.subf %1058, %1061 : vector<2x8xf32>
    %1063 = math.exp %1062 : vector<2x8xf32>
    %cst_290 = arith.constant dense<0.000000e+00> : vector<2xf32>
    %1064 = vector.multi_reduction <add>, %1063, %cst_290 [1] : vector<2x8xf32> to vector<2xf32>
    %1065 = vector.shape_cast %1064 : vector<2xf32> to vector<2x1xf32>
    %1066 = tpu.reciprocal %1065 {approx = true} : vector<2x1xf32> -> vector<2x1xf32>
    %1067 = vector.broadcast %1066 : vector<2x1xf32> to vector<2x8xf32>
    %1068 = arith.mulf %1063, %1067 : vector<2x8xf32>
    %cst_291 = arith.constant dense<0.000000e+00> : vector<2x128xf32>
    %1069 = tpu.matmul %1068, %912, %cst_291 {dimension_numbers = #tpu.dot_dimension_numbers<[1], [0], [0], [1], [0, 0, 1, 1], [], []>} : vector<2x8xf32>, vector<8x128xf32>, vector<2x128xf32> -> vector<2x128xf32>
    %1070 = arith.mulf %1069, %893 : vector<2x128xf32>
    %cst_292 = arith.constant dense<0.000000e+00> : vector<2x16xf32>
    %1071 = tpu.matmul %1070, %913, %cst_292 {dimension_numbers = #tpu.dot_dimension_numbers<[1], [0], [0], [1], [0, 0, 1, 1], [], []>} : vector<2x128xf32>, vector<128x16xf32>, vector<2x16xf32> -> vector<2x16xf32>
    %1072 = arith.mulf %1071, %920 : vector<2x16xf32>
    %cst_293 = arith.constant dense<0.000000e+00> : vector<2xf32>
    %1073 = vector.multi_reduction <add>, %1072, %cst_293 [1] : vector<2x16xf32> to vector<2xf32>
    %1074 = vector.shape_cast %1073 : vector<2xf32> to vector<2x1xf32>
    %1075 = vector.broadcast %922 : f32 to vector<2x1xf32>
    %1076 = arith.addf %1074, %1075 : vector<2x1xf32>
    %1077 = tpu.concatenate %1076, %1048 in 1 : vector<2x1xf32>, vector<2x16xf32> -> vector<2x17xf32>
    %cst_294 = arith.constant dense<0.000000e+00> : vector<2x64xf32>
    %1078 = tpu.matmul %1077, %914, %cst_294 {dimension_numbers = #tpu.dot_dimension_numbers<[1], [0], [0], [1], [0, 0, 1, 1], [], []>} : vector<2x17xf32>, vector<17x64xf32>, vector<2x64xf32> -> vector<2x64xf32>
    %1079 = arith.addf %1078, %917 : vector<2x64xf32>
    %1080 = vector.extract_strided_slice %1079 {offsets = [0, 0], sizes = [2, 16], strides = [1, 1]} : vector<2x64xf32> to vector<2x16xf32>
    %cst_295 = arith.constant 5.000000e-01 : f32
    %1081 = vector.broadcast %cst_295 : f32 to vector<2x16xf32>
    %1082 = arith.mulf %1081, %1080 : vector<2x16xf32>
    %1083 = math.tanh %1082 : vector<2x16xf32>
    %cst_296 = arith.constant 1.000000e+00 : f32
    %1084 = vector.broadcast %cst_296 : f32 to vector<2x16xf32>
    %1085 = arith.addf %1083, %1084 : vector<2x16xf32>
    %cst_297 = arith.constant 5.000000e-01 : f32
    %1086 = vector.broadcast %cst_297 : f32 to vector<2x16xf32>
    %1087 = arith.mulf %1086, %1085 : vector<2x16xf32>
    %1088 = vector.extract_strided_slice %1079 {offsets = [0, 16], sizes = [2, 16], strides = [1, 1]} : vector<2x64xf32> to vector<2x16xf32>
    %cst_298 = arith.constant 5.000000e-01 : f32
    %1089 = vector.broadcast %cst_298 : f32 to vector<2x16xf32>
    %1090 = arith.mulf %1089, %1088 : vector<2x16xf32>
    %1091 = math.tanh %1090 : vector<2x16xf32>
    %cst_299 = arith.constant 1.000000e+00 : f32
    %1092 = vector.broadcast %cst_299 : f32 to vector<2x16xf32>
    %1093 = arith.addf %1091, %1092 : vector<2x16xf32>
    %cst_300 = arith.constant 5.000000e-01 : f32
    %1094 = vector.broadcast %cst_300 : f32 to vector<2x16xf32>
    %1095 = arith.mulf %1094, %1093 : vector<2x16xf32>
    %1096 = vector.extract_strided_slice %1079 {offsets = [0, 32], sizes = [2, 16], strides = [1, 1]} : vector<2x64xf32> to vector<2x16xf32>
    %1097 = math.tanh %1096 : vector<2x16xf32>
    %1098 = vector.extract_strided_slice %1079 {offsets = [0, 48], sizes = [2, 16], strides = [1, 1]} : vector<2x64xf32> to vector<2x16xf32>
    %cst_301 = arith.constant 5.000000e-01 : f32
    %1099 = vector.broadcast %cst_301 : f32 to vector<2x16xf32>
    %1100 = arith.mulf %1099, %1098 : vector<2x16xf32>
    %1101 = math.tanh %1100 : vector<2x16xf32>
    %cst_302 = arith.constant 1.000000e+00 : f32
    %1102 = vector.broadcast %cst_302 : f32 to vector<2x16xf32>
    %1103 = arith.addf %1101, %1102 : vector<2x16xf32>
    %cst_303 = arith.constant 5.000000e-01 : f32
    %1104 = vector.broadcast %cst_303 : f32 to vector<2x16xf32>
    %1105 = arith.mulf %1104, %1103 : vector<2x16xf32>
    %1106 = arith.mulf %1095, %1046 : vector<2x16xf32>
    %1107 = arith.mulf %1087, %1097 : vector<2x16xf32>
    %1108 = arith.addf %1106, %1107 : vector<2x16xf32>
    %1109 = math.tanh %1108 : vector<2x16xf32>
    %1110 = arith.mulf %1105, %1109 : vector<2x16xf32>
    %1111 = tpu.concatenate %1110, %1108 in 1 : vector<2x16xf32>, vector<2x16xf32> -> vector<2x32xf32>
    %cst_304 = arith.constant dense<0.000000e+00> : vector<2x16xf32>
    %1112 = tpu.matmul %1111, %904, %cst_304 {dimension_numbers = #tpu.dot_dimension_numbers<[1], [0], [0], [1], [0, 0, 1, 1], [], []>} : vector<2x32xf32>, vector<32x16xf32>, vector<2x16xf32> -> vector<2x16xf32>
    %1113 = arith.addf %1112, %907 : vector<2x16xf32>
    %1114 = tpu.concatenate %1113, %1113, %1113, %1113, %1113, %1113, %1113, %1113 in 1 : vector<2x16xf32>, vector<2x16xf32>, vector<2x16xf32>, vector<2x16xf32>, vector<2x16xf32>, vector<2x16xf32>, vector<2x16xf32>, vector<2x16xf32> -> vector<2x128xf32>
    %1115 = arith.addf %1114, %903 : vector<2x128xf32>
    %1116 = math.tanh %1115 : vector<2x128xf32>
    %1117 = arith.mulf %1116, %910 : vector<2x128xf32>
    %cst_305 = arith.constant dense<0.000000e+00> : vector<2x8xf32>
    %1118 = tpu.matmul %1117, %911, %cst_305 {dimension_numbers = #tpu.dot_dimension_numbers<[1], [0], [0], [1], [0, 0, 1, 1], [], []>} : vector<2x128xf32>, vector<128x8xf32>, vector<2x8xf32> -> vector<2x8xf32>
    %1119 = vector.broadcast %921 : f32 to vector<2x8xf32>
    %1120 = arith.addf %1118, %1119 : vector<2x8xf32>
    %cst_306 = arith.constant dense<0xFF800000> : vector<2xf32>
    %1121 = vector.multi_reduction <maximumf>, %1120, %cst_306 [1] : vector<2x8xf32> to vector<2xf32>
    %1122 = vector.shape_cast %1121 : vector<2xf32> to vector<2x1xf32>
    %1123 = vector.broadcast %1122 : vector<2x1xf32> to vector<2x8xf32>
    %1124 = arith.subf %1120, %1123 : vector<2x8xf32>
    %1125 = math.exp %1124 : vector<2x8xf32>
    %cst_307 = arith.constant dense<0.000000e+00> : vector<2xf32>
    %1126 = vector.multi_reduction <add>, %1125, %cst_307 [1] : vector<2x8xf32> to vector<2xf32>
    %1127 = vector.shape_cast %1126 : vector<2xf32> to vector<2x1xf32>
    %1128 = tpu.reciprocal %1127 {approx = true} : vector<2x1xf32> -> vector<2x1xf32>
    %1129 = vector.broadcast %1128 : vector<2x1xf32> to vector<2x8xf32>
    %1130 = arith.mulf %1125, %1129 : vector<2x8xf32>
    %cst_308 = arith.constant dense<0.000000e+00> : vector<2x128xf32>
    %1131 = tpu.matmul %1130, %912, %cst_308 {dimension_numbers = #tpu.dot_dimension_numbers<[1], [0], [0], [1], [0, 0, 1, 1], [], []>} : vector<2x8xf32>, vector<8x128xf32>, vector<2x128xf32> -> vector<2x128xf32>
    %1132 = arith.mulf %1131, %893 : vector<2x128xf32>
    %cst_309 = arith.constant dense<0.000000e+00> : vector<2x16xf32>
    %1133 = tpu.matmul %1132, %913, %cst_309 {dimension_numbers = #tpu.dot_dimension_numbers<[1], [0], [0], [1], [0, 0, 1, 1], [], []>} : vector<2x128xf32>, vector<128x16xf32>, vector<2x16xf32> -> vector<2x16xf32>
    %1134 = arith.mulf %1133, %920 : vector<2x16xf32>
    %cst_310 = arith.constant dense<0.000000e+00> : vector<2xf32>
    %1135 = vector.multi_reduction <add>, %1134, %cst_310 [1] : vector<2x16xf32> to vector<2xf32>
    %1136 = vector.shape_cast %1135 : vector<2xf32> to vector<2x1xf32>
    %1137 = vector.broadcast %922 : f32 to vector<2x1xf32>
    %1138 = arith.addf %1136, %1137 : vector<2x1xf32>
    %1139 = tpu.concatenate %1138, %1110 in 1 : vector<2x1xf32>, vector<2x16xf32> -> vector<2x17xf32>
    %cst_311 = arith.constant dense<0.000000e+00> : vector<2x64xf32>
    %1140 = tpu.matmul %1139, %914, %cst_311 {dimension_numbers = #tpu.dot_dimension_numbers<[1], [0], [0], [1], [0, 0, 1, 1], [], []>} : vector<2x17xf32>, vector<17x64xf32>, vector<2x64xf32> -> vector<2x64xf32>
    %1141 = arith.addf %1140, %917 : vector<2x64xf32>
    %1142 = vector.extract_strided_slice %1141 {offsets = [0, 0], sizes = [2, 16], strides = [1, 1]} : vector<2x64xf32> to vector<2x16xf32>
    %cst_312 = arith.constant 5.000000e-01 : f32
    %1143 = vector.broadcast %cst_312 : f32 to vector<2x16xf32>
    %1144 = arith.mulf %1143, %1142 : vector<2x16xf32>
    %1145 = math.tanh %1144 : vector<2x16xf32>
    %cst_313 = arith.constant 1.000000e+00 : f32
    %1146 = vector.broadcast %cst_313 : f32 to vector<2x16xf32>
    %1147 = arith.addf %1145, %1146 : vector<2x16xf32>
    %cst_314 = arith.constant 5.000000e-01 : f32
    %1148 = vector.broadcast %cst_314 : f32 to vector<2x16xf32>
    %1149 = arith.mulf %1148, %1147 : vector<2x16xf32>
    %1150 = vector.extract_strided_slice %1141 {offsets = [0, 16], sizes = [2, 16], strides = [1, 1]} : vector<2x64xf32> to vector<2x16xf32>
    %cst_315 = arith.constant 5.000000e-01 : f32
    %1151 = vector.broadcast %cst_315 : f32 to vector<2x16xf32>
    %1152 = arith.mulf %1151, %1150 : vector<2x16xf32>
    %1153 = math.tanh %1152 : vector<2x16xf32>
    %cst_316 = arith.constant 1.000000e+00 : f32
    %1154 = vector.broadcast %cst_316 : f32 to vector<2x16xf32>
    %1155 = arith.addf %1153, %1154 : vector<2x16xf32>
    %cst_317 = arith.constant 5.000000e-01 : f32
    %1156 = vector.broadcast %cst_317 : f32 to vector<2x16xf32>
    %1157 = arith.mulf %1156, %1155 : vector<2x16xf32>
    %1158 = vector.extract_strided_slice %1141 {offsets = [0, 32], sizes = [2, 16], strides = [1, 1]} : vector<2x64xf32> to vector<2x16xf32>
    %1159 = math.tanh %1158 : vector<2x16xf32>
    %1160 = vector.extract_strided_slice %1141 {offsets = [0, 48], sizes = [2, 16], strides = [1, 1]} : vector<2x64xf32> to vector<2x16xf32>
    %cst_318 = arith.constant 5.000000e-01 : f32
    %1161 = vector.broadcast %cst_318 : f32 to vector<2x16xf32>
    %1162 = arith.mulf %1161, %1160 : vector<2x16xf32>
    %1163 = math.tanh %1162 : vector<2x16xf32>
    %cst_319 = arith.constant 1.000000e+00 : f32
    %1164 = vector.broadcast %cst_319 : f32 to vector<2x16xf32>
    %1165 = arith.addf %1163, %1164 : vector<2x16xf32>
    %cst_320 = arith.constant 5.000000e-01 : f32
    %1166 = vector.broadcast %cst_320 : f32 to vector<2x16xf32>
    %1167 = arith.mulf %1166, %1165 : vector<2x16xf32>
    %1168 = arith.mulf %1157, %1108 : vector<2x16xf32>
    %1169 = arith.mulf %1149, %1159 : vector<2x16xf32>
    %1170 = arith.addf %1168, %1169 : vector<2x16xf32>
    %1171 = math.tanh %1170 : vector<2x16xf32>
    %1172 = arith.mulf %1167, %1171 : vector<2x16xf32>
    %1173 = tpu.concatenate %1172, %1170 in 1 : vector<2x16xf32>, vector<2x16xf32> -> vector<2x32xf32>
    %cst_321 = arith.constant dense<0.000000e+00> : vector<2x16xf32>
    %1174 = tpu.matmul %1173, %904, %cst_321 {dimension_numbers = #tpu.dot_dimension_numbers<[1], [0], [0], [1], [0, 0, 1, 1], [], []>} : vector<2x32xf32>, vector<32x16xf32>, vector<2x16xf32> -> vector<2x16xf32>
    %1175 = arith.addf %1174, %907 : vector<2x16xf32>
    %1176 = tpu.concatenate %1175, %1175, %1175, %1175, %1175, %1175, %1175, %1175 in 1 : vector<2x16xf32>, vector<2x16xf32>, vector<2x16xf32>, vector<2x16xf32>, vector<2x16xf32>, vector<2x16xf32>, vector<2x16xf32>, vector<2x16xf32> -> vector<2x128xf32>
    %1177 = arith.addf %1176, %903 : vector<2x128xf32>
    %1178 = math.tanh %1177 : vector<2x128xf32>
    %1179 = arith.mulf %1178, %910 : vector<2x128xf32>
    %cst_322 = arith.constant dense<0.000000e+00> : vector<2x8xf32>
    %1180 = tpu.matmul %1179, %911, %cst_322 {dimension_numbers = #tpu.dot_dimension_numbers<[1], [0], [0], [1], [0, 0, 1, 1], [], []>} : vector<2x128xf32>, vector<128x8xf32>, vector<2x8xf32> -> vector<2x8xf32>
    %1181 = vector.broadcast %921 : f32 to vector<2x8xf32>
    %1182 = arith.addf %1180, %1181 : vector<2x8xf32>
    %cst_323 = arith.constant dense<0xFF800000> : vector<2xf32>
    %1183 = vector.multi_reduction <maximumf>, %1182, %cst_323 [1] : vector<2x8xf32> to vector<2xf32>
    %1184 = vector.shape_cast %1183 : vector<2xf32> to vector<2x1xf32>
    %1185 = vector.broadcast %1184 : vector<2x1xf32> to vector<2x8xf32>
    %1186 = arith.subf %1182, %1185 : vector<2x8xf32>
    %1187 = math.exp %1186 : vector<2x8xf32>
    %cst_324 = arith.constant dense<0.000000e+00> : vector<2xf32>
    %1188 = vector.multi_reduction <add>, %1187, %cst_324 [1] : vector<2x8xf32> to vector<2xf32>
    %1189 = vector.shape_cast %1188 : vector<2xf32> to vector<2x1xf32>
    %1190 = tpu.reciprocal %1189 {approx = true} : vector<2x1xf32> -> vector<2x1xf32>
    %1191 = vector.broadcast %1190 : vector<2x1xf32> to vector<2x8xf32>
    %1192 = arith.mulf %1187, %1191 : vector<2x8xf32>
    %cst_325 = arith.constant dense<0.000000e+00> : vector<2x128xf32>
    %1193 = tpu.matmul %1192, %912, %cst_325 {dimension_numbers = #tpu.dot_dimension_numbers<[1], [0], [0], [1], [0, 0, 1, 1], [], []>} : vector<2x8xf32>, vector<8x128xf32>, vector<2x128xf32> -> vector<2x128xf32>
    %1194 = arith.mulf %1193, %893 : vector<2x128xf32>
    %cst_326 = arith.constant dense<0.000000e+00> : vector<2x16xf32>
    %1195 = tpu.matmul %1194, %913, %cst_326 {dimension_numbers = #tpu.dot_dimension_numbers<[1], [0], [0], [1], [0, 0, 1, 1], [], []>} : vector<2x128xf32>, vector<128x16xf32>, vector<2x16xf32> -> vector<2x16xf32>
    %1196 = arith.mulf %1195, %920 : vector<2x16xf32>
    %cst_327 = arith.constant dense<0.000000e+00> : vector<2xf32>
    %1197 = vector.multi_reduction <add>, %1196, %cst_327 [1] : vector<2x16xf32> to vector<2xf32>
    %1198 = vector.shape_cast %1197 : vector<2xf32> to vector<2x1xf32>
    %1199 = vector.broadcast %922 : f32 to vector<2x1xf32>
    %1200 = arith.addf %1198, %1199 : vector<2x1xf32>
    %1201 = tpu.concatenate %1200, %1172 in 1 : vector<2x1xf32>, vector<2x16xf32> -> vector<2x17xf32>
    %cst_328 = arith.constant dense<0.000000e+00> : vector<2x64xf32>
    %1202 = tpu.matmul %1201, %914, %cst_328 {dimension_numbers = #tpu.dot_dimension_numbers<[1], [0], [0], [1], [0, 0, 1, 1], [], []>} : vector<2x17xf32>, vector<17x64xf32>, vector<2x64xf32> -> vector<2x64xf32>
    %1203 = arith.addf %1202, %917 : vector<2x64xf32>
    %1204 = vector.extract_strided_slice %1203 {offsets = [0, 0], sizes = [2, 16], strides = [1, 1]} : vector<2x64xf32> to vector<2x16xf32>
    %cst_329 = arith.constant 5.000000e-01 : f32
    %1205 = vector.broadcast %cst_329 : f32 to vector<2x16xf32>
    %1206 = arith.mulf %1205, %1204 : vector<2x16xf32>
    %1207 = math.tanh %1206 : vector<2x16xf32>
    %cst_330 = arith.constant 1.000000e+00 : f32
    %1208 = vector.broadcast %cst_330 : f32 to vector<2x16xf32>
    %1209 = arith.addf %1207, %1208 : vector<2x16xf32>
    %cst_331 = arith.constant 5.000000e-01 : f32
    %1210 = vector.broadcast %cst_331 : f32 to vector<2x16xf32>
    %1211 = arith.mulf %1210, %1209 : vector<2x16xf32>
    %1212 = vector.extract_strided_slice %1203 {offsets = [0, 16], sizes = [2, 16], strides = [1, 1]} : vector<2x64xf32> to vector<2x16xf32>
    %cst_332 = arith.constant 5.000000e-01 : f32
    %1213 = vector.broadcast %cst_332 : f32 to vector<2x16xf32>
    %1214 = arith.mulf %1213, %1212 : vector<2x16xf32>
    %1215 = math.tanh %1214 : vector<2x16xf32>
    %cst_333 = arith.constant 1.000000e+00 : f32
    %1216 = vector.broadcast %cst_333 : f32 to vector<2x16xf32>
    %1217 = arith.addf %1215, %1216 : vector<2x16xf32>
    %cst_334 = arith.constant 5.000000e-01 : f32
    %1218 = vector.broadcast %cst_334 : f32 to vector<2x16xf32>
    %1219 = arith.mulf %1218, %1217 : vector<2x16xf32>
    %1220 = vector.extract_strided_slice %1203 {offsets = [0, 32], sizes = [2, 16], strides = [1, 1]} : vector<2x64xf32> to vector<2x16xf32>
    %1221 = math.tanh %1220 : vector<2x16xf32>
    %1222 = vector.extract_strided_slice %1203 {offsets = [0, 48], sizes = [2, 16], strides = [1, 1]} : vector<2x64xf32> to vector<2x16xf32>
    %cst_335 = arith.constant 5.000000e-01 : f32
    %1223 = vector.broadcast %cst_335 : f32 to vector<2x16xf32>
    %1224 = arith.mulf %1223, %1222 : vector<2x16xf32>
    %1225 = math.tanh %1224 : vector<2x16xf32>
    %cst_336 = arith.constant 1.000000e+00 : f32
    %1226 = vector.broadcast %cst_336 : f32 to vector<2x16xf32>
    %1227 = arith.addf %1225, %1226 : vector<2x16xf32>
    %cst_337 = arith.constant 5.000000e-01 : f32
    %1228 = vector.broadcast %cst_337 : f32 to vector<2x16xf32>
    %1229 = arith.mulf %1228, %1227 : vector<2x16xf32>
    %1230 = arith.mulf %1219, %1170 : vector<2x16xf32>
    %1231 = arith.mulf %1211, %1221 : vector<2x16xf32>
    %1232 = arith.addf %1230, %1231 : vector<2x16xf32>
    %1233 = math.tanh %1232 : vector<2x16xf32>
    %1234 = arith.mulf %1229, %1233 : vector<2x16xf32>
    %1235 = tpu.concatenate %1234, %1232 in 1 : vector<2x16xf32>, vector<2x16xf32> -> vector<2x32xf32>
    %cst_338 = arith.constant dense<0.000000e+00> : vector<2x16xf32>
    %1236 = tpu.matmul %1235, %904, %cst_338 {dimension_numbers = #tpu.dot_dimension_numbers<[1], [0], [0], [1], [0, 0, 1, 1], [], []>} : vector<2x32xf32>, vector<32x16xf32>, vector<2x16xf32> -> vector<2x16xf32>
    %1237 = arith.addf %1236, %907 : vector<2x16xf32>
    %1238 = tpu.concatenate %1237, %1237, %1237, %1237, %1237, %1237, %1237, %1237 in 1 : vector<2x16xf32>, vector<2x16xf32>, vector<2x16xf32>, vector<2x16xf32>, vector<2x16xf32>, vector<2x16xf32>, vector<2x16xf32>, vector<2x16xf32> -> vector<2x128xf32>
    %1239 = arith.addf %1238, %903 : vector<2x128xf32>
    %1240 = math.tanh %1239 : vector<2x128xf32>
    %1241 = arith.mulf %1240, %910 : vector<2x128xf32>
    %cst_339 = arith.constant dense<0.000000e+00> : vector<2x8xf32>
    %1242 = tpu.matmul %1241, %911, %cst_339 {dimension_numbers = #tpu.dot_dimension_numbers<[1], [0], [0], [1], [0, 0, 1, 1], [], []>} : vector<2x128xf32>, vector<128x8xf32>, vector<2x8xf32> -> vector<2x8xf32>
    %1243 = vector.broadcast %921 : f32 to vector<2x8xf32>
    %1244 = arith.addf %1242, %1243 : vector<2x8xf32>
    %cst_340 = arith.constant dense<0xFF800000> : vector<2xf32>
    %1245 = vector.multi_reduction <maximumf>, %1244, %cst_340 [1] : vector<2x8xf32> to vector<2xf32>
    %1246 = vector.shape_cast %1245 : vector<2xf32> to vector<2x1xf32>
    %1247 = vector.broadcast %1246 : vector<2x1xf32> to vector<2x8xf32>
    %1248 = arith.subf %1244, %1247 : vector<2x8xf32>
    %1249 = math.exp %1248 : vector<2x8xf32>
    %cst_341 = arith.constant dense<0.000000e+00> : vector<2xf32>
    %1250 = vector.multi_reduction <add>, %1249, %cst_341 [1] : vector<2x8xf32> to vector<2xf32>
    %1251 = vector.shape_cast %1250 : vector<2xf32> to vector<2x1xf32>
    %1252 = tpu.reciprocal %1251 {approx = true} : vector<2x1xf32> -> vector<2x1xf32>
    %1253 = vector.broadcast %1252 : vector<2x1xf32> to vector<2x8xf32>
    %1254 = arith.mulf %1249, %1253 : vector<2x8xf32>
    %cst_342 = arith.constant dense<0.000000e+00> : vector<2x128xf32>
    %1255 = tpu.matmul %1254, %912, %cst_342 {dimension_numbers = #tpu.dot_dimension_numbers<[1], [0], [0], [1], [0, 0, 1, 1], [], []>} : vector<2x8xf32>, vector<8x128xf32>, vector<2x128xf32> -> vector<2x128xf32>
    %1256 = arith.mulf %1255, %893 : vector<2x128xf32>
    %cst_343 = arith.constant dense<0.000000e+00> : vector<2x16xf32>
    %1257 = tpu.matmul %1256, %913, %cst_343 {dimension_numbers = #tpu.dot_dimension_numbers<[1], [0], [0], [1], [0, 0, 1, 1], [], []>} : vector<2x128xf32>, vector<128x16xf32>, vector<2x16xf32> -> vector<2x16xf32>
    %1258 = arith.mulf %1257, %920 : vector<2x16xf32>
    %cst_344 = arith.constant dense<0.000000e+00> : vector<2xf32>
    %1259 = vector.multi_reduction <add>, %1258, %cst_344 [1] : vector<2x16xf32> to vector<2xf32>
    %1260 = vector.shape_cast %1259 : vector<2xf32> to vector<2x1xf32>
    %1261 = vector.broadcast %922 : f32 to vector<2x1xf32>
    %1262 = arith.addf %1260, %1261 : vector<2x1xf32>
    %1263 = tpu.concatenate %1262, %1234 in 1 : vector<2x1xf32>, vector<2x16xf32> -> vector<2x17xf32>
    %cst_345 = arith.constant dense<0.000000e+00> : vector<2x64xf32>
    %1264 = tpu.matmul %1263, %914, %cst_345 {dimension_numbers = #tpu.dot_dimension_numbers<[1], [0], [0], [1], [0, 0, 1, 1], [], []>} : vector<2x17xf32>, vector<17x64xf32>, vector<2x64xf32> -> vector<2x64xf32>
    %1265 = arith.addf %1264, %917 : vector<2x64xf32>
    %1266 = vector.extract_strided_slice %1265 {offsets = [0, 0], sizes = [2, 16], strides = [1, 1]} : vector<2x64xf32> to vector<2x16xf32>
    %cst_346 = arith.constant 5.000000e-01 : f32
    %1267 = vector.broadcast %cst_346 : f32 to vector<2x16xf32>
    %1268 = arith.mulf %1267, %1266 : vector<2x16xf32>
    %1269 = math.tanh %1268 : vector<2x16xf32>
    %cst_347 = arith.constant 1.000000e+00 : f32
    %1270 = vector.broadcast %cst_347 : f32 to vector<2x16xf32>
    %1271 = arith.addf %1269, %1270 : vector<2x16xf32>
    %cst_348 = arith.constant 5.000000e-01 : f32
    %1272 = vector.broadcast %cst_348 : f32 to vector<2x16xf32>
    %1273 = arith.mulf %1272, %1271 : vector<2x16xf32>
    %1274 = vector.extract_strided_slice %1265 {offsets = [0, 16], sizes = [2, 16], strides = [1, 1]} : vector<2x64xf32> to vector<2x16xf32>
    %cst_349 = arith.constant 5.000000e-01 : f32
    %1275 = vector.broadcast %cst_349 : f32 to vector<2x16xf32>
    %1276 = arith.mulf %1275, %1274 : vector<2x16xf32>
    %1277 = math.tanh %1276 : vector<2x16xf32>
    %cst_350 = arith.constant 1.000000e+00 : f32
    %1278 = vector.broadcast %cst_350 : f32 to vector<2x16xf32>
    %1279 = arith.addf %1277, %1278 : vector<2x16xf32>
    %cst_351 = arith.constant 5.000000e-01 : f32
    %1280 = vector.broadcast %cst_351 : f32 to vector<2x16xf32>
    %1281 = arith.mulf %1280, %1279 : vector<2x16xf32>
    %1282 = vector.extract_strided_slice %1265 {offsets = [0, 32], sizes = [2, 16], strides = [1, 1]} : vector<2x64xf32> to vector<2x16xf32>
    %1283 = math.tanh %1282 : vector<2x16xf32>
    %1284 = vector.extract_strided_slice %1265 {offsets = [0, 48], sizes = [2, 16], strides = [1, 1]} : vector<2x64xf32> to vector<2x16xf32>
    %cst_352 = arith.constant 5.000000e-01 : f32
    %1285 = vector.broadcast %cst_352 : f32 to vector<2x16xf32>
    %1286 = arith.mulf %1285, %1284 : vector<2x16xf32>
    %1287 = math.tanh %1286 : vector<2x16xf32>
    %cst_353 = arith.constant 1.000000e+00 : f32
    %1288 = vector.broadcast %cst_353 : f32 to vector<2x16xf32>
    %1289 = arith.addf %1287, %1288 : vector<2x16xf32>
    %cst_354 = arith.constant 5.000000e-01 : f32
    %1290 = vector.broadcast %cst_354 : f32 to vector<2x16xf32>
    %1291 = arith.mulf %1290, %1289 : vector<2x16xf32>
    %1292 = arith.mulf %1281, %1232 : vector<2x16xf32>
    %1293 = arith.mulf %1273, %1283 : vector<2x16xf32>
    %1294 = arith.addf %1292, %1293 : vector<2x16xf32>
    %1295 = math.tanh %1294 : vector<2x16xf32>
    %1296 = arith.mulf %1291, %1295 : vector<2x16xf32>
    %1297 = tpu.concatenate %1296, %1294 in 1 : vector<2x16xf32>, vector<2x16xf32> -> vector<2x32xf32>
    %cst_355 = arith.constant dense<0.000000e+00> : vector<2x16xf32>
    %1298 = tpu.matmul %1297, %904, %cst_355 {dimension_numbers = #tpu.dot_dimension_numbers<[1], [0], [0], [1], [0, 0, 1, 1], [], []>} : vector<2x32xf32>, vector<32x16xf32>, vector<2x16xf32> -> vector<2x16xf32>
    %1299 = arith.addf %1298, %907 : vector<2x16xf32>
    %1300 = tpu.concatenate %1299, %1299, %1299, %1299, %1299, %1299, %1299, %1299 in 1 : vector<2x16xf32>, vector<2x16xf32>, vector<2x16xf32>, vector<2x16xf32>, vector<2x16xf32>, vector<2x16xf32>, vector<2x16xf32>, vector<2x16xf32> -> vector<2x128xf32>
    %1301 = arith.addf %1300, %903 : vector<2x128xf32>
    %1302 = math.tanh %1301 : vector<2x128xf32>
    %1303 = arith.mulf %1302, %910 : vector<2x128xf32>
    %cst_356 = arith.constant dense<0.000000e+00> : vector<2x8xf32>
    %1304 = tpu.matmul %1303, %911, %cst_356 {dimension_numbers = #tpu.dot_dimension_numbers<[1], [0], [0], [1], [0, 0, 1, 1], [], []>} : vector<2x128xf32>, vector<128x8xf32>, vector<2x8xf32> -> vector<2x8xf32>
    %1305 = vector.broadcast %921 : f32 to vector<2x8xf32>
    %1306 = arith.addf %1304, %1305 : vector<2x8xf32>
    %cst_357 = arith.constant dense<0xFF800000> : vector<2xf32>
    %1307 = vector.multi_reduction <maximumf>, %1306, %cst_357 [1] : vector<2x8xf32> to vector<2xf32>
    %1308 = vector.shape_cast %1307 : vector<2xf32> to vector<2x1xf32>
    %1309 = vector.broadcast %1308 : vector<2x1xf32> to vector<2x8xf32>
    %1310 = arith.subf %1306, %1309 : vector<2x8xf32>
    %1311 = math.exp %1310 : vector<2x8xf32>
    %cst_358 = arith.constant dense<0.000000e+00> : vector<2xf32>
    %1312 = vector.multi_reduction <add>, %1311, %cst_358 [1] : vector<2x8xf32> to vector<2xf32>
    %1313 = vector.shape_cast %1312 : vector<2xf32> to vector<2x1xf32>
    %1314 = tpu.reciprocal %1313 {approx = true} : vector<2x1xf32> -> vector<2x1xf32>
    %1315 = vector.broadcast %1314 : vector<2x1xf32> to vector<2x8xf32>
    %1316 = arith.mulf %1311, %1315 : vector<2x8xf32>
    %cst_359 = arith.constant dense<0.000000e+00> : vector<2x128xf32>
    %1317 = tpu.matmul %1316, %912, %cst_359 {dimension_numbers = #tpu.dot_dimension_numbers<[1], [0], [0], [1], [0, 0, 1, 1], [], []>} : vector<2x8xf32>, vector<8x128xf32>, vector<2x128xf32> -> vector<2x128xf32>
    %1318 = arith.mulf %1317, %893 : vector<2x128xf32>
    %cst_360 = arith.constant dense<0.000000e+00> : vector<2x16xf32>
    %1319 = tpu.matmul %1318, %913, %cst_360 {dimension_numbers = #tpu.dot_dimension_numbers<[1], [0], [0], [1], [0, 0, 1, 1], [], []>} : vector<2x128xf32>, vector<128x16xf32>, vector<2x16xf32> -> vector<2x16xf32>
    %1320 = arith.mulf %1319, %920 : vector<2x16xf32>
    %cst_361 = arith.constant dense<0.000000e+00> : vector<2xf32>
    %1321 = vector.multi_reduction <add>, %1320, %cst_361 [1] : vector<2x16xf32> to vector<2xf32>
    %1322 = vector.shape_cast %1321 : vector<2xf32> to vector<2x1xf32>
    %1323 = vector.broadcast %922 : f32 to vector<2x1xf32>
    %1324 = arith.addf %1322, %1323 : vector<2x1xf32>
    %1325 = tpu.concatenate %1324, %1296 in 1 : vector<2x1xf32>, vector<2x16xf32> -> vector<2x17xf32>
    %cst_362 = arith.constant dense<0.000000e+00> : vector<2x64xf32>
    %1326 = tpu.matmul %1325, %914, %cst_362 {dimension_numbers = #tpu.dot_dimension_numbers<[1], [0], [0], [1], [0, 0, 1, 1], [], []>} : vector<2x17xf32>, vector<17x64xf32>, vector<2x64xf32> -> vector<2x64xf32>
    %1327 = arith.addf %1326, %917 : vector<2x64xf32>
    %1328 = vector.extract_strided_slice %1327 {offsets = [0, 0], sizes = [2, 16], strides = [1, 1]} : vector<2x64xf32> to vector<2x16xf32>
    %cst_363 = arith.constant 5.000000e-01 : f32
    %1329 = vector.broadcast %cst_363 : f32 to vector<2x16xf32>
    %1330 = arith.mulf %1329, %1328 : vector<2x16xf32>
    %1331 = math.tanh %1330 : vector<2x16xf32>
    %cst_364 = arith.constant 1.000000e+00 : f32
    %1332 = vector.broadcast %cst_364 : f32 to vector<2x16xf32>
    %1333 = arith.addf %1331, %1332 : vector<2x16xf32>
    %cst_365 = arith.constant 5.000000e-01 : f32
    %1334 = vector.broadcast %cst_365 : f32 to vector<2x16xf32>
    %1335 = arith.mulf %1334, %1333 : vector<2x16xf32>
    %1336 = vector.extract_strided_slice %1327 {offsets = [0, 16], sizes = [2, 16], strides = [1, 1]} : vector<2x64xf32> to vector<2x16xf32>
    %cst_366 = arith.constant 5.000000e-01 : f32
    %1337 = vector.broadcast %cst_366 : f32 to vector<2x16xf32>
    %1338 = arith.mulf %1337, %1336 : vector<2x16xf32>
    %1339 = math.tanh %1338 : vector<2x16xf32>
    %cst_367 = arith.constant 1.000000e+00 : f32
    %1340 = vector.broadcast %cst_367 : f32 to vector<2x16xf32>
    %1341 = arith.addf %1339, %1340 : vector<2x16xf32>
    %cst_368 = arith.constant 5.000000e-01 : f32
    %1342 = vector.broadcast %cst_368 : f32 to vector<2x16xf32>
    %1343 = arith.mulf %1342, %1341 : vector<2x16xf32>
    %1344 = vector.extract_strided_slice %1327 {offsets = [0, 32], sizes = [2, 16], strides = [1, 1]} : vector<2x64xf32> to vector<2x16xf32>
    %1345 = math.tanh %1344 : vector<2x16xf32>
    %1346 = vector.extract_strided_slice %1327 {offsets = [0, 48], sizes = [2, 16], strides = [1, 1]} : vector<2x64xf32> to vector<2x16xf32>
    %cst_369 = arith.constant 5.000000e-01 : f32
    %1347 = vector.broadcast %cst_369 : f32 to vector<2x16xf32>
    %1348 = arith.mulf %1347, %1346 : vector<2x16xf32>
    %1349 = math.tanh %1348 : vector<2x16xf32>
    %cst_370 = arith.constant 1.000000e+00 : f32
    %1350 = vector.broadcast %cst_370 : f32 to vector<2x16xf32>
    %1351 = arith.addf %1349, %1350 : vector<2x16xf32>
    %cst_371 = arith.constant 5.000000e-01 : f32
    %1352 = vector.broadcast %cst_371 : f32 to vector<2x16xf32>
    %1353 = arith.mulf %1352, %1351 : vector<2x16xf32>
    %1354 = arith.mulf %1343, %1294 : vector<2x16xf32>
    %1355 = arith.mulf %1335, %1345 : vector<2x16xf32>
    %1356 = arith.addf %1354, %1355 : vector<2x16xf32>
    %1357 = math.tanh %1356 : vector<2x16xf32>
    %1358 = arith.mulf %1353, %1357 : vector<2x16xf32>
    %1359 = tpu.concatenate %1358, %1356 in 1 : vector<2x16xf32>, vector<2x16xf32> -> vector<2x32xf32>
    %cst_372 = arith.constant dense<0.000000e+00> : vector<2x16xf32>
    %1360 = tpu.matmul %1359, %904, %cst_372 {dimension_numbers = #tpu.dot_dimension_numbers<[1], [0], [0], [1], [0, 0, 1, 1], [], []>} : vector<2x32xf32>, vector<32x16xf32>, vector<2x16xf32> -> vector<2x16xf32>
    %1361 = arith.addf %1360, %907 : vector<2x16xf32>
    %1362 = tpu.concatenate %1361, %1361, %1361, %1361, %1361, %1361, %1361, %1361 in 1 : vector<2x16xf32>, vector<2x16xf32>, vector<2x16xf32>, vector<2x16xf32>, vector<2x16xf32>, vector<2x16xf32>, vector<2x16xf32>, vector<2x16xf32> -> vector<2x128xf32>
    %1363 = arith.addf %1362, %903 : vector<2x128xf32>
    %1364 = math.tanh %1363 : vector<2x128xf32>
    %1365 = arith.mulf %1364, %910 : vector<2x128xf32>
    %cst_373 = arith.constant dense<0.000000e+00> : vector<2x8xf32>
    %1366 = tpu.matmul %1365, %911, %cst_373 {dimension_numbers = #tpu.dot_dimension_numbers<[1], [0], [0], [1], [0, 0, 1, 1], [], []>} : vector<2x128xf32>, vector<128x8xf32>, vector<2x8xf32> -> vector<2x8xf32>
    %1367 = vector.broadcast %921 : f32 to vector<2x8xf32>
    %1368 = arith.addf %1366, %1367 : vector<2x8xf32>
    %cst_374 = arith.constant dense<0xFF800000> : vector<2xf32>
    %1369 = vector.multi_reduction <maximumf>, %1368, %cst_374 [1] : vector<2x8xf32> to vector<2xf32>
    %1370 = vector.shape_cast %1369 : vector<2xf32> to vector<2x1xf32>
    %1371 = vector.broadcast %1370 : vector<2x1xf32> to vector<2x8xf32>
    %1372 = arith.subf %1368, %1371 : vector<2x8xf32>
    %1373 = math.exp %1372 : vector<2x8xf32>
    %cst_375 = arith.constant dense<0.000000e+00> : vector<2xf32>
    %1374 = vector.multi_reduction <add>, %1373, %cst_375 [1] : vector<2x8xf32> to vector<2xf32>
    %1375 = vector.shape_cast %1374 : vector<2xf32> to vector<2x1xf32>
    %1376 = tpu.reciprocal %1375 {approx = true} : vector<2x1xf32> -> vector<2x1xf32>
    %1377 = vector.broadcast %1376 : vector<2x1xf32> to vector<2x8xf32>
    %1378 = arith.mulf %1373, %1377 : vector<2x8xf32>
    %cst_376 = arith.constant dense<0.000000e+00> : vector<2x128xf32>
    %1379 = tpu.matmul %1378, %912, %cst_376 {dimension_numbers = #tpu.dot_dimension_numbers<[1], [0], [0], [1], [0, 0, 1, 1], [], []>} : vector<2x8xf32>, vector<8x128xf32>, vector<2x128xf32> -> vector<2x128xf32>
    %1380 = arith.mulf %1379, %893 : vector<2x128xf32>
    %cst_377 = arith.constant dense<0.000000e+00> : vector<2x16xf32>
    %1381 = tpu.matmul %1380, %913, %cst_377 {dimension_numbers = #tpu.dot_dimension_numbers<[1], [0], [0], [1], [0, 0, 1, 1], [], []>} : vector<2x128xf32>, vector<128x16xf32>, vector<2x16xf32> -> vector<2x16xf32>
    %1382 = arith.mulf %1381, %920 : vector<2x16xf32>
    %cst_378 = arith.constant dense<0.000000e+00> : vector<2xf32>
    %1383 = vector.multi_reduction <add>, %1382, %cst_378 [1] : vector<2x16xf32> to vector<2xf32>
    %1384 = vector.shape_cast %1383 : vector<2xf32> to vector<2x1xf32>
    %1385 = vector.broadcast %922 : f32 to vector<2x1xf32>
    %1386 = arith.addf %1384, %1385 : vector<2x1xf32>
    %1387 = tpu.concatenate %1386, %1358 in 1 : vector<2x1xf32>, vector<2x16xf32> -> vector<2x17xf32>
    %cst_379 = arith.constant dense<0.000000e+00> : vector<2x64xf32>
    %1388 = tpu.matmul %1387, %914, %cst_379 {dimension_numbers = #tpu.dot_dimension_numbers<[1], [0], [0], [1], [0, 0, 1, 1], [], []>} : vector<2x17xf32>, vector<17x64xf32>, vector<2x64xf32> -> vector<2x64xf32>
    %1389 = arith.addf %1388, %917 : vector<2x64xf32>
    %1390 = vector.extract_strided_slice %1389 {offsets = [0, 0], sizes = [2, 16], strides = [1, 1]} : vector<2x64xf32> to vector<2x16xf32>
    %cst_380 = arith.constant 5.000000e-01 : f32
    %1391 = vector.broadcast %cst_380 : f32 to vector<2x16xf32>
    %1392 = arith.mulf %1391, %1390 : vector<2x16xf32>
    %1393 = math.tanh %1392 : vector<2x16xf32>
    %cst_381 = arith.constant 1.000000e+00 : f32
    %1394 = vector.broadcast %cst_381 : f32 to vector<2x16xf32>
    %1395 = arith.addf %1393, %1394 : vector<2x16xf32>
    %cst_382 = arith.constant 5.000000e-01 : f32
    %1396 = vector.broadcast %cst_382 : f32 to vector<2x16xf32>
    %1397 = arith.mulf %1396, %1395 : vector<2x16xf32>
    %1398 = vector.extract_strided_slice %1389 {offsets = [0, 16], sizes = [2, 16], strides = [1, 1]} : vector<2x64xf32> to vector<2x16xf32>
    %cst_383 = arith.constant 5.000000e-01 : f32
    %1399 = vector.broadcast %cst_383 : f32 to vector<2x16xf32>
    %1400 = arith.mulf %1399, %1398 : vector<2x16xf32>
    %1401 = math.tanh %1400 : vector<2x16xf32>
    %cst_384 = arith.constant 1.000000e+00 : f32
    %1402 = vector.broadcast %cst_384 : f32 to vector<2x16xf32>
    %1403 = arith.addf %1401, %1402 : vector<2x16xf32>
    %cst_385 = arith.constant 5.000000e-01 : f32
    %1404 = vector.broadcast %cst_385 : f32 to vector<2x16xf32>
    %1405 = arith.mulf %1404, %1403 : vector<2x16xf32>
    %1406 = vector.extract_strided_slice %1389 {offsets = [0, 32], sizes = [2, 16], strides = [1, 1]} : vector<2x64xf32> to vector<2x16xf32>
    %1407 = math.tanh %1406 : vector<2x16xf32>
    %1408 = vector.extract_strided_slice %1389 {offsets = [0, 48], sizes = [2, 16], strides = [1, 1]} : vector<2x64xf32> to vector<2x16xf32>
    %cst_386 = arith.constant 5.000000e-01 : f32
    %1409 = vector.broadcast %cst_386 : f32 to vector<2x16xf32>
    %1410 = arith.mulf %1409, %1408 : vector<2x16xf32>
    %1411 = math.tanh %1410 : vector<2x16xf32>
    %cst_387 = arith.constant 1.000000e+00 : f32
    %1412 = vector.broadcast %cst_387 : f32 to vector<2x16xf32>
    %1413 = arith.addf %1411, %1412 : vector<2x16xf32>
    %cst_388 = arith.constant 5.000000e-01 : f32
    %1414 = vector.broadcast %cst_388 : f32 to vector<2x16xf32>
    %1415 = arith.mulf %1414, %1413 : vector<2x16xf32>
    %1416 = arith.mulf %1405, %1356 : vector<2x16xf32>
    %1417 = arith.mulf %1397, %1407 : vector<2x16xf32>
    %1418 = arith.addf %1416, %1417 : vector<2x16xf32>
    %1419 = math.tanh %1418 : vector<2x16xf32>
    %1420 = arith.mulf %1415, %1419 : vector<2x16xf32>
    %1421 = tpu.concatenate %1420, %1381 in 1 : vector<2x16xf32>, vector<2x16xf32> -> vector<2x32xf32>
    %c0_389 = arith.constant 0 : index
    %c0_390 = arith.constant 0 : index
    %1422 = vector.load %arg15[%c0_389, %c0_390] : memref<32x5xf32, #tpu.memory_space<vmem>>, vector<32x5xf32>
    %cst_391 = arith.constant dense<0.000000e+00> : vector<2x5xf32>
    %1423 = tpu.matmul %1421, %1422, %cst_391 {dimension_numbers = #tpu.dot_dimension_numbers<[1], [0], [0], [1], [0, 0, 1, 1], [], []>} : vector<2x32xf32>, vector<32x5xf32>, vector<2x5xf32> -> vector<2x5xf32>
    %c0_392 = arith.constant 0 : index
    %c0_393 = arith.constant 0 : index
    %1424 = vector.load %arg16[%c0_392, %c0_393] : memref<1x5xf32, #tpu.memory_space<vmem>>, vector<1x5xf32>
    %1425 = vector.broadcast %1424 : vector<1x5xf32> to vector<2x5xf32>
    %1426 = arith.addf %1423, %1425 : vector<2x5xf32>
    %c0_394 = arith.constant 0 : index
    %c0_395 = arith.constant 0 : index
    %1427 = vector.load %arg28[%c0_394, %c0_395] : memref<2x5xf32, #tpu.memory_space<vmem>>, vector<2x5xf32>
    tpu.vector_store %arg28[%c0_394, %c0_395], %1426 {strides = array<i32>} : memref<2x5xf32, #tpu.memory_space<vmem>>, vector<2x5xf32>,
    return
  }
}

</mosaic_0001>

<llo_original>
// kernel: net_forward.1
$region0: #{net_forward.1}
  #allocation0 [shape = 'u32[]', space=smem, size = 0x4, offset = 0x4, fixed_abs, tag = 'smem constant byte address 0x4 - core index']
  #allocation1 [shape = 'u32[72,128]{1,0:T(1,128)}', space=vmem, size = 0x9000, scoped, tag = 'internal scratch']
  #allocation2 [shape = 'f32[1]{0:T(128)S(6)}', space=smem, size = 0x200, scoped, tag = 'scoped memory for net_forward.1']
  #allocation3 [shape = 'f32[1]{0:T(128)S(6)}', space=smem, size = 0x200, scoped, tag = 'scoped memory for net_forward.1']
  #allocation4 [shape = 'f32[1]{0:T(128)S(6)}', space=smem, size = 0x200, scoped, tag = 'scoped memory for net_forward.1']
  %s0 = inlined_call_operand.vmem [shape: f32[16,10], index: 0, kind: input, shape index: {}]
  %s1 = inlined_call_operand.vmem [shape: f32[10,72], index: 1, kind: input, shape index: {}]
  %s2 = inlined_call_operand.vmem [shape: f32[1,72], index: 2, kind: input, shape index: {}]
  %s3 = inlined_call_operand.vmem [shape: f32[72,12], index: 3, kind: input, shape index: {}]
  %s4 = inlined_call_operand.vmem [shape: f32[1,12], index: 4, kind: input, shape index: {}]
  %s5 = inlined_call_operand.vmem [shape: f32[28,64], index: 5, kind: input, shape index: {}]
  %s6 = inlined_call_operand.vmem [shape: f32[1,64], index: 6, kind: input, shape index: {}]
  %s7 = inlined_call_operand.vmem [shape: f32[1,32], index: 7, kind: input, shape index: {}]
  %s8 = inlined_call_operand.vmem [shape: f32[32,16], index: 8, kind: input, shape index: {}]
  %s9 = inlined_call_operand.vmem [shape: f32[16,16], index: 9, kind: input, shape index: {}]
  %s10 = inlined_call_operand.vmem [shape: f32[1,16], index: 10, kind: input, shape index: {}]
  %s11 = inlined_call_operand.vmem [shape: f32[1,128], index: 11, kind: input, shape index: {}]
  %s12 = inlined_call_operand.vmem [shape: f32[17,64], index: 12, kind: input, shape index: {}]
  %s13 = inlined_call_operand.vmem [shape: f32[1,64], index: 13, kind: input, shape index: {}]
  %s14 = inlined_call_operand.vmem [shape: f32[1,16], index: 14, kind: input, shape index: {}]
  %s15 = inlined_call_operand.vmem [shape: f32[32,5], index: 15, kind: input, shape index: {}]
  %s16 = inlined_call_operand.vmem [shape: f32[1,5], index: 16, kind: input, shape index: {}]
  %s17 = inlined_call_operand.vmem [shape: f32[128,8], index: 17, kind: input, shape index: {}]
  %s18 = inlined_call_operand.vmem [shape: f32[8,128], index: 18, kind: input, shape index: {}]
  %s19 = inlined_call_operand.vmem [shape: f32[128,16], index: 19, kind: input, shape index: {}]
  %s20 = inlined_call_operand.vmem [shape: f32[8], index: 20, kind: input, shape index: {}]
  %s21 = inlined_call_operand.vmem [shape: f32[8], index: 21, kind: input, shape index: {}]
  %s22 = inlined_call_operand.vmem [shape: f32[4], index: 22, kind: input, shape index: {}]
  %s23 = inlined_call_operand.vmem [shape: f32[4], index: 23, kind: input, shape index: {}]
  %s24 = inlined_call_operand.vmem [shape: f32[8], index: 24, kind: input, shape index: {}]
  %s25 = inlined_call_operand.<no memory space> [shape: f32[1], index: 25, kind: input, shape index: {}]
  %s26 = inlined_call_operand.<no memory space> [shape: f32[1], index: 26, kind: input, shape index: {}]
  %s27 = inlined_call_operand.<no memory space> [shape: f32[1], index: 27, kind: input, shape index: {}]
  %s28 = inlined_call_operand.hbm [shape: f32[2,5], index: 28, kind: output, shape index: {}]
  %s29 = sld [smem:[#allocation0]]
  $region142: #{net_forward.1} parent=0
    _
  %s31 = ssub.s32 1, %s29
  %s32 = scalar_select 0, %s31, %s29
  %33 = sst [smem:[#allocation2]] %s25
  %34 = sst [smem:[#allocation3]] %s26
  %35 = sst [smem:[#allocation4]] %s27
  $region1: #{net_forward.1} parent=0
    #allocation5 [shape = 'u8[512]{0}', space=smem, size = 0x200, scoped, tag = 'input window, operand 20, single buffered']
    #allocation6 [shape = 's32[1]{0}', space=sflag, size = 0x4, scoped, tag = 'scoped memory for net_forward.1']
    #allocation7 [shape = 's32[1]{0}', space=sflag, size = 0x4, scoped, tag = 'scoped memory for net_forward.1']
    #allocation8 [shape = 'u8[512]{0}', space=smem, size = 0x200, scoped, tag = 'input window, operand 21, single buffered']
    #allocation9 [shape = 's32[1]{0}', space=sflag, size = 0x4, scoped, tag = 'scoped memory for net_forward.1']
    #allocation10 [shape = 'u8[512]{0}', space=smem, size = 0x200, scoped, tag = 'input window, operand 22, single buffered']
    #allocation11 [shape = 'u8[512]{0}', space=smem, size = 0x200, scoped, tag = 'input window, operand 23, single buffered']
    #allocation12 [shape = 's32[1]{0}', space=sflag, size = 0x4, scoped, tag = 'scoped memory for net_forward.1']
    #allocation13 [shape = 'u8[512]{0}', space=smem, size = 0x200, scoped, tag = 'input window, operand 24, single buffered']
    #allocation14 [shape = 'u8[1024]{0}', space=vmem, size = 0x400, scoped, tag = 'output window, operand 0, single buffered']
    %36 = vsyncpa [#allocation7], 0
    %37 = vsyncpa [#allocation9], 0
    %38 = vsyncpa [#allocation12], 0
    %39 = vsyncpa [#allocation6], 0
    // Predicated region
    $region2: #{net_forward.1} parent=1 // pred_check
      _
    $region3: #{net_forward.1} parent=1 // pred_check_branch
      %41 = sbr.rel (0) target = $region5
    $region4: #{net_forward.1} parent=1 // pred_region
      _
    $region5: #{net_forward.1} parent=1 // pred_fallthru
      _
    // Predicated region
    $region6: #{net_forward.1} parent=1 // pred_check
      _
    $region7: #{net_forward.1} parent=1 // pred_check_branch
      %43 = sbr.rel (0) target = $region9
    $region8: #{net_forward.1} parent=1 // pred_region
      _
    $region9: #{net_forward.1} parent=1 // pred_fallthru
      _
    // Predicated region
    $region10: #{net_forward.1} parent=1 // pred_check
      _
    $region11: #{net_forward.1} parent=1 // pred_check_branch
      %45 = sbr.rel (0) target = $region13
    $region12: #{net_forward.1} parent=1 // pred_region
      _
    $region13: #{net_forward.1} parent=1 // pred_fallthru
      _
    // Predicated region
    $region14: #{net_forward.1} parent=1 // pred_check
      _
    $region15: #{net_forward.1} parent=1 // pred_check_branch
      %47 = sbr.rel (0) target = $region17
    $region16: #{net_forward.1} parent=1 // pred_region
      _
    $region17: #{net_forward.1} parent=1 // pred_fallthru
      _
    // Predicated region
    $region18: #{net_forward.1} parent=1 // pred_check
      _
    $region19: #{net_forward.1} parent=1 // pred_check_branch
      %49 = sbr.rel (0) target = $region21
    $region20: #{net_forward.1} parent=1 // pred_region
      _
    $region21: #{net_forward.1} parent=1 // pred_fallthru
      _
    // Predicated region
    $region22: #{net_forward.1} parent=1 // pred_check
      _
    $region23: #{net_forward.1} parent=1 // pred_check_branch
      %51 = sbr.rel (0) target = $region25
    $region24: #{net_forward.1} parent=1 // pred_region
      _
    $region25: #{net_forward.1} parent=1 // pred_fallthru
      _
    // Predicated region
    $region26: #{net_forward.1} parent=1 // pred_check
      _
    $region27: #{net_forward.1} parent=1 // pred_check_branch
      %53 = sbr.rel (0) target = $region29
    $region28: #{net_forward.1} parent=1 // pred_region
      _
    $region29: #{net_forward.1} parent=1 // pred_fallthru
      _
    // Predicated region
    $region30: #{net_forward.1} parent=1 // pred_check
      _
    $region31: #{net_forward.1} parent=1 // pred_check_branch
      %55 = sbr.rel (0) target = $region33
    $region32: #{net_forward.1} parent=1 // pred_region
      _
    $region33: #{net_forward.1} parent=1 // pred_fallthru
      _
    // Predicated region
    $region34: #{net_forward.1} parent=1 // pred_check
      _
    $region35: #{net_forward.1} parent=1 // pred_check_branch
      %57 = sbr.rel (0) target = $region37
    $region36: #{net_forward.1} parent=1 // pred_region
      _
    $region37: #{net_forward.1} parent=1 // pred_fallthru
      _
    // Predicated region
    $region38: #{net_forward.1} parent=1 // pred_check
      _
    $region39: #{net_forward.1} parent=1 // pred_check_branch
      %59 = sbr.rel (0) target = $region41
    $region40: #{net_forward.1} parent=1 // pred_region
      _
    $region41: #{net_forward.1} parent=1 // pred_fallthru
      _
    // Predicated region
    $region42: #{net_forward.1} parent=1 // pred_check
      _
    $region43: #{net_forward.1} parent=1 // pred_check_branch
      %61 = sbr.rel (0) target = $region45
    $region44: #{net_forward.1} parent=1 // pred_region
      _
    $region45: #{net_forward.1} parent=1 // pred_fallthru
      _
    // Predicated region
    $region46: #{net_forward.1} parent=1 // pred_check
      _
    $region47: #{net_forward.1} parent=1 // pred_check_branch
      %63 = sbr.rel (0) target = $region49
    $region48: #{net_forward.1} parent=1 // pred_region
      _
    $region49: #{net_forward.1} parent=1 // pred_fallthru
      _
    // Predicated region
    $region50: #{net_forward.1} parent=1 // pred_check
      _
    $region51: #{net_forward.1} parent=1 // pred_check_branch
      %65 = sbr.rel (0) target = $region53
    $region52: #{net_forward.1} parent=1 // pred_region
      _
    $region53: #{net_forward.1} parent=1 // pred_fallthru
      _
    // Predicated region
    $region54: #{net_forward.1} parent=1 // pred_check
      _
    $region55: #{net_forward.1} parent=1 // pred_check_branch
      %67 = sbr.rel (0) target = $region57
    $region56: #{net_forward.1} parent=1 // pred_region
      _
    $region57: #{net_forward.1} parent=1 // pred_fallthru
      _
    // Predicated region
    $region58: #{net_forward.1} parent=1 // pred_check
      _
    $region59: #{net_forward.1} parent=1 // pred_check_branch
      %69 = sbr.rel (0) target = $region61
    $region60: #{net_forward.1} parent=1 // pred_region
      _
    $region61: #{net_forward.1} parent=1 // pred_fallthru
      _
    // Predicated region
    $region62: #{net_forward.1} parent=1 // pred_check
      _
    $region63: #{net_forward.1} parent=1 // pred_check_branch
      %71 = sbr.rel (0) target = $region65
    $region64: #{net_forward.1} parent=1 // pred_region
      _
    $region65: #{net_forward.1} parent=1 // pred_fallthru
      _
    // Predicated region
    $region66: #{net_forward.1} parent=1 // pred_check
      _
    $region67: #{net_forward.1} parent=1 // pred_check_branch
      %73 = sbr.rel (0) target = $region69
    $region68: #{net_forward.1} parent=1 // pred_region
      _
    $region69: #{net_forward.1} parent=1 // pred_fallthru
      _
    // Predicated region
    $region70: #{net_forward.1} parent=1 // pred_check
      _
    $region71: #{net_forward.1} parent=1 // pred_check_branch
      %75 = sbr.rel (0) target = $region73
    $region72: #{net_forward.1} parent=1 // pred_region
      _
    $region73: #{net_forward.1} parent=1 // pred_fallthru
      _
    // Predicated region
    $region74: #{net_forward.1} parent=1 // pred_check
      _
    $region75: #{net_forward.1} parent=1 // pred_check_branch
      %77 = sbr.rel (0) target = $region77
    $region76: #{net_forward.1} parent=1 // pred_region
      _
    $region77: #{net_forward.1} parent=1 // pred_fallthru
      _
    // Predicated region
    $region78: #{net_forward.1} parent=1 // pred_check
      _
    $region79: #{net_forward.1} parent=1 // pred_check_branch
      %79 = sbr.rel (0) target = $region81
    $region80: #{net_forward.1} parent=1 // pred_region
      _
    $region81: #{net_forward.1} parent=1 // pred_fallthru
      _
    // Predicated region
    $region82: #{net_forward.1} parent=1 // pred_check
      _
    $region83: #{net_forward.1} parent=1 // pred_check_branch
      %81 = sbr.rel (0) target = $region85
    $region84: #{net_forward.1} parent=1 // pred_region
      %83 = vsyncadd [#allocation7], 0
      %s85 = sshll.u32 %s20, 4
      %s86 = int_to_ptr.vmem [resolvable:$true] %s85
      %88 = dma.vmem_to_smem %s86, 16, [#allocation5], [#allocation7]
    $region85: #{net_forward.1} parent=1 // pred_fallthru
      _
    // Predicated region
    $region86: #{net_forward.1} parent=1 // pred_check
      _
    $region87: #{net_forward.1} parent=1 // pred_check_branch
      %90 = sbr.rel (0) target = $region89
    $region88: #{net_forward.1} parent=1 // pred_region
      %92 = vsyncadd [#allocation9], 0
      %s94 = sshll.u32 %s21, 4
      %s95 = int_to_ptr.vmem [resolvable:$true] %s94
      %97 = dma.vmem_to_smem %s95, 16, [#allocation8], [#allocation9]
    $region89: #{net_forward.1} parent=1 // pred_fallthru
      _
    // Predicated region
    $region90: #{net_forward.1} parent=1 // pred_check
      _
    $region91: #{net_forward.1} parent=1 // pred_check_branch
      %99 = sbr.rel (0) target = $region93
    $region92: #{net_forward.1} parent=1 // pred_region
      %101 = vsyncadd [#allocation9], 0
      %s103 = sshll.u32 %s22, 4
      %s104 = int_to_ptr.vmem [resolvable:$true] %s103
      %106 = dma.vmem_to_smem %s104, 16, [#allocation10], [#allocation9]
    $region93: #{net_forward.1} parent=1 // pred_fallthru
      _
    // Predicated region
    $region94: #{net_forward.1} parent=1 // pred_check
      _
    $region95: #{net_forward.1} parent=1 // pred_check_branch
      %108 = sbr.rel (0) target = $region97
    $region96: #{net_forward.1} parent=1 // pred_region
      %110 = vsyncadd [#allocation12], 0
      %s112 = sshll.u32 %s23, 4
      %s113 = int_to_ptr.vmem [resolvable:$true] %s112
      %115 = dma.vmem_to_smem %s113, 16, [#allocation11], [#allocation12]
    $region97: #{net_forward.1} parent=1 // pred_fallthru
      _
    // Predicated region
    $region98: #{net_forward.1} parent=1 // pred_check
      _
    $region99: #{net_forward.1} parent=1 // pred_check_branch
      %117 = sbr.rel (0) target = $region101
    $region100: #{net_forward.1} parent=1 // pred_region
      %119 = vsyncadd [#allocation12], 0
      %s121 = sshll.u32 %s24, 4
      %s122 = int_to_ptr.vmem [resolvable:$true] %s121
      %124 = dma.vmem_to_smem %s122, 16, [#allocation13], [#allocation12]
    $region101: #{net_forward.1} parent=1 // pred_fallthru
      _
    // Predicated region
    $region102: #{net_forward.1} parent=1 // pred_check
      _
    $region103: #{net_forward.1} parent=1 // pred_check_branch
      %126 = sbr.rel (0) target = $region105
    $region104: #{net_forward.1} parent=1 // pred_region
      _
    $region105: #{net_forward.1} parent=1 // pred_fallthru
      _
    // Predicated region
    $region106: #{net_forward.1} parent=1 // pred_check
      _
    $region107: #{net_forward.1} parent=1 // pred_check_branch
      %128 = sbr.rel (0) target = $region109
    $region108: #{net_forward.1} parent=1 // pred_region
      _
    $region109: #{net_forward.1} parent=1 // pred_fallthru
      _
    // Predicated region
    $region110: #{net_forward.1} parent=1 // pred_check
      _
    $region111: #{net_forward.1} parent=1 // pred_check_branch
      %130 = sbr.rel (0) target = $region113
    $region112: #{net_forward.1} parent=1 // pred_region
      _
    $region113: #{net_forward.1} parent=1 // pred_fallthru
      _
    // Predicated region
    $region114: #{net_forward.1} parent=1 // pred_check
      _
    $region115: #{net_forward.1} parent=1 // pred_check_branch
      %132 = sbr.rel (0) target = $region117
    $region116: #{net_forward.1} parent=1 // pred_region
      %134 = dma.done [#allocation7], 16
    $region117: #{net_forward.1} parent=1 // pred_fallthru
      _
    // Predicated region
    $region118: #{net_forward.1} parent=1 // pred_check
      _
    $region119: #{net_forward.1} parent=1 // pred_check_branch
      %136 = sbr.rel (0) target = $region121
    $region120: #{net_forward.1} parent=1 // pred_region
      %138 = dma.done [#allocation9], 16
    $region121: #{net_forward.1} parent=1 // pred_fallthru
      _
    // Predicated region
    $region122: #{net_forward.1} parent=1 // pred_check
      _
    $region123: #{net_forward.1} parent=1 // pred_check_branch
      %140 = sbr.rel (0) target = $region125
    $region124: #{net_forward.1} parent=1 // pred_region
      %142 = dma.done [#allocation9], 16
    $region125: #{net_forward.1} parent=1 // pred_fallthru
      _
    // Predicated region
    $region126: #{net_forward.1} parent=1 // pred_check
      _
    $region127: #{net_forward.1} parent=1 // pred_check_branch
      %144 = sbr.rel (0) target = $region129
    $region128: #{net_forward.1} parent=1 // pred_region
      %146 = dma.done [#allocation12], 16
    $region129: #{net_forward.1} parent=1 // pred_fallthru
      _
    // Predicated region
    $region130: #{net_forward.1} parent=1 // pred_check
      _
    $region131: #{net_forward.1} parent=1 // pred_check_branch
      %148 = sbr.rel (0) target = $region133
    $region132: #{net_forward.1} parent=1 // pred_region
      %150 = dma.done [#allocation12], 16
    $region133: #{net_forward.1} parent=1 // pred_fallthru
      _
    %151 = sfence
    %v152 = vld [vmem:[%s0] sm:$0xff]
    %v153 = vld [vmem:[%s0 + $0x8] sm:$0xff]
    %v154 = vld [vmem:[%s1] sm:$0xff]
    %v155 = vld [vmem:[%s1 + $0x8] sm:$0x3]
    %v156 = vld [vmem:[%s2] sm:$0x1]
    %v158 = vperm.slane %v156, 0
    %vm160 = vcmask 80896
    %v162 = vsel %vm160, %v152, 0
    %v165 = vsel %vm160, %v153, 0
    %vm167 = vcmask 1041408
    %v169 = vsel %vm167, %v155, 0
    %171 = vmatpush.msra.mxu0 0.0
    %172 = vmatpush.msra.mxu0 0.0
    %173 = vmatpush.msra.mxu0 0.0
    %174 = vmatpush.msra.mxu0 0.0
    %175 = vmatpush.msra.mxu0 0.0
    %176 = vmatpush.msra.mxu0 0.0
    %177 = vmatpush.msra.mxu0 0.0
    %178 = vmatpush.msra.mxu0 0.0
    %179 = vmatpush.msra.mxu0 0.0
    %180 = vmatpush.msra.mxu0 0.0
    %181 = vmatpush.msra.mxu0 0.0
    %182 = vmatpush.msra.mxu0 0.0
    %183 = vmatpush.msra.mxu0 0.0
    %184 = vmatpush.msra.mxu0 0.0
    %185 = vmatpush.msra.mxu0 %v169
    %186 = vmatpush.msra.mxu0 %v154
    %187 = vmatmul.f32.gmra.mxu0 %v162
    %v188 = vpop.f32.mrf.mxu0
    %v189 = vadd.f32 %v158, %v188
    %190 = vmatmul.f32.gmra.mxu0 %v165
    %v191 = vpop.f32.mrf.mxu0
    %v192 = vadd.f32 %v158, %v191
    %193 = vdwg.mxu0
    %vm194 = vcmask 72704
    %v195 = vsel %vm194, %v189, 0.0
    %v196 = vsel %vm194, %v192, 0.0
    %v197 = vadd.f32 %v195, %v196
    %198 = vadd.xlane.f32.xlu0 %v197
    %v199 = vpop.xlane.xlu0 %198
    %v200 = vrot.slane %v199, 4
    %v201 = vadd.f32 %v199, %v200
    %v202 = vrot.slane %v201, 2
    %v203 = vadd.f32 %v201, %v202
    %v204 = vrot.slane %v203, 1
    %v205 = vadd.f32 %v203, %v204
    %s206 = vtos %v205
    %v207 = vstv %s206
    %v208 = vrcp.pop 144.0
    %v209 = vmul.f32 144.0, %v208
    %v210 = vsub.f32 1.0, %v209
    %v211 = vmul.f32 %v208, %v210
    %v212 = vadd.f32 %v208, %v211
    %vm213 = vweird.f32 %v208
    %v214 = vsel %vm213, %v208, %v212
    %v215 = vmul.f32 %v207, %v214
    %v216 = vsub.f32 %v189, %v215
    %v217 = vsub.f32 %v192, %v215
    %v218 = vmul.f32 %v216, %v216
    %v219 = vmul.f32 %v217, %v217
    %v220 = vsel %vm194, %v218, 0.0
    %v221 = vsel %vm194, %v219, 0.0
    %v222 = vadd.f32 %v220, %v221
    %223 = vadd.xlane.f32.xlu0 %v222
    %v224 = vpop.xlane.xlu0 %223
    %v225 = vrot.slane %v224, 4
    %v226 = vadd.f32 %v224, %v225
    %v227 = vrot.slane %v226, 2
    %v228 = vadd.f32 %v226, %v227
    %v229 = vrot.slane %v228, 1
    %v230 = vadd.f32 %v228, %v229
    %s231 = vtos %v230
    %v232 = vstv %s231
    %v233 = vmul.f32 %v232, %v214
    %v234 = vadd.f32 %v233, 1e-05
    %v235 = vrsqrt.pop %v234
    %v236 = vmul.f32 %v235, %v234
    %v237 = vmul.f32 %v236, %v235
    %v238 = vmul.f32 0.5, %v237
    %v239 = vsub.f32 1.5, %v238
    %v240 = vmul.f32 %v235, %v239
    %vm241 = vweird.f32 %v234
    %vm242 = vweird.f32 %v235
    %vm243 = vmor %vm241, %vm242
    %v244 = vsel %vm243, %v235, %v240
    %v245 = vmul.f32 %v216, %v244
    %v246 = vmul.f32 %v217, %v244
    %s247 = sld [smem:[#allocation5]]
    %v248 = vstv %s247
    %v249 = vmul.f32 %v245, %v248
    %v250 = vmul.f32 %v246, %v248
    %s251 = sld [smem:[#allocation8]]
    %v252 = vstv %s251
    %v253 = vadd.f32 %v249, %v252
    %v254 = vadd.f32 %v250, %v252
    %v255 = vmax.f32 %v253, 0.0
    %v256 = vmax.f32 %v254, 0.0
    %259 = vrot.lane.b32.xlu0 %v189, 119
    %v260 = vpop.permute.xlu0 %259
    %261 = vrot.lane.b32.xlu0 %v192, 119
    %v262 = vpop.permute.xlu0 %261
    %v265 = vsel %vm194, %v260, 0.0
    %v266 = vsel %vm194, %v262, 0.0
    %v267 = vadd.f32 %v265, %v266
    %268 = vadd.xlane.f32.xlu0 %v267
    %v269 = vpop.xlane.xlu0 %268
    %v270 = vrot.slane %v269, 4
    %v271 = vadd.f32 %v269, %v270
    %v272 = vrot.slane %v271, 2
    %v273 = vadd.f32 %v271, %v272
    %v274 = vrot.slane %v273, 1
    %v275 = vadd.f32 %v273, %v274
    %s276 = vtos %v275
    %v277 = vstv %s276
    %v278 = vmul.f32 %v277, %v214
    %v279 = vsub.f32 %v189, %v278
    %v280 = vsub.f32 %v192, %v278
    %v281 = vmul.f32 %v279, %v279
    %v282 = vmul.f32 %v280, %v280
    %285 = vrot.lane.b32.xlu0 %v281, 119
    %v286 = vpop.permute.xlu0 %285
    %287 = vrot.lane.b32.xlu0 %v282, 119
    %v288 = vpop.permute.xlu0 %287
    %v291 = vsel %vm194, %v286, 0.0
    %v292 = vsel %vm194, %v288, 0.0
    %v293 = vadd.f32 %v291, %v292
    %294 = vadd.xlane.f32.xlu0 %v293
    %v295 = vpop.xlane.xlu0 %294
    %v296 = vrot.slane %v295, 4
    %v297 = vadd.f32 %v295, %v296
    %v298 = vrot.slane %v297, 2
    %v299 = vadd.f32 %v297, %v298
    %v300 = vrot.slane %v299, 1
    %v301 = vadd.f32 %v299, %v300
    %s302 = vtos %v301
    %v303 = vstv %s302
    %v304 = vmul.f32 %v303, %v214
    %v305 = vadd.f32 %v304, 1e-05
    %v306 = vrsqrt.pop %v305
    %v307 = vmul.f32 %v306, %v305
    %v308 = vmul.f32 %v307, %v306
    %v309 = vmul.f32 0.5, %v308
    %v310 = vsub.f32 1.5, %v309
    %v311 = vmul.f32 %v306, %v310
    %vm312 = vweird.f32 %v305
    %vm313 = vweird.f32 %v306
    %vm314 = vmor %vm312, %vm313
    %v315 = vsel %vm314, %v306, %v311
    %v316 = vmul.f32 %v279, %v315
    %v317 = vmul.f32 %v280, %v315
    %s318 = sld [smem:[#allocation5 + $0x1]]
    %v319 = vstv %s318
    %v320 = vmul.f32 %v316, %v319
    %v321 = vmul.f32 %v317, %v319
    %s322 = sld [smem:[#allocation8 + $0x1]]
    %v323 = vstv %s322
    %v324 = vadd.f32 %v320, %v323
    %v325 = vadd.f32 %v321, %v323
    %v326 = vmax.f32 %v324, 0.0
    %v327 = vmax.f32 %v325, 0.0
    %328 = vrot.lane.b32.xlu0 %v189, 110
    %v329 = vpop.permute.xlu0 %328
    %330 = vrot.lane.b32.xlu0 %v192, 110
    %v331 = vpop.permute.xlu0 %330
    %v334 = vsel %vm194, %v329, 0.0
    %v335 = vsel %vm194, %v331, 0.0
    %v336 = vadd.f32 %v334, %v335
    %337 = vadd.xlane.f32.xlu0 %v336
    %v338 = vpop.xlane.xlu0 %337
    %v339 = vrot.slane %v338, 4
    %v340 = vadd.f32 %v338, %v339
    %v341 = vrot.slane %v340, 2
    %v342 = vadd.f32 %v340, %v341
    %v343 = vrot.slane %v342, 1
    %v344 = vadd.f32 %v342, %v343
    %s345 = vtos %v344
    %v346 = vstv %s345
    %v347 = vmul.f32 %v346, %v214
    %v348 = vsub.f32 %v189, %v347
    %v349 = vsub.f32 %v192, %v347
    %v350 = vmul.f32 %v348, %v348
    %v351 = vmul.f32 %v349, %v349
    %354 = vrot.lane.b32.xlu0 %v350, 110
    %v355 = vpop.permute.xlu0 %354
    %356 = vrot.lane.b32.xlu0 %v351, 110
    %v357 = vpop.permute.xlu0 %356
    %v360 = vsel %vm194, %v355, 0.0
    %v361 = vsel %vm194, %v357, 0.0
    %v362 = vadd.f32 %v360, %v361
    %363 = vadd.xlane.f32.xlu0 %v362
    %v364 = vpop.xlane.xlu0 %363
    %v365 = vrot.slane %v364, 4
    %v366 = vadd.f32 %v364, %v365
    %v367 = vrot.slane %v366, 2
    %v368 = vadd.f32 %v366, %v367
    %v369 = vrot.slane %v368, 1
    %v370 = vadd.f32 %v368, %v369
    %s371 = vtos %v370
    %v372 = vstv %s371
    %v373 = vmul.f32 %v372, %v214
    %v374 = vadd.f32 %v373, 1e-05
    %v375 = vrsqrt.pop %v374
    %v376 = vmul.f32 %v375, %v374
    %v377 = vmul.f32 %v376, %v375
    %v378 = vmul.f32 0.5, %v377
    %v379 = vsub.f32 1.5, %v378
    %v380 = vmul.f32 %v375, %v379
    %vm381 = vweird.f32 %v374
    %vm382 = vweird.f32 %v375
    %vm383 = vmor %vm381, %vm382
    %v384 = vsel %vm383, %v375, %v380
    %v385 = vmul.f32 %v348, %v384
    %v386 = vmul.f32 %v349, %v384
    %s387 = sld [smem:[#allocation5 + $0x2]]
    %v388 = vstv %s387
    %v389 = vmul.f32 %v385, %v388
    %v390 = vmul.f32 %v386, %v388
    %s391 = sld [smem:[#allocation8 + $0x2]]
    %v392 = vstv %s391
    %v393 = vadd.f32 %v389, %v392
    %v394 = vadd.f32 %v390, %v392
    %v395 = vmax.f32 %v393, 0.0
    %v396 = vmax.f32 %v394, 0.0
    %397 = vrot.lane.b32.xlu0 %v189, 101
    %v398 = vpop.permute.xlu0 %397
    %399 = vrot.lane.b32.xlu0 %v192, 101
    %v400 = vpop.permute.xlu0 %399
    %v403 = vsel %vm194, %v398, 0.0
    %v404 = vsel %vm194, %v400, 0.0
    %v405 = vadd.f32 %v403, %v404
    %406 = vadd.xlane.f32.xlu0 %v405
    %v407 = vpop.xlane.xlu0 %406
    %v408 = vrot.slane %v407, 4
    %v409 = vadd.f32 %v407, %v408
    %v410 = vrot.slane %v409, 2
    %v411 = vadd.f32 %v409, %v410
    %v412 = vrot.slane %v411, 1
    %v413 = vadd.f32 %v411, %v412
    %s414 = vtos %v413
    %v415 = vstv %s414
    %v416 = vmul.f32 %v415, %v214
    %v417 = vsub.f32 %v189, %v416
    %v418 = vsub.f32 %v192, %v416
    %v419 = vmul.f32 %v417, %v417
    %v420 = vmul.f32 %v418, %v418
    %423 = vrot.lane.b32.xlu0 %v419, 101
    %v424 = vpop.permute.xlu0 %423
    %425 = vrot.lane.b32.xlu0 %v420, 101
    %v426 = vpop.permute.xlu0 %425
    %v429 = vsel %vm194, %v424, 0.0
    %v430 = vsel %vm194, %v426, 0.0
    %v431 = vadd.f32 %v429, %v430
    %432 = vadd.xlane.f32.xlu0 %v431
    %v433 = vpop.xlane.xlu0 %432
    %v434 = vrot.slane %v433, 4
    %v435 = vadd.f32 %v433, %v434
    %v436 = vrot.slane %v435, 2
    %v437 = vadd.f32 %v435, %v436
    %v438 = vrot.slane %v437, 1
    %v439 = vadd.f32 %v437, %v438
    %s440 = vtos %v439
    %v441 = vstv %s440
    %v442 = vmul.f32 %v441, %v214
    %v443 = vadd.f32 %v442, 1e-05
    %v444 = vrsqrt.pop %v443
    %v445 = vmul.f32 %v444, %v443
    %v446 = vmul.f32 %v445, %v444
    %v447 = vmul.f32 0.5, %v446
    %v448 = vsub.f32 1.5, %v447
    %v449 = vmul.f32 %v444, %v448
    %vm450 = vweird.f32 %v443
    %vm451 = vweird.f32 %v444
    %vm452 = vmor %vm450, %vm451
    %v453 = vsel %vm452, %v444, %v449
    %v454 = vmul.f32 %v417, %v453
    %v455 = vmul.f32 %v418, %v453
    %s456 = sld [smem:[#allocation5 + $0x3]]
    %v457 = vstv %s456
    %v458 = vmul.f32 %v454, %v457
    %v459 = vmul.f32 %v455, %v457
    %s460 = sld [smem:[#allocation8 + $0x3]]
    %v461 = vstv %s460
    %v462 = vadd.f32 %v458, %v461
    %v463 = vadd.f32 %v459, %v461
    %v464 = vmax.f32 %v462, 0.0
    %v465 = vmax.f32 %v463, 0.0
    %466 = vrot.lane.b32.xlu0 %v189, 92
    %v467 = vpop.permute.xlu0 %466
    %468 = vrot.lane.b32.xlu0 %v192, 92
    %v469 = vpop.permute.xlu0 %468
    %v472 = vsel %vm194, %v467, 0.0
    %v473 = vsel %vm194, %v469, 0.0
    %v474 = vadd.f32 %v472, %v473
    %475 = vadd.xlane.f32.xlu0 %v474
    %v476 = vpop.xlane.xlu0 %475
    %v477 = vrot.slane %v476, 4
    %v478 = vadd.f32 %v476, %v477
    %v479 = vrot.slane %v478, 2
    %v480 = vadd.f32 %v478, %v479
    %v481 = vrot.slane %v480, 1
    %v482 = vadd.f32 %v480, %v481
    %s483 = vtos %v482
    %v484 = vstv %s483
    %v485 = vmul.f32 %v484, %v214
    %v486 = vsub.f32 %v189, %v485
    %v487 = vsub.f32 %v192, %v485
    %v488 = vmul.f32 %v486, %v486
    %v489 = vmul.f32 %v487, %v487
    %492 = vrot.lane.b32.xlu0 %v488, 92
    %v493 = vpop.permute.xlu0 %492
    %494 = vrot.lane.b32.xlu0 %v489, 92
    %v495 = vpop.permute.xlu0 %494
    %v498 = vsel %vm194, %v493, 0.0
    %v499 = vsel %vm194, %v495, 0.0
    %v500 = vadd.f32 %v498, %v499
    %501 = vadd.xlane.f32.xlu0 %v500
    %v502 = vpop.xlane.xlu0 %501
    %v503 = vrot.slane %v502, 4
    %v504 = vadd.f32 %v502, %v503
    %v505 = vrot.slane %v504, 2
    %v506 = vadd.f32 %v504, %v505
    %v507 = vrot.slane %v506, 1
    %v508 = vadd.f32 %v506, %v507
    %s509 = vtos %v508
    %v510 = vstv %s509
    %v511 = vmul.f32 %v510, %v214
    %v512 = vadd.f32 %v511, 1e-05
    %v513 = vrsqrt.pop %v512
    %v514 = vmul.f32 %v513, %v512
    %v515 = vmul.f32 %v514, %v513
    %v516 = vmul.f32 0.5, %v515
    %v517 = vsub.f32 1.5, %v516
    %v518 = vmul.f32 %v513, %v517
    %vm519 = vweird.f32 %v512
    %vm520 = vweird.f32 %v513
    %vm521 = vmor %vm519, %vm520
    %v522 = vsel %vm521, %v513, %v518
    %v523 = vmul.f32 %v486, %v522
    %v524 = vmul.f32 %v487, %v522
    %s525 = sld [smem:[#allocation5 + $0x4]]
    %v526 = vstv %s525
    %v527 = vmul.f32 %v523, %v526
    %v528 = vmul.f32 %v524, %v526
    %s529 = sld [smem:[#allocation8 + $0x4]]
    %v530 = vstv %s529
    %v531 = vadd.f32 %v527, %v530
    %v532 = vadd.f32 %v528, %v530
    %v533 = vmax.f32 %v531, 0.0
    %v534 = vmax.f32 %v532, 0.0
    %535 = vrot.lane.b32.xlu0 %v189, 83
    %v536 = vpop.permute.xlu0 %535
    %537 = vrot.lane.b32.xlu0 %v192, 83
    %v538 = vpop.permute.xlu0 %537
    %v541 = vsel %vm194, %v536, 0.0
    %v542 = vsel %vm194, %v538, 0.0
    %v543 = vadd.f32 %v541, %v542
    %544 = vadd.xlane.f32.xlu0 %v543
    %v545 = vpop.xlane.xlu0 %544
    %v546 = vrot.slane %v545, 4
    %v547 = vadd.f32 %v545, %v546
    %v548 = vrot.slane %v547, 2
    %v549 = vadd.f32 %v547, %v548
    %v550 = vrot.slane %v549, 1
    %v551 = vadd.f32 %v549, %v550
    %s552 = vtos %v551
    %v553 = vstv %s552
    %v554 = vmul.f32 %v553, %v214
    %v555 = vsub.f32 %v189, %v554
    %v556 = vsub.f32 %v192, %v554
    %v557 = vmul.f32 %v555, %v555
    %v558 = vmul.f32 %v556, %v556
    %561 = vrot.lane.b32.xlu0 %v557, 83
    %v562 = vpop.permute.xlu0 %561
    %563 = vrot.lane.b32.xlu0 %v558, 83
    %v564 = vpop.permute.xlu0 %563
    %v567 = vsel %vm194, %v562, 0.0
    %v568 = vsel %vm194, %v564, 0.0
    %v569 = vadd.f32 %v567, %v568
    %570 = vadd.xlane.f32.xlu0 %v569
    %v571 = vpop.xlane.xlu0 %570
    %v572 = vrot.slane %v571, 4
    %v573 = vadd.f32 %v571, %v572
    %v574 = vrot.slane %v573, 2
    %v575 = vadd.f32 %v573, %v574
    %v576 = vrot.slane %v575, 1
    %v577 = vadd.f32 %v575, %v576
    %s578 = vtos %v577
    %v579 = vstv %s578
    %v580 = vmul.f32 %v579, %v214
    %v581 = vadd.f32 %v580, 1e-05
    %v582 = vrsqrt.pop %v581
    %v583 = vmul.f32 %v582, %v581
    %v584 = vmul.f32 %v583, %v582
    %v585 = vmul.f32 0.5, %v584
    %v586 = vsub.f32 1.5, %v585
    %v587 = vmul.f32 %v582, %v586
    %vm588 = vweird.f32 %v581
    %vm589 = vweird.f32 %v582
    %vm590 = vmor %vm588, %vm589
    %v591 = vsel %vm590, %v582, %v587
    %v592 = vmul.f32 %v555, %v591
    %v593 = vmul.f32 %v556, %v591
    %s594 = sld [smem:[#allocation5 + $0x5]]
    %v595 = vstv %s594
    %v596 = vmul.f32 %v592, %v595
    %v597 = vmul.f32 %v593, %v595
    %s598 = sld [smem:[#allocation8 + $0x5]]
    %v599 = vstv %s598
    %v600 = vadd.f32 %v596, %v599
    %v601 = vadd.f32 %v597, %v599
    %v602 = vmax.f32 %v600, 0.0
    %v603 = vmax.f32 %v601, 0.0
    %604 = vrot.lane.b32.xlu0 %v189, 74
    %v605 = vpop.permute.xlu0 %604
    %606 = vrot.lane.b32.xlu0 %v192, 74
    %v607 = vpop.permute.xlu0 %606
    %v610 = vsel %vm194, %v605, 0.0
    %v611 = vsel %vm194, %v607, 0.0
    %v612 = vadd.f32 %v610, %v611
    %613 = vadd.xlane.f32.xlu0 %v612
    %v614 = vpop.xlane.xlu0 %613
    %v615 = vrot.slane %v614, 4
    %v616 = vadd.f32 %v614, %v615
    %v617 = vrot.slane %v616, 2
    %v618 = vadd.f32 %v616, %v617
    %v619 = vrot.slane %v618, 1
    %v620 = vadd.f32 %v618, %v619
    %s621 = vtos %v620
    %v622 = vstv %s621
    %v623 = vmul.f32 %v622, %v214
    %v624 = vsub.f32 %v189, %v623
    %v625 = vsub.f32 %v192, %v623
    %v626 = vmul.f32 %v624, %v624
    %v627 = vmul.f32 %v625, %v625
    %630 = vrot.lane.b32.xlu0 %v626, 74
    %v631 = vpop.permute.xlu0 %630
    %632 = vrot.lane.b32.xlu0 %v627, 74
    %v633 = vpop.permute.xlu0 %632
    %v636 = vsel %vm194, %v631, 0.0
    %v637 = vsel %vm194, %v633, 0.0
    %v638 = vadd.f32 %v636, %v637
    %639 = vadd.xlane.f32.xlu0 %v638
    %v640 = vpop.xlane.xlu0 %639
    %v641 = vrot.slane %v640, 4
    %v642 = vadd.f32 %v640, %v641
    %v643 = vrot.slane %v642, 2
    %v644 = vadd.f32 %v642, %v643
    %v645 = vrot.slane %v644, 1
    %v646 = vadd.f32 %v644, %v645
    %s647 = vtos %v646
    %v648 = vstv %s647
    %v649 = vmul.f32 %v648, %v214
    %v650 = vadd.f32 %v649, 1e-05
    %v651 = vrsqrt.pop %v650
    %v652 = vmul.f32 %v651, %v650
    %v653 = vmul.f32 %v652, %v651
    %v654 = vmul.f32 0.5, %v653
    %v655 = vsub.f32 1.5, %v654
    %v656 = vmul.f32 %v651, %v655
    %vm657 = vweird.f32 %v650
    %vm658 = vweird.f32 %v651
    %vm659 = vmor %vm657, %vm658
    %v660 = vsel %vm659, %v651, %v656
    %v661 = vmul.f32 %v624, %v660
    %v662 = vmul.f32 %v625, %v660
    %s663 = sld [smem:[#allocation5 + $0x6]]
    %v664 = vstv %s663
    %v665 = vmul.f32 %v661, %v664
    %v666 = vmul.f32 %v662, %v664
    %s667 = sld [smem:[#allocation8 + $0x6]]
    %v668 = vstv %s667
    %v669 = vadd.f32 %v665, %v668
    %v670 = vadd.f32 %v666, %v668
    %v671 = vmax.f32 %v669, 0.0
    %v672 = vmax.f32 %v670, 0.0
    %673 = vrot.lane.b32.xlu0 %v189, 65
    %v674 = vpop.permute.xlu0 %673
    %675 = vrot.lane.b32.xlu0 %v192, 65
    %v676 = vpop.permute.xlu0 %675
    %v679 = vsel %vm194, %v674, 0.0
    %v680 = vsel %vm194, %v676, 0.0
    %v681 = vadd.f32 %v679, %v680
    %682 = vadd.xlane.f32.xlu0 %v681
    %v683 = vpop.xlane.xlu0 %682
    %v684 = vrot.slane %v683, 4
    %v685 = vadd.f32 %v683, %v684
    %v686 = vrot.slane %v685, 2
    %v687 = vadd.f32 %v685, %v686
    %v688 = vrot.slane %v687, 1
    %v689 = vadd.f32 %v687, %v688
    %s690 = vtos %v689
    %v691 = vstv %s690
    %v692 = vmul.f32 %v691, %v214
    %v693 = vsub.f32 %v189, %v692
    %v694 = vsub.f32 %v192, %v692
    %v695 = vmul.f32 %v693, %v693
    %v696 = vmul.f32 %v694, %v694
    %699 = vrot.lane.b32.xlu0 %v695, 65
    %v700 = vpop.permute.xlu0 %699
    %701 = vrot.lane.b32.xlu0 %v696, 65
    %v702 = vpop.permute.xlu0 %701
    %v705 = vsel %vm194, %v700, 0.0
    %v706 = vsel %vm194, %v702, 0.0
    %v707 = vadd.f32 %v705, %v706
    %708 = vadd.xlane.f32.xlu0 %v707
    %v709 = vpop.xlane.xlu0 %708
    %v710 = vrot.slane %v709, 4
    %v711 = vadd.f32 %v709, %v710
    %v712 = vrot.slane %v711, 2
    %v713 = vadd.f32 %v711, %v712
    %v714 = vrot.slane %v713, 1
    %v715 = vadd.f32 %v713, %v714
    %s716 = vtos %v715
    %v717 = vstv %s716
    %v718 = vmul.f32 %v717, %v214
    %v719 = vadd.f32 %v718, 1e-05
    %v720 = vrsqrt.pop %v719
    %v721 = vmul.f32 %v720, %v719
    %v722 = vmul.f32 %v721, %v720
    %v723 = vmul.f32 0.5, %v722
    %v724 = vsub.f32 1.5, %v723
    %v725 = vmul.f32 %v720, %v724
    %vm726 = vweird.f32 %v719
    %vm727 = vweird.f32 %v720
    %vm728 = vmor %vm726, %vm727
    %v729 = vsel %vm728, %v720, %v725
    %v730 = vmul.f32 %v693, %v729
    %v731 = vmul.f32 %v694, %v729
    %s732 = sld [smem:[#allocation5 + $0x7]]
    %v733 = vstv %s732
    %v734 = vmul.f32 %v730, %v733
    %v735 = vmul.f32 %v731, %v733
    %s736 = sld [smem:[#allocation8 + $0x7]]
    %v737 = vstv %s736
    %v738 = vadd.f32 %v734, %v737
    %v739 = vadd.f32 %v735, %v737
    %v740 = vmax.f32 %v738, 0.0
    %v741 = vmax.f32 %v739, 0.0
    %v742 = vsel %vm194, %v255, %v326
    %v743 = vsel %vm194, %v256, %v327
    %vm744 = vcmask 146432
    %v745 = vsel %vm744, %v742, %v395
    %v746 = vsel %vm744, %v743, %v396
    %vm747 = vcmask 220160
    %v748 = vsel %vm747, %v745, %v464
    %v749 = vsel %vm747, %v746, %v465
    %vm750 = vcmask 293888
    %v751 = vsel %vm750, %v748, %v533
    %v752 = vsel %vm750, %v749, %v534
    %vm753 = vcmask 367616
    %v754 = vsel %vm753, %v751, %v602
    %v755 = vsel %vm753, %v752, %v603
    %vm756 = vcmask 441344
    %v757 = vsel %vm756, %v754, %v671
    %v758 = vsel %vm756, %v755, %v672
    %vm759 = vcmask 515072
    %v760 = vsel %vm759, %v757, %v740
    %v761 = vsel %vm759, %v758, %v741
    %v762 = vld [vmem:[%s3] sm:$0xff]
    %v763 = vld [vmem:[%s3 + $0x8] sm:$0xff]
    %v764 = vld [vmem:[%s3 + $0x10] sm:$0xff]
    %v765 = vld [vmem:[%s3 + $0x18] sm:$0xff]
    %v766 = vld [vmem:[%s3 + $0x20] sm:$0xff]
    %v767 = vld [vmem:[%s3 + $0x28] sm:$0xff]
    %v768 = vld [vmem:[%s3 + $0x30] sm:$0xff]
    %v769 = vld [vmem:[%s3 + $0x38] sm:$0xff]
    %v770 = vld [vmem:[%s3 + $0x40] sm:$0xff]
    %v771 = vld [vmem:[%s4] sm:$0x1]
    %v773 = vperm.slane %v771, 0
    %vm775 = vcmask 588800
    %v777 = vsel %vm775, %v760, 0
    %v780 = vsel %vm775, %v761, 0
    %782 = vmatpush.msra.mxu0 0.0
    %783 = vmatpush.msra.mxu0 0.0
    %784 = vmatpush.msra.mxu0 0.0
    %785 = vmatpush.msra.mxu0 0.0
    %786 = vmatpush.msra.mxu0 0.0
    %787 = vmatpush.msra.mxu0 0.0
    %788 = vmatpush.msra.mxu0 0.0
    %789 = vmatpush.msra.mxu0 %v770
    %790 = vmatpush.msra.mxu0 %v769
    %791 = vmatpush.msra.mxu0 %v768
    %792 = vmatpush.msra.mxu0 %v767
    %793 = vmatpush.msra.mxu0 %v766
    %794 = vmatpush.msra.mxu0 %v765
    %795 = vmatpush.msra.mxu0 %v764
    %796 = vmatpush.msra.mxu0 %v763
    %797 = vmatpush.msra.mxu0 %v762
    %798 = vmatmul.f32.gmra.mxu0 %v777
    %v799 = vpop.f32.mrf.mxu0
    %v800 = vadd.f32 %v773, %v799
    %801 = vmatmul.f32.gmra.mxu0 %v780
    %v802 = vpop.f32.mrf.mxu0
    %v803 = vadd.f32 %v773, %v802
    %804 = vdwg.mxu0
    %vm805 = vcmask 23552
    %v806 = vsel %vm805, %v800, 0.0
    %v807 = vsel %vm805, %v803, 0.0
    %v808 = vadd.f32 %v806, %v807
    %809 = vadd.xlane.f32.xlu0 %v808
    %v810 = vpop.xlane.xlu0 %809
    %v811 = vrot.slane %v810, 4
    %v812 = vadd.f32 %v810, %v811
    %v813 = vrot.slane %v812, 2
    %v814 = vadd.f32 %v812, %v813
    %v815 = vrot.slane %v814, 1
    %v816 = vadd.f32 %v814, %v815
    %s817 = vtos %v816
    %v818 = vstv %s817
    %v819 = vrcp.pop 48.0
    %v820 = vmul.f32 48.0, %v819
    %v821 = vsub.f32 1.0, %v820
    %v822 = vmul.f32 %v819, %v821
    %v823 = vadd.f32 %v819, %v822
    %vm824 = vweird.f32 %v819
    %v825 = vsel %vm824, %v819, %v823
    %v826 = vmul.f32 %v818, %v825
    %v827 = vsub.f32 %v800, %v826
    %v828 = vsub.f32 %v803, %v826
    %v829 = vmul.f32 %v827, %v827
    %v830 = vmul.f32 %v828, %v828
    %v831 = vsel %vm805, %v829, 0.0
    %v832 = vsel %vm805, %v830, 0.0
    %v833 = vadd.f32 %v831, %v832
    %834 = vadd.xlane.f32.xlu0 %v833
    %v835 = vpop.xlane.xlu0 %834
    %v836 = vrot.slane %v835, 4
    %v837 = vadd.f32 %v835, %v836
    %v838 = vrot.slane %v837, 2
    %v839 = vadd.f32 %v837, %v838
    %v840 = vrot.slane %v839, 1
    %v841 = vadd.f32 %v839, %v840
    %s842 = vtos %v841
    %v843 = vstv %s842
    %v844 = vmul.f32 %v843, %v825
    %v845 = vadd.f32 %v844, 1e-05
    %v846 = vrsqrt.pop %v845
    %v847 = vmul.f32 %v846, %v845
    %v848 = vmul.f32 %v847, %v846
    %v849 = vmul.f32 0.5, %v848
    %v850 = vsub.f32 1.5, %v849
    %v851 = vmul.f32 %v846, %v850
    %vm852 = vweird.f32 %v845
    %vm853 = vweird.f32 %v846
    %vm854 = vmor %vm852, %vm853
    %v855 = vsel %vm854, %v846, %v851
    %v856 = vmul.f32 %v827, %v855
    %v857 = vmul.f32 %v828, %v855
    %s858 = sld [smem:[#allocation10]]
    %v859 = vstv %s858
    %v860 = vmul.f32 %v856, %v859
    %v861 = vmul.f32 %v857, %v859
    %s862 = sld [smem:[#allocation11]]
    %v863 = vstv %s862
    %v864 = vadd.f32 %v860, %v863
    %v865 = vadd.f32 %v861, %v863
    %v866 = vmax.f32 %v864, 0.0
    %v867 = vmax.f32 %v865, 0.0
    %870 = vrot.lane.b32.xlu0 %v800, 125
    %v871 = vpop.permute.xlu0 %870
    %872 = vrot.lane.b32.xlu0 %v803, 125
    %v873 = vpop.permute.xlu0 %872
    %v876 = vsel %vm805, %v871, 0.0
    %v877 = vsel %vm805, %v873, 0.0
    %v878 = vadd.f32 %v876, %v877
    %879 = vadd.xlane.f32.xlu0 %v878
    %v880 = vpop.xlane.xlu0 %879
    %v881 = vrot.slane %v880, 4
    %v882 = vadd.f32 %v880, %v881
    %v883 = vrot.slane %v882, 2
    %v884 = vadd.f32 %v882, %v883
    %v885 = vrot.slane %v884, 1
    %v886 = vadd.f32 %v884, %v885
    %s887 = vtos %v886
    %v888 = vstv %s887
    %v889 = vmul.f32 %v888, %v825
    %v890 = vsub.f32 %v800, %v889
    %v891 = vsub.f32 %v803, %v889
    %v892 = vmul.f32 %v890, %v890
    %v893 = vmul.f32 %v891, %v891
    %896 = vrot.lane.b32.xlu0 %v892, 125
    %v897 = vpop.permute.xlu0 %896
    %898 = vrot.lane.b32.xlu0 %v893, 125
    %v899 = vpop.permute.xlu0 %898
    %v902 = vsel %vm805, %v897, 0.0
    %v903 = vsel %vm805, %v899, 0.0
    %v904 = vadd.f32 %v902, %v903
    %905 = vadd.xlane.f32.xlu0 %v904
    %v906 = vpop.xlane.xlu0 %905
    %v907 = vrot.slane %v906, 4
    %v908 = vadd.f32 %v906, %v907
    %v909 = vrot.slane %v908, 2
    %v910 = vadd.f32 %v908, %v909
    %v911 = vrot.slane %v910, 1
    %v912 = vadd.f32 %v910, %v911
    %s913 = vtos %v912
    %v914 = vstv %s913
    %v915 = vmul.f32 %v914, %v825
    %v916 = vadd.f32 %v915, 1e-05
    %v917 = vrsqrt.pop %v916
    %v918 = vmul.f32 %v917, %v916
    %v919 = vmul.f32 %v918, %v917
    %v920 = vmul.f32 0.5, %v919
    %v921 = vsub.f32 1.5, %v920
    %v922 = vmul.f32 %v917, %v921
    %vm923 = vweird.f32 %v916
    %vm924 = vweird.f32 %v917
    %vm925 = vmor %vm923, %vm924
    %v926 = vsel %vm925, %v917, %v922
    %v927 = vmul.f32 %v890, %v926
    %v928 = vmul.f32 %v891, %v926
    %s929 = sld [smem:[#allocation10 + $0x1]]
    %v930 = vstv %s929
    %v931 = vmul.f32 %v927, %v930
    %v932 = vmul.f32 %v928, %v930
    %s933 = sld [smem:[#allocation11 + $0x1]]
    %v934 = vstv %s933
    %v935 = vadd.f32 %v931, %v934
    %v936 = vadd.f32 %v932, %v934
    %v937 = vmax.f32 %v935, 0.0
    %v938 = vmax.f32 %v936, 0.0
    %939 = vrot.lane.b32.xlu0 %v800, 122
    %v940 = vpop.permute.xlu0 %939
    %941 = vrot.lane.b32.xlu0 %v803, 122
    %v942 = vpop.permute.xlu0 %941
    %v945 = vsel %vm805, %v940, 0.0
    %v946 = vsel %vm805, %v942, 0.0
    %v947 = vadd.f32 %v945, %v946
    %948 = vadd.xlane.f32.xlu0 %v947
    %v949 = vpop.xlane.xlu0 %948
    %v950 = vrot.slane %v949, 4
    %v951 = vadd.f32 %v949, %v950
    %v952 = vrot.slane %v951, 2
    %v953 = vadd.f32 %v951, %v952
    %v954 = vrot.slane %v953, 1
    %v955 = vadd.f32 %v953, %v954
    %s956 = vtos %v955
    %v957 = vstv %s956
    %v958 = vmul.f32 %v957, %v825
    %v959 = vsub.f32 %v800, %v958
    %v960 = vsub.f32 %v803, %v958
    %v961 = vmul.f32 %v959, %v959
    %v962 = vmul.f32 %v960, %v960
    %965 = vrot.lane.b32.xlu0 %v961, 122
    %v966 = vpop.permute.xlu0 %965
    %967 = vrot.lane.b32.xlu0 %v962, 122
    %v968 = vpop.permute.xlu0 %967
    %v971 = vsel %vm805, %v966, 0.0
    %v972 = vsel %vm805, %v968, 0.0
    %v973 = vadd.f32 %v971, %v972
    %974 = vadd.xlane.f32.xlu0 %v973
    %v975 = vpop.xlane.xlu0 %974
    %v976 = vrot.slane %v975, 4
    %v977 = vadd.f32 %v975, %v976
    %v978 = vrot.slane %v977, 2
    %v979 = vadd.f32 %v977, %v978
    %v980 = vrot.slane %v979, 1
    %v981 = vadd.f32 %v979, %v980
    %s982 = vtos %v981
    %v983 = vstv %s982
    %v984 = vmul.f32 %v983, %v825
    %v985 = vadd.f32 %v984, 1e-05
    %v986 = vrsqrt.pop %v985
    %v987 = vmul.f32 %v986, %v985
    %v988 = vmul.f32 %v987, %v986
    %v989 = vmul.f32 0.5, %v988
    %v990 = vsub.f32 1.5, %v989
    %v991 = vmul.f32 %v986, %v990
    %vm992 = vweird.f32 %v985
    %vm993 = vweird.f32 %v986
    %vm994 = vmor %vm992, %vm993
    %v995 = vsel %vm994, %v986, %v991
    %v996 = vmul.f32 %v959, %v995
    %v997 = vmul.f32 %v960, %v995
    %s998 = sld [smem:[#allocation10 + $0x2]]
    %v999 = vstv %s998
    %v1000 = vmul.f32 %v996, %v999
    %v1001 = vmul.f32 %v997, %v999
    %s1002 = sld [smem:[#allocation11 + $0x2]]
    %v1003 = vstv %s1002
    %v1004 = vadd.f32 %v1000, %v1003
    %v1005 = vadd.f32 %v1001, %v1003
    %v1006 = vmax.f32 %v1004, 0.0
    %v1007 = vmax.f32 %v1005, 0.0
    %1008 = vrot.lane.b32.xlu0 %v800, 119
    %v1009 = vpop.permute.xlu0 %1008
    %1010 = vrot.lane.b32.xlu0 %v803, 119
    %v1011 = vpop.permute.xlu0 %1010
    %v1014 = vsel %vm805, %v1009, 0.0
    %v1015 = vsel %vm805, %v1011, 0.0
    %v1016 = vadd.f32 %v1014, %v1015
    %1017 = vadd.xlane.f32.xlu0 %v1016
    %v1018 = vpop.xlane.xlu0 %1017
    %v1019 = vrot.slane %v1018, 4
    %v1020 = vadd.f32 %v1018, %v1019
    %v1021 = vrot.slane %v1020, 2
    %v1022 = vadd.f32 %v1020, %v1021
    %v1023 = vrot.slane %v1022, 1
    %v1024 = vadd.f32 %v1022, %v1023
    %s1025 = vtos %v1024
    %v1026 = vstv %s1025
    %v1027 = vmul.f32 %v1026, %v825
    %v1028 = vsub.f32 %v800, %v1027
    %v1029 = vsub.f32 %v803, %v1027
    %v1030 = vmul.f32 %v1028, %v1028
    %v1031 = vmul.f32 %v1029, %v1029
    %1034 = vrot.lane.b32.xlu0 %v1030, 119
    %v1035 = vpop.permute.xlu0 %1034
    %1036 = vrot.lane.b32.xlu0 %v1031, 119
    %v1037 = vpop.permute.xlu0 %1036
    %v1040 = vsel %vm805, %v1035, 0.0
    %v1041 = vsel %vm805, %v1037, 0.0
    %v1042 = vadd.f32 %v1040, %v1041
    %1043 = vadd.xlane.f32.xlu0 %v1042
    %v1044 = vpop.xlane.xlu0 %1043
    %v1045 = vrot.slane %v1044, 4
    %v1046 = vadd.f32 %v1044, %v1045
    %v1047 = vrot.slane %v1046, 2
    %v1048 = vadd.f32 %v1046, %v1047
    %v1049 = vrot.slane %v1048, 1
    %v1050 = vadd.f32 %v1048, %v1049
    %s1051 = vtos %v1050
    %v1052 = vstv %s1051
    %v1053 = vmul.f32 %v1052, %v825
    %v1054 = vadd.f32 %v1053, 1e-05
    %v1055 = vrsqrt.pop %v1054
    %v1056 = vmul.f32 %v1055, %v1054
    %v1057 = vmul.f32 %v1056, %v1055
    %v1058 = vmul.f32 0.5, %v1057
    %v1059 = vsub.f32 1.5, %v1058
    %v1060 = vmul.f32 %v1055, %v1059
    %vm1061 = vweird.f32 %v1054
    %vm1062 = vweird.f32 %v1055
    %vm1063 = vmor %vm1061, %vm1062
    %v1064 = vsel %vm1063, %v1055, %v1060
    %v1065 = vmul.f32 %v1028, %v1064
    %v1066 = vmul.f32 %v1029, %v1064
    %s1067 = sld [smem:[#allocation10 + $0x3]]
    %v1068 = vstv %s1067
    %v1069 = vmul.f32 %v1065, %v1068
    %v1070 = vmul.f32 %v1066, %v1068
    %s1071 = sld [smem:[#allocation11 + $0x3]]
    %v1072 = vstv %s1071
    %v1073 = vadd.f32 %v1069, %v1072
    %v1074 = vadd.f32 %v1070, %v1072
    %v1075 = vmax.f32 %v1073, 0.0
    %v1076 = vmax.f32 %v1074, 0.0
    %v1077 = vsel %vm805, %v866, %v937
    %v1078 = vsel %vm805, %v867, %v938
    %vm1079 = vcmask 48128
    %v1080 = vsel %vm1079, %v1077, %v1006
    %v1081 = vsel %vm1079, %v1078, %v1007
    %v1082 = vsel %vm194, %v1080, %v1075
    %v1083 = vsel %vm194, %v1081, %v1076
    %v1084 = vld [vmem:[%s7] sm:$0x1]
    %v1086 = vperm.slane %v1084, 0
    %s1088 = sld [smem:[#allocation2]]
    %v1089 = vld [vmem:[%s5] sm:$0xff]
    %v1090 = vld [vmem:[%s5 + $0x8] sm:$0xff]
    %v1091 = vld [vmem:[%s5 + $0x10] sm:$0xff]
    %v1092 = vld [vmem:[%s5 + $0x18] sm:$0xf]
    %v1093 = vld [vmem:[%s6] sm:$0x1]
    %v1095 = vperm.slane %v1093, 0
    %s1097 = sld [smem:[#allocation13]]
    %v1098 = vstv %s1097
    %v1099 = vmul.f32 %v1098, %v1082
    %s1100 = sld [smem:[#allocation13 + $0x1]]
    %v1101 = vstv %s1100
    %v1102 = vmul.f32 %v1101, %v1082
    %v1104 = vrot.slane %v1102, 2
    %v1106 = vadd.f32 %v1099, %v1104
    %s1107 = sld [smem:[#allocation13 + $0x2]]
    %v1108 = vstv %s1107
    %v1109 = vmul.f32 %v1108, %v1082
    %v1111 = vrot.slane %v1109, 4
    %v1113 = vadd.f32 %v1106, %v1111
    %s1114 = sld [smem:[#allocation13 + $0x3]]
    %v1115 = vstv %s1114
    %v1116 = vmul.f32 %v1115, %v1082
    %v1118 = vrot.slane %v1116, 6
    %v1120 = vadd.f32 %v1113, %v1118
    %s1121 = sld [smem:[#allocation13 + $0x4]]
    %v1122 = vstv %s1121
    %v1123 = vmul.f32 %v1122, %v1083
    %v1124 = vadd.f32 %v1120, %v1123
    %s1125 = sld [smem:[#allocation13 + $0x5]]
    %v1126 = vstv %s1125
    %v1127 = vmul.f32 %v1126, %v1083
    %v1129 = vrot.slane %v1127, 2
    %v1131 = vadd.f32 %v1124, %v1129
    %s1132 = sld [smem:[#allocation13 + $0x6]]
    %v1133 = vstv %s1132
    %v1134 = vmul.f32 %v1133, %v1083
    %v1136 = vrot.slane %v1134, 4
    %v1138 = vadd.f32 %v1131, %v1136
    %s1139 = sld [smem:[#allocation13 + $0x7]]
    %v1140 = vstv %s1139
    %v1141 = vmul.f32 %v1140, %v1083
    %v1143 = vrot.slane %v1141, 6
    %v1145 = vadd.f32 %v1138, %v1143
    %v1146 = vmul.f32 %v1086, 0.0
    %1148 = vrot.lane.b32.xlu0 %v1146, 112
    %v1149 = vpop.permute.xlu0 %1148
    %v1151 = vadd.f32 %v1146, %v1149
    %vm1152 = vcmask 123904
    %v1153 = vsel %vm1152, %v1151, 0.0
    %1154 = vadd.xlane.f32.xlu0 %v1153
    %v1155 = vpop.xlane.xlu0 %1154
    %v1156 = vadd.f32 %v1155, %v1145
    %v1157 = vstv %s1088
    %v1158 = vadd.f32 %v1156, %v1157
    %vm1159 = vcmask 91136
    %v1160 = vsel %vm1159, %v1158, -inf
    %1161 = vmax.xlane.f32.xlu0 %v1160
    %v1162 = vpop.xlane.xlu0 %1161
    %v1163 = vsub.f32 %v1158, %v1162
    %v1164 = vmul.f32 %v1163, 1.442695
    %v1165 = vpow.pop %v1164
    %v1166 = vsel %vm1159, %v1165, 0.0
    %1167 = vadd.xlane.f32.xlu0 %v1166
    %v1168 = vpop.xlane.xlu0 %1167
    %v1169 = vrcp.pop %v1168
    %v1170 = vmul.f32 %v1165, %v1169
    %v1171 = vmul.f32 %v1170, %v1082
    %vm1172 = vcmask 97280
    %v1173 = vsel %vm1172, %v1171, 0.0
    %vm1174 = vcmask 228352
    %v1176 = vsel %vm1174, %v1173, 0
    %vm1178 = vcmask 1043456
    %v1180 = vsel %vm1178, %v1092, 0
    %1182 = vmatpush.msra.mxu0 0.0
    %1183 = vmatpush.msra.mxu0 0.0
    %1184 = vmatpush.msra.mxu0 0.0
    %1185 = vmatpush.msra.mxu0 0.0
    %1186 = vmatpush.msra.mxu0 0.0
    %1187 = vmatpush.msra.mxu0 0.0
    %1188 = vmatpush.msra.mxu0 0.0
    %1189 = vmatpush.msra.mxu0 0.0
    %1190 = vmatpush.msra.mxu0 0.0
    %1191 = vmatpush.msra.mxu0 0.0
    %1192 = vmatpush.msra.mxu0 0.0
    %1193 = vmatpush.msra.mxu0 0.0
    %1194 = vmatpush.msra.mxu0 %v1180
    %1195 = vmatpush.msra.mxu0 %v1091
    %1196 = vmatpush.msra.mxu0 %v1090
    %1197 = vmatpush.msra.mxu0 %v1089
    %1198 = vmatmul.f32.gmra.mxu0 %v1176
    %v1199 = vpop.f32.mrf.mxu0
    %v1200 = vadd.f32 %v1095, %v1199
    %1201 = vdwg.mxu0
    %v1202 = vmul.f32 %v1200, 0.5
    %v1203 = vtanh.pop %v1202
    %v1204 = vadd.f32 %v1203, 1.0
    %v1205 = vmul.f32 %v1204, 0.5
    %v1206 = vtanh.pop %v1200
    %v1207 = vmul.f32 %v1205, 0.0
    %1209 = vrot.lane.b32.xlu0 %v1206, 96
    %v1210 = vpop.permute.xlu0 %1209
    %v1212 = vmul.f32 %v1205, %v1210
    %1214 = vrot.lane.b32.xlu0 %v1212, 16
    %v1215 = vpop.permute.xlu0 %1214
    %v1217 = vadd.f32 %v1207, %v1215
    %v1218 = vtanh.pop %v1217
    %1220 = vrot.lane.b32.xlu0 %v1218, 32
    %v1221 = vpop.permute.xlu0 %1220
    %v1223 = vmul.f32 %v1205, %v1221
    %1224 = vrot.lane.b32.xlu0 %v1086, 48
    %v1225 = vpop.permute.xlu0 %1224
    %v1227 = vmul.f32 %v1223, %v1225
    %v1228 = vmul.f32 %v1217, %v1086
    %1230 = vrot.lane.b32.xlu0 %v1228, 32
    %v1231 = vpop.permute.xlu0 %1230
    %v1233 = vadd.f32 %v1227, %v1231
    %1235 = vrot.lane.b32.xlu0 %v1233, 80
    %v1236 = vpop.permute.xlu0 %1235
    %v1238 = vsel %vm1152, %v1236, 0.0
    %1239 = vadd.xlane.f32.xlu0 %v1238
    %v1240 = vpop.xlane.xlu0 %1239
    %v1241 = vadd.f32 %v1240, %v1145
    %v1242 = vadd.f32 %v1241, %v1157
    %v1243 = vsel %vm1159, %v1242, -inf
    %1244 = vmax.xlane.f32.xlu0 %v1243
    %v1245 = vpop.xlane.xlu0 %1244
    %v1246 = vsub.f32 %v1242, %v1245
    %v1247 = vmul.f32 %v1246, 1.442695
    %v1248 = vpow.pop %v1247
    %v1249 = vsel %vm1159, %v1248, 0.0
    %1250 = vadd.xlane.f32.xlu0 %v1249
    %v1251 = vpop.xlane.xlu0 %1250
    %v1252 = vrcp.pop %v1251
    %v1253 = vmul.f32 %v1248, %v1252
    %v1255 = vrot.slane %v1082, 2
    %v1257 = vmul.f32 %v1253, %v1255
    %1259 = vrot.lane.b32.xlu0 %v1223, 92
    %v1260 = vpop.permute.xlu0 %1259
    %v1262 = vsel %vm1172, %v1257, %v1260
    %v1264 = vsel %vm1174, %v1262, 0
    %1266 = vmatpush.msra.mxu0 0.0
    %1267 = vmatpush.msra.mxu0 0.0
    %1268 = vmatpush.msra.mxu0 0.0
    %1269 = vmatpush.msra.mxu0 0.0
    %1270 = vmatpush.msra.mxu0 0.0
    %1271 = vmatpush.msra.mxu0 0.0
    %1272 = vmatpush.msra.mxu0 0.0
    %1273 = vmatpush.msra.mxu0 0.0
    %1274 = vmatpush.msra.mxu0 0.0
    %1275 = vmatpush.msra.mxu0 0.0
    %1276 = vmatpush.msra.mxu0 0.0
    %1277 = vmatpush.msra.mxu0 0.0
    %1278 = vmatpush.msra.mxu0 %v1180
    %1279 = vmatpush.msra.mxu0 %v1091
    %1280 = vmatpush.msra.mxu0 %v1090
    %1281 = vmatpush.msra.mxu0 %v1089
    %1282 = vmatmul.f32.gmra.mxu0 %v1264
    %v1283 = vpop.f32.mrf.mxu0
    %v1284 = vadd.f32 %v1095, %v1283
    %1285 = vdwg.mxu0
    %v1286 = vmul.f32 %v1284, 0.5
    %v1287 = vtanh.pop %v1286
    %v1288 = vadd.f32 %v1287, 1.0
    %v1289 = vmul.f32 %v1288, 0.5
    %v1290 = vtanh.pop %v1284
    %v1291 = vmul.f32 %v1289, %v1217
    %1293 = vrot.lane.b32.xlu0 %v1290, 96
    %v1294 = vpop.permute.xlu0 %1293
    %v1296 = vmul.f32 %v1289, %v1294
    %1298 = vrot.lane.b32.xlu0 %v1296, 16
    %v1299 = vpop.permute.xlu0 %1298
    %v1301 = vadd.f32 %v1291, %v1299
    %v1302 = vtanh.pop %v1301
    %1304 = vrot.lane.b32.xlu0 %v1302, 32
    %v1305 = vpop.permute.xlu0 %1304
    %v1307 = vmul.f32 %v1289, %v1305
    %v1308 = vmul.f32 %v1307, %v1225
    %v1309 = vmul.f32 %v1301, %v1086
    %1311 = vrot.lane.b32.xlu0 %v1309, 32
    %v1312 = vpop.permute.xlu0 %1311
    %v1314 = vadd.f32 %v1308, %v1312
    %1316 = vrot.lane.b32.xlu0 %v1314, 80
    %v1317 = vpop.permute.xlu0 %1316
    %v1319 = vsel %vm1152, %v1317, 0.0
    %1320 = vadd.xlane.f32.xlu0 %v1319
    %v1321 = vpop.xlane.xlu0 %1320
    %v1322 = vadd.f32 %v1321, %v1145
    %v1323 = vadd.f32 %v1322, %v1157
    %v1324 = vsel %vm1159, %v1323, -inf
    %1325 = vmax.xlane.f32.xlu0 %v1324
    %v1326 = vpop.xlane.xlu0 %1325
    %v1327 = vsub.f32 %v1323, %v1326
    %v1328 = vmul.f32 %v1327, 1.442695
    %v1329 = vpow.pop %v1328
    %v1330 = vsel %vm1159, %v1329, 0.0
    %1331 = vadd.xlane.f32.xlu0 %v1330
    %v1332 = vpop.xlane.xlu0 %1331
    %v1333 = vrcp.pop %v1332
    %v1334 = vmul.f32 %v1329, %v1333
    %v1335 = vrot.slane %v1082, 4
    %v1337 = vmul.f32 %v1334, %v1335
    %1339 = vrot.lane.b32.xlu0 %v1307, 92
    %v1340 = vpop.permute.xlu0 %1339
    %v1342 = vsel %vm1172, %v1337, %v1340
    %v1344 = vsel %vm1174, %v1342, 0
    %1346 = vmatpush.msra.mxu0 0.0
    %1347 = vmatpush.msra.mxu0 0.0
    %1348 = vmatpush.msra.mxu0 0.0
    %1349 = vmatpush.msra.mxu0 0.0
    %1350 = vmatpush.msra.mxu0 0.0
    %1351 = vmatpush.msra.mxu0 0.0
    %1352 = vmatpush.msra.mxu0 0.0
    %1353 = vmatpush.msra.mxu0 0.0
    %1354 = vmatpush.msra.mxu0 0.0
    %1355 = vmatpush.msra.mxu0 0.0
    %1356 = vmatpush.msra.mxu0 0.0
    %1357 = vmatpush.msra.mxu0 0.0
    %1358 = vmatpush.msra.mxu0 %v1180
    %1359 = vmatpush.msra.mxu0 %v1091
    %1360 = vmatpush.msra.mxu0 %v1090
    %1361 = vmatpush.msra.mxu0 %v1089
    %1362 = vmatmul.f32.gmra.mxu0 %v1344
    %v1363 = vpop.f32.mrf.mxu0
    %v1364 = vadd.f32 %v1095, %v1363
    %1365 = vdwg.mxu0
    %v1366 = vmul.f32 %v1364, 0.5
    %v1367 = vtanh.pop %v1366
    %v1368 = vadd.f32 %v1367, 1.0
    %v1369 = vmul.f32 %v1368, 0.5
    %v1370 = vtanh.pop %v1364
    %v1371 = vmul.f32 %v1369, %v1301
    %1373 = vrot.lane.b32.xlu0 %v1370, 96
    %v1374 = vpop.permute.xlu0 %1373
    %v1376 = vmul.f32 %v1369, %v1374
    %1378 = vrot.lane.b32.xlu0 %v1376, 16
    %v1379 = vpop.permute.xlu0 %1378
    %v1381 = vadd.f32 %v1371, %v1379
    %v1382 = vtanh.pop %v1381
    %1384 = vrot.lane.b32.xlu0 %v1382, 32
    %v1385 = vpop.permute.xlu0 %1384
    %v1387 = vmul.f32 %v1369, %v1385
    %v1388 = vmul.f32 %v1387, %v1225
    %v1389 = vmul.f32 %v1381, %v1086
    %1391 = vrot.lane.b32.xlu0 %v1389, 32
    %v1392 = vpop.permute.xlu0 %1391
    %v1394 = vadd.f32 %v1388, %v1392
    %1396 = vrot.lane.b32.xlu0 %v1394, 80
    %v1397 = vpop.permute.xlu0 %1396
    %v1399 = vsel %vm1152, %v1397, 0.0
    %1400 = vadd.xlane.f32.xlu0 %v1399
    %v1401 = vpop.xlane.xlu0 %1400
    %v1402 = vadd.f32 %v1401, %v1145
    %v1403 = vadd.f32 %v1402, %v1157
    %v1404 = vsel %vm1159, %v1403, -inf
    %1405 = vmax.xlane.f32.xlu0 %v1404
    %v1406 = vpop.xlane.xlu0 %1405
    %v1407 = vsub.f32 %v1403, %v1406
    %v1408 = vmul.f32 %v1407, 1.442695
    %v1409 = vpow.pop %v1408
    %v1410 = vsel %vm1159, %v1409, 0.0
    %1411 = vadd.xlane.f32.xlu0 %v1410
    %v1412 = vpop.xlane.xlu0 %1411
    %v1413 = vrcp.pop %v1412
    %v1414 = vmul.f32 %v1409, %v1413
    %v1415 = vrot.slane %v1082, 6
    %v1417 = vmul.f32 %v1414, %v1415
    %1419 = vrot.lane.b32.xlu0 %v1387, 92
    %v1420 = vpop.permute.xlu0 %1419
    %v1422 = vsel %vm1172, %v1417, %v1420
    %v1424 = vsel %vm1174, %v1422, 0
    %1426 = vmatpush.msra.mxu0 0.0
    %1427 = vmatpush.msra.mxu0 0.0
    %1428 = vmatpush.msra.mxu0 0.0
    %1429 = vmatpush.msra.mxu0 0.0
    %1430 = vmatpush.msra.mxu0 0.0
    %1431 = vmatpush.msra.mxu0 0.0
    %1432 = vmatpush.msra.mxu0 0.0
    %1433 = vmatpush.msra.mxu0 0.0
    %1434 = vmatpush.msra.mxu0 0.0
    %1435 = vmatpush.msra.mxu0 0.0
    %1436 = vmatpush.msra.mxu0 0.0
    %1437 = vmatpush.msra.mxu0 0.0
    %1438 = vmatpush.msra.mxu0 %v1180
    %1439 = vmatpush.msra.mxu0 %v1091
    %1440 = vmatpush.msra.mxu0 %v1090
    %1441 = vmatpush.msra.mxu0 %v1089
    %1442 = vmatmul.f32.gmra.mxu0 %v1424
    %v1443 = vpop.f32.mrf.mxu0
    %v1444 = vadd.f32 %v1095, %v1443
    %1445 = vdwg.mxu0
    %v1446 = vmul.f32 %v1444, 0.5
    %v1447 = vtanh.pop %v1446
    %v1448 = vadd.f32 %v1447, 1.0
    %v1449 = vmul.f32 %v1448, 0.5
    %v1450 = vtanh.pop %v1444
    %v1451 = vmul.f32 %v1449, %v1381
    %1453 = vrot.lane.b32.xlu0 %v1450, 96
    %v1454 = vpop.permute.xlu0 %1453
    %v1456 = vmul.f32 %v1449, %v1454
    %1458 = vrot.lane.b32.xlu0 %v1456, 16
    %v1459 = vpop.permute.xlu0 %1458
    %v1461 = vadd.f32 %v1451, %v1459
    %v1462 = vtanh.pop %v1461
    %1464 = vrot.lane.b32.xlu0 %v1462, 32
    %v1465 = vpop.permute.xlu0 %1464
    %v1467 = vmul.f32 %v1449, %v1465
    %v1468 = vmul.f32 %v1467, %v1225
    %v1469 = vmul.f32 %v1461, %v1086
    %1471 = vrot.lane.b32.xlu0 %v1469, 32
    %v1472 = vpop.permute.xlu0 %1471
    %v1474 = vadd.f32 %v1468, %v1472
    %1476 = vrot.lane.b32.xlu0 %v1474, 80
    %v1477 = vpop.permute.xlu0 %1476
    %v1479 = vsel %vm1152, %v1477, 0.0
    %1480 = vadd.xlane.f32.xlu0 %v1479
    %v1481 = vpop.xlane.xlu0 %1480
    %v1482 = vadd.f32 %v1481, %v1145
    %v1483 = vadd.f32 %v1482, %v1157
    %v1484 = vsel %vm1159, %v1483, -inf
    %1485 = vmax.xlane.f32.xlu0 %v1484
    %v1486 = vpop.xlane.xlu0 %1485
    %v1487 = vsub.f32 %v1483, %v1486
    %v1488 = vmul.f32 %v1487, 1.442695
    %v1489 = vpow.pop %v1488
    %v1490 = vsel %vm1159, %v1489, 0.0
    %1491 = vadd.xlane.f32.xlu0 %v1490
    %v1492 = vpop.xlane.xlu0 %1491
    %v1493 = vrcp.pop %v1492
    %v1494 = vmul.f32 %v1489, %v1493
    %v1495 = vmul.f32 %v1494, %v1083
    %1497 = vrot.lane.b32.xlu0 %v1467, 92
    %v1498 = vpop.permute.xlu0 %1497
    %v1500 = vsel %vm1172, %v1495, %v1498
    %v1502 = vsel %vm1174, %v1500, 0
    %1504 = vmatpush.msra.mxu0 0.0
    %1505 = vmatpush.msra.mxu0 0.0
    %1506 = vmatpush.msra.mxu0 0.0
    %1507 = vmatpush.msra.mxu0 0.0
    %1508 = vmatpush.msra.mxu0 0.0
    %1509 = vmatpush.msra.mxu0 0.0
    %1510 = vmatpush.msra.mxu0 0.0
    %1511 = vmatpush.msra.mxu0 0.0
    %1512 = vmatpush.msra.mxu0 0.0
    %1513 = vmatpush.msra.mxu0 0.0
    %1514 = vmatpush.msra.mxu0 0.0
    %1515 = vmatpush.msra.mxu0 0.0
    %1516 = vmatpush.msra.mxu0 %v1180
    %1517 = vmatpush.msra.mxu0 %v1091
    %1518 = vmatpush.msra.mxu0 %v1090
    %1519 = vmatpush.msra.mxu0 %v1089
    %1520 = vmatmul.f32.gmra.mxu0 %v1502
    %v1521 = vpop.f32.mrf.mxu0
    %v1522 = vadd.f32 %v1095, %v1521
    %1523 = vdwg.mxu0
    %v1524 = vmul.f32 %v1522, 0.5
    %v1525 = vtanh.pop %v1524
    %v1526 = vadd.f32 %v1525, 1.0
    %v1527 = vmul.f32 %v1526, 0.5
    %v1528 = vtanh.pop %v1522
    %v1529 = vmul.f32 %v1527, %v1461
    %1531 = vrot.lane.b32.xlu0 %v1528, 96
    %v1532 = vpop.permute.xlu0 %1531
    %v1534 = vmul.f32 %v1527, %v1532
    %1536 = vrot.lane.b32.xlu0 %v1534, 16
    %v1537 = vpop.permute.xlu0 %1536
    %v1539 = vadd.f32 %v1529, %v1537
    %v1540 = vtanh.pop %v1539
    %1542 = vrot.lane.b32.xlu0 %v1540, 32
    %v1543 = vpop.permute.xlu0 %1542
    %v1545 = vmul.f32 %v1527, %v1543
    %v1546 = vmul.f32 %v1545, %v1225
    %v1547 = vmul.f32 %v1539, %v1086
    %1549 = vrot.lane.b32.xlu0 %v1547, 32
    %v1550 = vpop.permute.xlu0 %1549
    %v1552 = vadd.f32 %v1546, %v1550
    %1554 = vrot.lane.b32.xlu0 %v1552, 80
    %v1555 = vpop.permute.xlu0 %1554
    %v1557 = vsel %vm1152, %v1555, 0.0
    %1558 = vadd.xlane.f32.xlu0 %v1557
    %v1559 = vpop.xlane.xlu0 %1558
    %v1560 = vadd.f32 %v1559, %v1145
    %v1561 = vadd.f32 %v1560, %v1157
    %v1562 = vsel %vm1159, %v1561, -inf
    %1563 = vmax.xlane.f32.xlu0 %v1562
    %v1564 = vpop.xlane.xlu0 %1563
    %v1565 = vsub.f32 %v1561, %v1564
    %v1566 = vmul.f32 %v1565, 1.442695
    %v1567 = vpow.pop %v1566
    %v1568 = vsel %vm1159, %v1567, 0.0
    %1569 = vadd.xlane.f32.xlu0 %v1568
    %v1570 = vpop.xlane.xlu0 %1569
    %v1571 = vrcp.pop %v1570
    %v1572 = vmul.f32 %v1567, %v1571
    %v1574 = vrot.slane %v1083, 2
    %v1576 = vmul.f32 %v1572, %v1574
    %1578 = vrot.lane.b32.xlu0 %v1545, 92
    %v1579 = vpop.permute.xlu0 %1578
    %v1581 = vsel %vm1172, %v1576, %v1579
    %v1583 = vsel %vm1174, %v1581, 0
    %1585 = vmatpush.msra.mxu0 0.0
    %1586 = vmatpush.msra.mxu0 0.0
    %1587 = vmatpush.msra.mxu0 0.0
    %1588 = vmatpush.msra.mxu0 0.0
    %1589 = vmatpush.msra.mxu0 0.0
    %1590 = vmatpush.msra.mxu0 0.0
    %1591 = vmatpush.msra.mxu0 0.0
    %1592 = vmatpush.msra.mxu0 0.0
    %1593 = vmatpush.msra.mxu0 0.0
    %1594 = vmatpush.msra.mxu0 0.0
    %1595 = vmatpush.msra.mxu0 0.0
    %1596 = vmatpush.msra.mxu0 0.0
    %1597 = vmatpush.msra.mxu0 %v1180
    %1598 = vmatpush.msra.mxu0 %v1091
    %1599 = vmatpush.msra.mxu0 %v1090
    %1600 = vmatpush.msra.mxu0 %v1089
    %1601 = vmatmul.f32.gmra.mxu0 %v1583
    %v1602 = vpop.f32.mrf.mxu0
    %v1603 = vadd.f32 %v1095, %v1602
    %1604 = vdwg.mxu0
    %v1605 = vmul.f32 %v1603, 0.5
    %v1606 = vtanh.pop %v1605
    %v1607 = vadd.f32 %v1606, 1.0
    %v1608 = vmul.f32 %v1607, 0.5
    %v1609 = vtanh.pop %v1603
    %v1610 = vmul.f32 %v1608, %v1539
    %1612 = vrot.lane.b32.xlu0 %v1609, 96
    %v1613 = vpop.permute.xlu0 %1612
    %v1615 = vmul.f32 %v1608, %v1613
    %1617 = vrot.lane.b32.xlu0 %v1615, 16
    %v1618 = vpop.permute.xlu0 %1617
    %v1620 = vadd.f32 %v1610, %v1618
    %v1621 = vtanh.pop %v1620
    %1623 = vrot.lane.b32.xlu0 %v1621, 32
    %v1624 = vpop.permute.xlu0 %1623
    %v1626 = vmul.f32 %v1608, %v1624
    %v1627 = vmul.f32 %v1626, %v1225
    %v1628 = vmul.f32 %v1620, %v1086
    %1630 = vrot.lane.b32.xlu0 %v1628, 32
    %v1631 = vpop.permute.xlu0 %1630
    %v1633 = vadd.f32 %v1627, %v1631
    %1635 = vrot.lane.b32.xlu0 %v1633, 80
    %v1636 = vpop.permute.xlu0 %1635
    %v1638 = vsel %vm1152, %v1636, 0.0
    %1639 = vadd.xlane.f32.xlu0 %v1638
    %v1640 = vpop.xlane.xlu0 %1639
    %v1641 = vadd.f32 %v1640, %v1145
    %v1642 = vadd.f32 %v1641, %v1157
    %v1643 = vsel %vm1159, %v1642, -inf
    %1644 = vmax.xlane.f32.xlu0 %v1643
    %v1645 = vpop.xlane.xlu0 %1644
    %v1646 = vsub.f32 %v1642, %v1645
    %v1647 = vmul.f32 %v1646, 1.442695
    %v1648 = vpow.pop %v1647
    %v1649 = vsel %vm1159, %v1648, 0.0
    %1650 = vadd.xlane.f32.xlu0 %v1649
    %v1651 = vpop.xlane.xlu0 %1650
    %v1652 = vrcp.pop %v1651
    %v1653 = vmul.f32 %v1648, %v1652
    %v1654 = vrot.slane %v1083, 4
    %v1656 = vmul.f32 %v1653, %v1654
    %1658 = vrot.lane.b32.xlu0 %v1626, 92
    %v1659 = vpop.permute.xlu0 %1658
    %v1661 = vsel %vm1172, %v1656, %v1659
    %v1663 = vsel %vm1174, %v1661, 0
    %1665 = vmatpush.msra.mxu0 0.0
    %1666 = vmatpush.msra.mxu0 0.0
    %1667 = vmatpush.msra.mxu0 0.0
    %1668 = vmatpush.msra.mxu0 0.0
    %1669 = vmatpush.msra.mxu0 0.0
    %1670 = vmatpush.msra.mxu0 0.0
    %1671 = vmatpush.msra.mxu0 0.0
    %1672 = vmatpush.msra.mxu0 0.0
    %1673 = vmatpush.msra.mxu0 0.0
    %1674 = vmatpush.msra.mxu0 0.0
    %1675 = vmatpush.msra.mxu0 0.0
    %1676 = vmatpush.msra.mxu0 0.0
    %1677 = vmatpush.msra.mxu0 %v1180
    %1678 = vmatpush.msra.mxu0 %v1091
    %1679 = vmatpush.msra.mxu0 %v1090
    %1680 = vmatpush.msra.mxu0 %v1089
    %1681 = vmatmul.f32.gmra.mxu0 %v1663
    %v1682 = vpop.f32.mrf.mxu0
    %v1683 = vadd.f32 %v1095, %v1682
    %1684 = vdwg.mxu0
    %v1685 = vmul.f32 %v1683, 0.5
    %v1686 = vtanh.pop %v1685
    %v1687 = vadd.f32 %v1686, 1.0
    %v1688 = vmul.f32 %v1687, 0.5
    %v1689 = vtanh.pop %v1683
    %v1690 = vmul.f32 %v1688, %v1620
    %1692 = vrot.lane.b32.xlu0 %v1689, 96
    %v1693 = vpop.permute.xlu0 %1692
    %v1695 = vmul.f32 %v1688, %v1693
    %1697 = vrot.lane.b32.xlu0 %v1695, 16
    %v1698 = vpop.permute.xlu0 %1697
    %v1700 = vadd.f32 %v1690, %v1698
    %v1701 = vtanh.pop %v1700
    %1703 = vrot.lane.b32.xlu0 %v1701, 32
    %v1704 = vpop.permute.xlu0 %1703
    %v1706 = vmul.f32 %v1688, %v1704
    %v1707 = vmul.f32 %v1706, %v1225
    %v1708 = vmul.f32 %v1700, %v1086
    %1710 = vrot.lane.b32.xlu0 %v1708, 32
    %v1711 = vpop.permute.xlu0 %1710
    %v1713 = vadd.f32 %v1707, %v1711
    %1715 = vrot.lane.b32.xlu0 %v1713, 80
    %v1716 = vpop.permute.xlu0 %1715
    %v1718 = vsel %vm1152, %v1716, 0.0
    %1719 = vadd.xlane.f32.xlu0 %v1718
    %v1720 = vpop.xlane.xlu0 %1719
    %v1721 = vadd.f32 %v1720, %v1145
    %v1722 = vadd.f32 %v1721, %v1157
    %v1723 = vsel %vm1159, %v1722, -inf
    %1724 = vmax.xlane.f32.xlu0 %v1723
    %v1725 = vpop.xlane.xlu0 %1724
    %v1726 = vsub.f32 %v1722, %v1725
    %v1727 = vmul.f32 %v1726, 1.442695
    %v1728 = vpow.pop %v1727
    %v1729 = vsel %vm1159, %v1728, 0.0
    %1730 = vadd.xlane.f32.xlu0 %v1729
    %v1731 = vpop.xlane.xlu0 %1730
    %v1732 = vrcp.pop %v1731
    %v1733 = vmul.f32 %v1728, %v1732
    %v1734 = vrot.slane %v1083, 6
    %v1736 = vmul.f32 %v1733, %v1734
    %1738 = vrot.lane.b32.xlu0 %v1706, 92
    %v1739 = vpop.permute.xlu0 %1738
    %v1741 = vsel %vm1172, %v1736, %v1739
    %v1743 = vsel %vm1174, %v1741, 0
    %1745 = vmatpush.msra.mxu0 0.0
    %1746 = vmatpush.msra.mxu0 0.0
    %1747 = vmatpush.msra.mxu0 0.0
    %1748 = vmatpush.msra.mxu0 0.0
    %1749 = vmatpush.msra.mxu0 0.0
    %1750 = vmatpush.msra.mxu0 0.0
    %1751 = vmatpush.msra.mxu0 0.0
    %1752 = vmatpush.msra.mxu0 0.0
    %1753 = vmatpush.msra.mxu0 0.0
    %1754 = vmatpush.msra.mxu0 0.0
    %1755 = vmatpush.msra.mxu0 0.0
    %1756 = vmatpush.msra.mxu0 0.0
    %1757 = vmatpush.msra.mxu0 %v1180
    %1758 = vmatpush.msra.mxu0 %v1091
    %1759 = vmatpush.msra.mxu0 %v1090
    %1760 = vmatpush.msra.mxu0 %v1089
    %1761 = vmatmul.f32.gmra.mxu0 %v1743
    %v1762 = vpop.f32.mrf.mxu0
    %v1763 = vadd.f32 %v1095, %v1762
    %1764 = vdwg.mxu0
    %v1765 = vmul.f32 %v1763, 0.5
    %v1766 = vtanh.pop %v1765
    %v1767 = vadd.f32 %v1766, 1.0
    %v1768 = vmul.f32 %v1767, 0.5
    %v1769 = vtanh.pop %v1763
    %v1770 = vmul.f32 %v1768, %v1700
    %1772 = vrot.lane.b32.xlu0 %v1769, 96
    %v1773 = vpop.permute.xlu0 %1772
    %v1775 = vmul.f32 %v1768, %v1773
    %1777 = vrot.lane.b32.xlu0 %v1775, 16
    %v1778 = vpop.permute.xlu0 %1777
    %v1780 = vadd.f32 %v1770, %v1778
    %v1781 = vtanh.pop %v1780
    %1783 = vrot.lane.b32.xlu0 %v1781, 32
    %v1784 = vpop.permute.xlu0 %1783
    %v1786 = vmul.f32 %v1768, %v1784
    %1787 = vrot.lane.b32.xlu0 %v1223, 80
    %v1788 = vpop.permute.xlu0 %1787
    %1790 = vrot.lane.b32.xlu0 %v1307, 96
    %v1791 = vpop.permute.xlu0 %1790
    %1793 = vrot.lane.b32.xlu0 %v1387, 112
    %v1794 = vpop.permute.xlu0 %1793
    %1796 = vrot.lane.b32.xlu0 %v1545, 16
    %v1797 = vpop.permute.xlu0 %1796
    %1799 = vrot.lane.b32.xlu0 %v1626, 32
    %v1800 = vpop.permute.xlu0 %1799
    %1802 = vrot.lane.b32.xlu0 %v1706, 48
    %v1803 = vpop.permute.xlu0 %1802
    %1806 = vrot.lane.b32.xlu0 %v1786, 64
    %v1807 = vpop.permute.xlu0 %1806
    %vm1809 = vcmask 130048
    %v1810 = vsel %vm1809, %v1788, %v1791
    %vm1811 = vcmask 261120
    %v1812 = vsel %vm1811, %v1810, %v1794
    %vm1813 = vcmask 392192
    %v1814 = vsel %vm1813, %v1812, %v1467
    %vm1815 = vcmask 523264
    %v1816 = vsel %vm1815, %v1814, %v1797
    %vm1817 = vcmask 654336
    %v1818 = vsel %vm1817, %v1816, %v1800
    %vm1819 = vcmask 785408
    %v1820 = vsel %vm1819, %v1818, %v1803
    %vm1821 = vcmask 916480
    %v1822 = vsel %vm1821, %v1820, %v1807
    %v1823 = vld [vmem:[%s9] sm:$0xff]
    %v1824 = vld [vmem:[%s9 + $0x8] sm:$0xff]
    %v1825 = vsel %vm1809, %v1788, 0
    %1827 = vmatpush.msra.mxu0 0.0
    %1828 = vmatpush.msra.mxu0 0.0
    %1829 = vmatpush.msra.mxu0 0.0
    %1830 = vmatpush.msra.mxu0 0.0
    %1831 = vmatpush.msra.mxu0 0.0
    %1832 = vmatpush.msra.mxu0 0.0
    %1833 = vmatpush.msra.mxu0 0.0
    %1834 = vmatpush.msra.mxu0 0.0
    %1835 = vmatpush.msra.mxu0 0.0
    %1836 = vmatpush.msra.mxu0 0.0
    %1837 = vmatpush.msra.mxu0 0.0
    %1838 = vmatpush.msra.mxu0 0.0
    %1839 = vmatpush.msra.mxu0 0.0
    %1840 = vmatpush.msra.mxu0 0.0
    %1841 = vmatpush.msra.mxu0 %v1824
    %1842 = vmatpush.msra.mxu0 %v1823
    %1843 = vmatmul.f32.gmra.mxu0 %v1825
    %v1844 = vpop.f32.mrf.mxu0
    %v1845 = vadd.f32 0.0, %v1844
    %1846 = vdwg.mxu0
    %1847 = vrot.lane.b32.xlu0 %v1307, 80
    %v1848 = vpop.permute.xlu0 %1847
    %v1849 = vsel %vm1809, %v1848, 0
    %1851 = vmatpush.msra.mxu0 0.0
    %1852 = vmatpush.msra.mxu0 0.0
    %1853 = vmatpush.msra.mxu0 0.0
    %1854 = vmatpush.msra.mxu0 0.0
    %1855 = vmatpush.msra.mxu0 0.0
    %1856 = vmatpush.msra.mxu0 0.0
    %1857 = vmatpush.msra.mxu0 0.0
    %1858 = vmatpush.msra.mxu0 0.0
    %1859 = vmatpush.msra.mxu0 0.0
    %1860 = vmatpush.msra.mxu0 0.0
    %1861 = vmatpush.msra.mxu0 0.0
    %1862 = vmatpush.msra.mxu0 0.0
    %1863 = vmatpush.msra.mxu0 0.0
    %1864 = vmatpush.msra.mxu0 0.0
    %1865 = vmatpush.msra.mxu0 %v1824
    %1866 = vmatpush.msra.mxu0 %v1823
    %1867 = vmatmul.f32.gmra.mxu0 %v1849
    %v1868 = vpop.f32.mrf.mxu0
    %v1869 = vadd.f32 0.0, %v1868
    %1870 = vdwg.mxu0
    %1871 = vrot.lane.b32.xlu0 %v1387, 80
    %v1872 = vpop.permute.xlu0 %1871
    %v1873 = vsel %vm1809, %v1872, 0
    %1875 = vmatpush.msra.mxu0 0.0
    %1876 = vmatpush.msra.mxu0 0.0
    %1877 = vmatpush.msra.mxu0 0.0
    %1878 = vmatpush.msra.mxu0 0.0
    %1879 = vmatpush.msra.mxu0 0.0
    %1880 = vmatpush.msra.mxu0 0.0
    %1881 = vmatpush.msra.mxu0 0.0
    %1882 = vmatpush.msra.mxu0 0.0
    %1883 = vmatpush.msra.mxu0 0.0
    %1884 = vmatpush.msra.mxu0 0.0
    %1885 = vmatpush.msra.mxu0 0.0
    %1886 = vmatpush.msra.mxu0 0.0
    %1887 = vmatpush.msra.mxu0 0.0
    %1888 = vmatpush.msra.mxu0 0.0
    %1889 = vmatpush.msra.mxu0 %v1824
    %1890 = vmatpush.msra.mxu0 %v1823
    %1891 = vmatmul.f32.gmra.mxu0 %v1873
    %v1892 = vpop.f32.mrf.mxu0
    %v1893 = vadd.f32 0.0, %v1892
    %1894 = vdwg.mxu0
    %1895 = vrot.lane.b32.xlu0 %v1467, 80
    %v1896 = vpop.permute.xlu0 %1895
    %v1897 = vsel %vm1809, %v1896, 0
    %1899 = vmatpush.msra.mxu0 0.0
    %1900 = vmatpush.msra.mxu0 0.0
    %1901 = vmatpush.msra.mxu0 0.0
    %1902 = vmatpush.msra.mxu0 0.0
    %1903 = vmatpush.msra.mxu0 0.0
    %1904 = vmatpush.msra.mxu0 0.0
    %1905 = vmatpush.msra.mxu0 0.0
    %1906 = vmatpush.msra.mxu0 0.0
    %1907 = vmatpush.msra.mxu0 0.0
    %1908 = vmatpush.msra.mxu0 0.0
    %1909 = vmatpush.msra.mxu0 0.0
    %1910 = vmatpush.msra.mxu0 0.0
    %1911 = vmatpush.msra.mxu0 0.0
    %1912 = vmatpush.msra.mxu0 0.0
    %1913 = vmatpush.msra.mxu0 %v1824
    %1914 = vmatpush.msra.mxu0 %v1823
    %1915 = vmatmul.f32.gmra.mxu0 %v1897
    %v1916 = vpop.f32.mrf.mxu0
    %v1917 = vadd.f32 0.0, %v1916
    %1918 = vdwg.mxu0
    %1919 = vrot.lane.b32.xlu0 %v1545, 80
    %v1920 = vpop.permute.xlu0 %1919
    %v1921 = vsel %vm1809, %v1920, 0
    %1923 = vmatpush.msra.mxu0 0.0
    %1924 = vmatpush.msra.mxu0 0.0
    %1925 = vmatpush.msra.mxu0 0.0
    %1926 = vmatpush.msra.mxu0 0.0
    %1927 = vmatpush.msra.mxu0 0.0
    %1928 = vmatpush.msra.mxu0 0.0
    %1929 = vmatpush.msra.mxu0 0.0
    %1930 = vmatpush.msra.mxu0 0.0
    %1931 = vmatpush.msra.mxu0 0.0
    %1932 = vmatpush.msra.mxu0 0.0
    %1933 = vmatpush.msra.mxu0 0.0
    %1934 = vmatpush.msra.mxu0 0.0
    %1935 = vmatpush.msra.mxu0 0.0
    %1936 = vmatpush.msra.mxu0 0.0
    %1937 = vmatpush.msra.mxu0 %v1824
    %1938 = vmatpush.msra.mxu0 %v1823
    %1939 = vmatmul.f32.gmra.mxu0 %v1921
    %v1940 = vpop.f32.mrf.mxu0
    %v1941 = vadd.f32 0.0, %v1940
    %1942 = vdwg.mxu0
    %1943 = vrot.lane.b32.xlu0 %v1626, 80
    %v1944 = vpop.permute.xlu0 %1943
    %v1945 = vsel %vm1809, %v1944, 0
    %1947 = vmatpush.msra.mxu0 0.0
    %1948 = vmatpush.msra.mxu0 0.0
    %1949 = vmatpush.msra.mxu0 0.0
    %1950 = vmatpush.msra.mxu0 0.0
    %1951 = vmatpush.msra.mxu0 0.0
    %1952 = vmatpush.msra.mxu0 0.0
    %1953 = vmatpush.msra.mxu0 0.0
    %1954 = vmatpush.msra.mxu0 0.0
    %1955 = vmatpush.msra.mxu0 0.0
    %1956 = vmatpush.msra.mxu0 0.0
    %1957 = vmatpush.msra.mxu0 0.0
    %1958 = vmatpush.msra.mxu0 0.0
    %1959 = vmatpush.msra.mxu0 0.0
    %1960 = vmatpush.msra.mxu0 0.0
    %1961 = vmatpush.msra.mxu0 %v1824
    %1962 = vmatpush.msra.mxu0 %v1823
    %1963 = vmatmul.f32.gmra.mxu0 %v1945
    %v1964 = vpop.f32.mrf.mxu0
    %v1965 = vadd.f32 0.0, %v1964
    %1966 = vdwg.mxu0
    %1967 = vrot.lane.b32.xlu0 %v1706, 80
    %v1968 = vpop.permute.xlu0 %1967
    %v1969 = vsel %vm1809, %v1968, 0
    %1971 = vmatpush.msra.mxu0 0.0
    %1972 = vmatpush.msra.mxu0 0.0
    %1973 = vmatpush.msra.mxu0 0.0
    %1974 = vmatpush.msra.mxu0 0.0
    %1975 = vmatpush.msra.mxu0 0.0
    %1976 = vmatpush.msra.mxu0 0.0
    %1977 = vmatpush.msra.mxu0 0.0
    %1978 = vmatpush.msra.mxu0 0.0
    %1979 = vmatpush.msra.mxu0 0.0
    %1980 = vmatpush.msra.mxu0 0.0
    %1981 = vmatpush.msra.mxu0 0.0
    %1982 = vmatpush.msra.mxu0 0.0
    %1983 = vmatpush.msra.mxu0 0.0
    %1984 = vmatpush.msra.mxu0 0.0
    %1985 = vmatpush.msra.mxu0 %v1824
    %1986 = vmatpush.msra.mxu0 %v1823
    %1987 = vmatmul.f32.gmra.mxu0 %v1969
    %v1988 = vpop.f32.mrf.mxu0
    %v1989 = vadd.f32 0.0, %v1988
    %1990 = vdwg.mxu0
    %1991 = vrot.lane.b32.xlu0 %v1786, 80
    %v1992 = vpop.permute.xlu0 %1991
    %v1993 = vsel %vm1809, %v1992, 0
    %1995 = vmatpush.msra.mxu0 0.0
    %1996 = vmatpush.msra.mxu0 0.0
    %1997 = vmatpush.msra.mxu0 0.0
    %1998 = vmatpush.msra.mxu0 0.0
    %1999 = vmatpush.msra.mxu0 0.0
    %2000 = vmatpush.msra.mxu0 0.0
    %2001 = vmatpush.msra.mxu0 0.0
    %2002 = vmatpush.msra.mxu0 0.0
    %2003 = vmatpush.msra.mxu0 0.0
    %2004 = vmatpush.msra.mxu0 0.0
    %2005 = vmatpush.msra.mxu0 0.0
    %2006 = vmatpush.msra.mxu0 0.0
    %2007 = vmatpush.msra.mxu0 0.0
    %2008 = vmatpush.msra.mxu0 0.0
    %2009 = vmatpush.msra.mxu0 %v1824
    %2010 = vmatpush.msra.mxu0 %v1823
    %2011 = vmatmul.f32.gmra.mxu0 %v1993
    %v2012 = vpop.f32.mrf.mxu0
    %v2013 = vadd.f32 0.0, %v2012
    %2014 = vdwg.mxu0
    %2016 = vrot.lane.b32.xlu0 %v1869, 16
    %v2017 = vpop.permute.xlu0 %2016
    %2020 = vrot.lane.b32.xlu0 %v1893, 32
    %v2021 = vpop.permute.xlu0 %2020
    %2024 = vrot.lane.b32.xlu0 %v1917, 48
    %v2025 = vpop.permute.xlu0 %2024
    %2028 = vrot.lane.b32.xlu0 %v1941, 64
    %v2029 = vpop.permute.xlu0 %2028
    %2032 = vrot.lane.b32.xlu0 %v1965, 80
    %v2033 = vpop.permute.xlu0 %2032
    %2036 = vrot.lane.b32.xlu0 %v1989, 96
    %v2037 = vpop.permute.xlu0 %2036
    %2040 = vrot.lane.b32.xlu0 %v2013, 112
    %v2041 = vpop.permute.xlu0 %2040
    %v2043 = vsel %vm1809, %v1845, %v2017
    %v2044 = vsel %vm1811, %v2043, %v2021
    %v2045 = vsel %vm1813, %v2044, %v2025
    %v2046 = vsel %vm1815, %v2045, %v2029
    %v2047 = vsel %vm1817, %v2046, %v2033
    %v2048 = vsel %vm1819, %v2047, %v2037
    %v2049 = vsel %vm1821, %v2048, %v2041
    %v2050 = vld [vmem:[%s8] sm:$0xff]
    %v2051 = vld [vmem:[%s8 + $0x8] sm:$0xff]
    %v2052 = vld [vmem:[%s8 + $0x10] sm:$0xff]
    %v2053 = vld [vmem:[%s8 + $0x18] sm:$0xff]
    %v2054 = vld [vmem:[%s10] sm:$0x1]
    %v2056 = vperm.slane %v2054, 0
    %v2058 = vld [vmem:[%s11] sm:$0x1]
    %v2060 = vperm.slane %v2058, 0
    %v2062 = vld [vmem:[%s17] sm:$0xff]
    %v2063 = vld [vmem:[%s17 + $0x8] sm:$0xff]
    %v2064 = vld [vmem:[%s17 + $0x10] sm:$0xff]
    %v2065 = vld [vmem:[%s17 + $0x18] sm:$0xff]
    %v2066 = vld [vmem:[%s17 + $0x20] sm:$0xff]
    %v2067 = vld [vmem:[%s17 + $0x28] sm:$0xff]
    %v2068 = vld [vmem:[%s17 + $0x30] sm:$0xff]
    %v2069 = vld [vmem:[%s17 + $0x38] sm:$0xff]
    %v2070 = vld [vmem:[%s17 + $0x40] sm:$0xff]
    %v2071 = vld [vmem:[%s17 + $0x48] sm:$0xff]
    %v2072 = vld [vmem:[%s17 + $0x50] sm:$0xff]
    %v2073 = vld [vmem:[%s17 + $0x58] sm:$0xff]
    %v2074 = vld [vmem:[%s17 + $0x60] sm:$0xff]
    %v2075 = vld [vmem:[%s17 + $0x68] sm:$0xff]
    %v2076 = vld [vmem:[%s17 + $0x70] sm:$0xff]
    %v2077 = vld [vmem:[%s17 + $0x78] sm:$0xff]
    %v2078 = vld [vmem:[%s18] sm:$0xff]
    %v2079 = vld [vmem:[%s19] sm:$0xff]
    %v2080 = vld [vmem:[%s19 + $0x8] sm:$0xff]
    %v2081 = vld [vmem:[%s19 + $0x10] sm:$0xff]
    %v2082 = vld [vmem:[%s19 + $0x18] sm:$0xff]
    %v2083 = vld [vmem:[%s19 + $0x20] sm:$0xff]
    %v2084 = vld [vmem:[%s19 + $0x28] sm:$0xff]
    %v2085 = vld [vmem:[%s19 + $0x30] sm:$0xff]
    %v2086 = vld [vmem:[%s19 + $0x38] sm:$0xff]
    %v2087 = vld [vmem:[%s19 + $0x40] sm:$0xff]
    %v2088 = vld [vmem:[%s19 + $0x48] sm:$0xff]
    %v2089 = vld [vmem:[%s19 + $0x50] sm:$0xff]
    %v2090 = vld [vmem:[%s19 + $0x58] sm:$0xff]
    %v2091 = vld [vmem:[%s19 + $0x60] sm:$0xff]
    %v2092 = vld [vmem:[%s19 + $0x68] sm:$0xff]
    %v2093 = vld [vmem:[%s19 + $0x70] sm:$0xff]
    %v2094 = vld [vmem:[%s19 + $0x78] sm:$0xff]
    %v2095 = vld [vmem:[%s12] sm:$0xff]
    %v2096 = vld [vmem:[%s12 + $0x8] sm:$0xff]
    %v2097 = vld [vmem:[%s12 + $0x10] sm:$0x1]
    %v2098 = vld [vmem:[%s13] sm:$0x1]
    %v2100 = vperm.slane %v2098, 0
    %v2102 = vld [vmem:[%s14] sm:$0x1]
    %v2104 = vperm.slane %v2102, 0
    %s2106 = sld [smem:[#allocation3]]
    %s2107 = sld [smem:[#allocation4]]
    %v2109 = vsel %vm1811, 0.0, 0
    %2111 = vmatpush.msra.mxu0 0.0
    %2112 = vmatpush.msra.mxu0 0.0
    %2113 = vmatpush.msra.mxu0 0.0
    %2114 = vmatpush.msra.mxu0 0.0
    %2115 = vmatpush.msra.mxu0 0.0
    %2116 = vmatpush.msra.mxu0 0.0
    %2117 = vmatpush.msra.mxu0 0.0
    %2118 = vmatpush.msra.mxu0 0.0
    %2119 = vmatpush.msra.mxu0 0.0
    %2120 = vmatpush.msra.mxu0 0.0
    %2121 = vmatpush.msra.mxu0 0.0
    %2122 = vmatpush.msra.mxu0 0.0
    %2123 = vmatpush.msra.mxu0 %v2053
    %2124 = vmatpush.msra.mxu0 %v2052
    %2125 = vmatpush.msra.mxu0 %v2051
    %2126 = vmatpush.msra.mxu0 %v2050
    %2127 = vmatmul.f32.gmra.mxu0 %v2109
    %v2128 = vpop.f32.mrf.mxu0
    %v2129 = vadd.f32 %v2056, %v2128
    %2130 = vdwg.mxu0
    %2132 = vrot.lane.b32.xlu0 %v2129, 16
    %v2133 = vpop.permute.xlu0 %2132
    %2135 = vrot.lane.b32.xlu0 %v2129, 32
    %v2136 = vpop.permute.xlu0 %2135
    %2138 = vrot.lane.b32.xlu0 %v2129, 48
    %v2139 = vpop.permute.xlu0 %2138
    %2141 = vrot.lane.b32.xlu0 %v2129, 64
    %v2142 = vpop.permute.xlu0 %2141
    %2144 = vrot.lane.b32.xlu0 %v2129, 80
    %v2145 = vpop.permute.xlu0 %2144
    %2147 = vrot.lane.b32.xlu0 %v2129, 96
    %v2148 = vpop.permute.xlu0 %2147
    %2150 = vrot.lane.b32.xlu0 %v2129, 112
    %v2151 = vpop.permute.xlu0 %2150
    %v2153 = vsel %vm1809, %v2129, %v2133
    %v2154 = vsel %vm1811, %v2153, %v2136
    %v2155 = vsel %vm1813, %v2154, %v2139
    %v2156 = vsel %vm1815, %v2155, %v2142
    %v2157 = vsel %vm1817, %v2156, %v2145
    %v2158 = vsel %vm1819, %v2157, %v2148
    %v2159 = vsel %vm1821, %v2158, %v2151
    %v2160 = vadd.f32 %v2159, %v2049
    %v2161 = vtanh.pop %v2160
    %v2162 = vmul.f32 %v2161, %v2060
    %v2163 = vstv %s2106
    %2164 = vmatpush.msra.mxu0 %v2077
    %2165 = vmatpush.msra.mxu0 %v2076
    %2166 = vmatpush.msra.mxu0 %v2075
    %2167 = vmatpush.msra.mxu0 %v2074
    %2168 = vmatpush.msra.mxu0 %v2073
    %2169 = vmatpush.msra.mxu0 %v2072
    %2170 = vmatpush.msra.mxu0 %v2071
    %2171 = vmatpush.msra.mxu0 %v2070
    %2172 = vmatpush.msra.mxu0 %v2069
    %2173 = vmatpush.msra.mxu0 %v2068
    %2174 = vmatpush.msra.mxu0 %v2067
    %2175 = vmatpush.msra.mxu0 %v2066
    %2176 = vmatpush.msra.mxu0 %v2065
    %2177 = vmatpush.msra.mxu0 %v2064
    %2178 = vmatpush.msra.mxu0 %v2063
    %2179 = vmatpush.msra.mxu0 %v2062
    %2180 = vmatmul.f32.gmra.mxu0 %v2162
    %v2181 = vpop.f32.mrf.mxu0
    %v2182 = vadd.f32 %v2163, %v2181
    %2183 = vdwg.mxu0
    %vm2184 = vcmask 58368
    %v2185 = vsel %vm2184, %v2182, -inf
    %2186 = vmax.xlane.f32.xlu0 %v2185
    %v2187 = vpop.xlane.xlu0 %2186
    %v2188 = vsub.f32 %v2182, %v2187
    %v2189 = vmul.f32 %v2188, 1.442695
    %v2190 = vpow.pop %v2189
    %v2191 = vsel %vm2184, %v2190, 0.0
    %2192 = vadd.xlane.f32.xlu0 %v2191
    %v2193 = vpop.xlane.xlu0 %2192
    %v2194 = vrcp.pop %v2193
    %v2195 = vmul.f32 %v2190, %v2194
    %vm2196 = vcmask 64512
    %v2198 = vsel %vm2196, %v2195, 0
    %2200 = vmatpush.msra.mxu0 0.0
    %2201 = vmatpush.msra.mxu0 0.0
    %2202 = vmatpush.msra.mxu0 0.0
    %2203 = vmatpush.msra.mxu0 0.0
    %2204 = vmatpush.msra.mxu0 0.0
    %2205 = vmatpush.msra.mxu0 0.0
    %2206 = vmatpush.msra.mxu0 0.0
    %2207 = vmatpush.msra.mxu0 0.0
    %2208 = vmatpush.msra.mxu0 0.0
    %2209 = vmatpush.msra.mxu0 0.0
    %2210 = vmatpush.msra.mxu0 0.0
    %2211 = vmatpush.msra.mxu0 0.0
    %2212 = vmatpush.msra.mxu0 0.0
    %2213 = vmatpush.msra.mxu0 0.0
    %2214 = vmatpush.msra.mxu0 0.0
    %2215 = vmatpush.msra.mxu0 %v2078
    %2216 = vmatmul.f32.gmra.mxu0 %v2198
    %v2217 = vpop.f32.mrf.mxu0
    %v2218 = vadd.f32 0.0, %v2217
    %2219 = vdwg.mxu0
    %v2220 = vmul.f32 %v2218, %v1822
    %2221 = vmatpush.msra.mxu0 %v2094
    %2222 = vmatpush.msra.mxu0 %v2093
    %2223 = vmatpush.msra.mxu0 %v2092
    %2224 = vmatpush.msra.mxu0 %v2091
    %2225 = vmatpush.msra.mxu0 %v2090
    %2226 = vmatpush.msra.mxu0 %v2089
    %2227 = vmatpush.msra.mxu0 %v2088
    %2228 = vmatpush.msra.mxu0 %v2087
    %2229 = vmatpush.msra.mxu0 %v2086
    %2230 = vmatpush.msra.mxu0 %v2085
    %2231 = vmatpush.msra.mxu0 %v2084
    %2232 = vmatpush.msra.mxu0 %v2083
    %2233 = vmatpush.msra.mxu0 %v2082
    %2234 = vmatpush.msra.mxu0 %v2081
    %2235 = vmatpush.msra.mxu0 %v2080
    %2236 = vmatpush.msra.mxu0 %v2079
    %2237 = vmatmul.f32.gmra.mxu0 %v2220
    %v2238 = vpop.f32.mrf.mxu0
    %v2239 = vadd.f32 0.0, %v2238
    %2240 = vdwg.mxu0
    %v2241 = vmul.f32 %v2239, %v2104
    %v2242 = vsel %vm1152, %v2241, 0.0
    %2243 = vadd.xlane.f32.xlu0 %v2242
    %v2244 = vpop.xlane.xlu0 %2243
    %v2245 = vstv %s2107
    %v2246 = vadd.f32 %v2244, %v2245
    %vm2247 = vcmask 7168
    %v2248 = vsel %vm2247, %v2246, 0.0
    %vm2249 = vcmask 138240
    %v2251 = vsel %vm2249, %v2248, 0
    %vm2253 = vcmask 1040384
    %v2255 = vsel %vm2253, %v2097, 0
    %2257 = vmatpush.msra.mxu0 0.0
    %2258 = vmatpush.msra.mxu0 0.0
    %2259 = vmatpush.msra.mxu0 0.0
    %2260 = vmatpush.msra.mxu0 0.0
    %2261 = vmatpush.msra.mxu0 0.0
    %2262 = vmatpush.msra.mxu0 0.0
    %2263 = vmatpush.msra.mxu0 0.0
    %2264 = vmatpush.msra.mxu0 0.0
    %2265 = vmatpush.msra.mxu0 0.0
    %2266 = vmatpush.msra.mxu0 0.0
    %2267 = vmatpush.msra.mxu0 0.0
    %2268 = vmatpush.msra.mxu0 0.0
    %2269 = vmatpush.msra.mxu0 0.0
    %2270 = vmatpush.msra.mxu0 %v2255
    %2271 = vmatpush.msra.mxu0 %v2096
    %2272 = vmatpush.msra.mxu0 %v2095
    %2273 = vmatmul.f32.gmra.mxu0 %v2251
    %v2274 = vpop.f32.mrf.mxu0
    %v2275 = vadd.f32 %v2100, %v2274
    %2276 = vdwg.mxu0
    %v2277 = vmul.f32 %v2275, 0.5
    %v2278 = vtanh.pop %v2277
    %v2279 = vadd.f32 %v2278, 1.0
    %v2280 = vmul.f32 %v2279, 0.5
    %v2281 = vtanh.pop %v2275
    %v2282 = vmul.f32 %v2280, 0.0
    %2284 = vrot.lane.b32.xlu0 %v2281, 96
    %v2285 = vpop.permute.xlu0 %2284
    %v2287 = vmul.f32 %v2280, %v2285
    %2289 = vrot.lane.b32.xlu0 %v2287, 16
    %v2290 = vpop.permute.xlu0 %2289
    %v2292 = vadd.f32 %v2282, %v2290
    %v2293 = vtanh.pop %v2292
    %2295 = vrot.lane.b32.xlu0 %v2293, 32
    %v2296 = vpop.permute.xlu0 %2295
    %v2298 = vmul.f32 %v2280, %v2296
    %2300 = vrot.lane.b32.xlu0 %v2298, 80
    %v2301 = vpop.permute.xlu0 %2300
    %v2303 = vsel %vm1809, %v2301, %v2292
    %v2305 = vsel %vm1811, %v2303, 0
    %2307 = vmatpush.msra.mxu0 0.0
    %2308 = vmatpush.msra.mxu0 0.0
    %2309 = vmatpush.msra.mxu0 0.0
    %2310 = vmatpush.msra.mxu0 0.0
    %2311 = vmatpush.msra.mxu0 0.0
    %2312 = vmatpush.msra.mxu0 0.0
    %2313 = vmatpush.msra.mxu0 0.0
    %2314 = vmatpush.msra.mxu0 0.0
    %2315 = vmatpush.msra.mxu0 0.0
    %2316 = vmatpush.msra.mxu0 0.0
    %2317 = vmatpush.msra.mxu0 0.0
    %2318 = vmatpush.msra.mxu0 0.0
    %2319 = vmatpush.msra.mxu0 %v2053
    %2320 = vmatpush.msra.mxu0 %v2052
    %2321 = vmatpush.msra.mxu0 %v2051
    %2322 = vmatpush.msra.mxu0 %v2050
    %2323 = vmatmul.f32.gmra.mxu0 %v2305
    %v2324 = vpop.f32.mrf.mxu0
    %v2325 = vadd.f32 %v2056, %v2324
    %2326 = vdwg.mxu0
    %2328 = vrot.lane.b32.xlu0 %v2325, 16
    %v2329 = vpop.permute.xlu0 %2328
    %2331 = vrot.lane.b32.xlu0 %v2325, 32
    %v2332 = vpop.permute.xlu0 %2331
    %2334 = vrot.lane.b32.xlu0 %v2325, 48
    %v2335 = vpop.permute.xlu0 %2334
    %2337 = vrot.lane.b32.xlu0 %v2325, 64
    %v2338 = vpop.permute.xlu0 %2337
    %2340 = vrot.lane.b32.xlu0 %v2325, 80
    %v2341 = vpop.permute.xlu0 %2340
    %2343 = vrot.lane.b32.xlu0 %v2325, 96
    %v2344 = vpop.permute.xlu0 %2343
    %2346 = vrot.lane.b32.xlu0 %v2325, 112
    %v2347 = vpop.permute.xlu0 %2346
    %v2349 = vsel %vm1809, %v2325, %v2329
    %v2350 = vsel %vm1811, %v2349, %v2332
    %v2351 = vsel %vm1813, %v2350, %v2335
    %v2352 = vsel %vm1815, %v2351, %v2338
    %v2353 = vsel %vm1817, %v2352, %v2341
    %v2354 = vsel %vm1819, %v2353, %v2344
    %v2355 = vsel %vm1821, %v2354, %v2347
    %v2356 = vadd.f32 %v2355, %v2049
    %v2357 = vtanh.pop %v2356
    %v2358 = vmul.f32 %v2357, %v2060
    %2359 = vmatpush.msra.mxu0 %v2077
    %2360 = vmatpush.msra.mxu0 %v2076
    %2361 = vmatpush.msra.mxu0 %v2075
    %2362 = vmatpush.msra.mxu0 %v2074
    %2363 = vmatpush.msra.mxu0 %v2073
    %2364 = vmatpush.msra.mxu0 %v2072
    %2365 = vmatpush.msra.mxu0 %v2071
    %2366 = vmatpush.msra.mxu0 %v2070
    %2367 = vmatpush.msra.mxu0 %v2069
    %2368 = vmatpush.msra.mxu0 %v2068
    %2369 = vmatpush.msra.mxu0 %v2067
    %2370 = vmatpush.msra.mxu0 %v2066
    %2371 = vmatpush.msra.mxu0 %v2065
    %2372 = vmatpush.msra.mxu0 %v2064
    %2373 = vmatpush.msra.mxu0 %v2063
    %2374 = vmatpush.msra.mxu0 %v2062
    %2375 = vmatmul.f32.gmra.mxu0 %v2358
    %v2376 = vpop.f32.mrf.mxu0
    %v2377 = vadd.f32 %v2163, %v2376
    %2378 = vdwg.mxu0
    %v2379 = vsel %vm2184, %v2377, -inf
    %2380 = vmax.xlane.f32.xlu0 %v2379
    %v2381 = vpop.xlane.xlu0 %2380
    %v2382 = vsub.f32 %v2377, %v2381
    %v2383 = vmul.f32 %v2382, 1.442695
    %v2384 = vpow.pop %v2383
    %v2385 = vsel %vm2184, %v2384, 0.0
    %2386 = vadd.xlane.f32.xlu0 %v2385
    %v2387 = vpop.xlane.xlu0 %2386
    %v2388 = vrcp.pop %v2387
    %v2389 = vmul.f32 %v2384, %v2388
    %v2391 = vsel %vm2196, %v2389, 0
    %2393 = vmatpush.msra.mxu0 0.0
    %2394 = vmatpush.msra.mxu0 0.0
    %2395 = vmatpush.msra.mxu0 0.0
    %2396 = vmatpush.msra.mxu0 0.0
    %2397 = vmatpush.msra.mxu0 0.0
    %2398 = vmatpush.msra.mxu0 0.0
    %2399 = vmatpush.msra.mxu0 0.0
    %2400 = vmatpush.msra.mxu0 0.0
    %2401 = vmatpush.msra.mxu0 0.0
    %2402 = vmatpush.msra.mxu0 0.0
    %2403 = vmatpush.msra.mxu0 0.0
    %2404 = vmatpush.msra.mxu0 0.0
    %2405 = vmatpush.msra.mxu0 0.0
    %2406 = vmatpush.msra.mxu0 0.0
    %2407 = vmatpush.msra.mxu0 0.0
    %2408 = vmatpush.msra.mxu0 %v2078
    %2409 = vmatmul.f32.gmra.mxu0 %v2391
    %v2410 = vpop.f32.mrf.mxu0
    %v2411 = vadd.f32 0.0, %v2410
    %2412 = vdwg.mxu0
    %v2413 = vmul.f32 %v2411, %v1822
    %2414 = vmatpush.msra.mxu0 %v2094
    %2415 = vmatpush.msra.mxu0 %v2093
    %2416 = vmatpush.msra.mxu0 %v2092
    %2417 = vmatpush.msra.mxu0 %v2091
    %2418 = vmatpush.msra.mxu0 %v2090
    %2419 = vmatpush.msra.mxu0 %v2089
    %2420 = vmatpush.msra.mxu0 %v2088
    %2421 = vmatpush.msra.mxu0 %v2087
    %2422 = vmatpush.msra.mxu0 %v2086
    %2423 = vmatpush.msra.mxu0 %v2085
    %2424 = vmatpush.msra.mxu0 %v2084
    %2425 = vmatpush.msra.mxu0 %v2083
    %2426 = vmatpush.msra.mxu0 %v2082
    %2427 = vmatpush.msra.mxu0 %v2081
    %2428 = vmatpush.msra.mxu0 %v2080
    %2429 = vmatpush.msra.mxu0 %v2079
    %2430 = vmatmul.f32.gmra.mxu0 %v2413
    %v2431 = vpop.f32.mrf.mxu0
    %v2432 = vadd.f32 0.0, %v2431
    %2433 = vdwg.mxu0
    %v2434 = vmul.f32 %v2432, %v2104
    %v2435 = vsel %vm1152, %v2434, 0.0
    %2436 = vadd.xlane.f32.xlu0 %v2435
    %v2437 = vpop.xlane.xlu0 %2436
    %v2438 = vadd.f32 %v2437, %v2245
    %2439 = vrot.lane.b32.xlu0 %v2298, 81
    %v2440 = vpop.permute.xlu0 %2439
    %v2442 = vsel %vm2247, %v2438, %v2440
    %v2444 = vsel %vm2249, %v2442, 0
    %2446 = vmatpush.msra.mxu0 0.0
    %2447 = vmatpush.msra.mxu0 0.0
    %2448 = vmatpush.msra.mxu0 0.0
    %2449 = vmatpush.msra.mxu0 0.0
    %2450 = vmatpush.msra.mxu0 0.0
    %2451 = vmatpush.msra.mxu0 0.0
    %2452 = vmatpush.msra.mxu0 0.0
    %2453 = vmatpush.msra.mxu0 0.0
    %2454 = vmatpush.msra.mxu0 0.0
    %2455 = vmatpush.msra.mxu0 0.0
    %2456 = vmatpush.msra.mxu0 0.0
    %2457 = vmatpush.msra.mxu0 0.0
    %2458 = vmatpush.msra.mxu0 0.0
    %2459 = vmatpush.msra.mxu0 %v2255
    %2460 = vmatpush.msra.mxu0 %v2096
    %2461 = vmatpush.msra.mxu0 %v2095
    %2462 = vmatmul.f32.gmra.mxu0 %v2444
    %v2463 = vpop.f32.mrf.mxu0
    %v2464 = vadd.f32 %v2100, %v2463
    %2465 = vdwg.mxu0
    %v2466 = vmul.f32 %v2464, 0.5
    %v2467 = vtanh.pop %v2466
    %v2468 = vadd.f32 %v2467, 1.0
    %v2469 = vmul.f32 %v2468, 0.5
    %v2470 = vtanh.pop %v2464
    %v2471 = vmul.f32 %v2469, %v2292
    %2473 = vrot.lane.b32.xlu0 %v2470, 96
    %v2474 = vpop.permute.xlu0 %2473
    %v2476 = vmul.f32 %v2469, %v2474
    %2478 = vrot.lane.b32.xlu0 %v2476, 16
    %v2479 = vpop.permute.xlu0 %2478
    %v2481 = vadd.f32 %v2471, %v2479
    %v2482 = vtanh.pop %v2481
    %2484 = vrot.lane.b32.xlu0 %v2482, 32
    %v2485 = vpop.permute.xlu0 %2484
    %v2487 = vmul.f32 %v2469, %v2485
    %2489 = vrot.lane.b32.xlu0 %v2487, 80
    %v2490 = vpop.permute.xlu0 %2489
    %v2492 = vsel %vm1809, %v2490, %v2481
    %v2494 = vsel %vm1811, %v2492, 0
    %2496 = vmatpush.msra.mxu0 0.0
    %2497 = vmatpush.msra.mxu0 0.0
    %2498 = vmatpush.msra.mxu0 0.0
    %2499 = vmatpush.msra.mxu0 0.0
    %2500 = vmatpush.msra.mxu0 0.0
    %2501 = vmatpush.msra.mxu0 0.0
    %2502 = vmatpush.msra.mxu0 0.0
    %2503 = vmatpush.msra.mxu0 0.0
    %2504 = vmatpush.msra.mxu0 0.0
    %2505 = vmatpush.msra.mxu0 0.0
    %2506 = vmatpush.msra.mxu0 0.0
    %2507 = vmatpush.msra.mxu0 0.0
    %2508 = vmatpush.msra.mxu0 %v2053
    %2509 = vmatpush.msra.mxu0 %v2052
    %2510 = vmatpush.msra.mxu0 %v2051
    %2511 = vmatpush.msra.mxu0 %v2050
    %2512 = vmatmul.f32.gmra.mxu0 %v2494
    %v2513 = vpop.f32.mrf.mxu0
    %v2514 = vadd.f32 %v2056, %v2513
    %2515 = vdwg.mxu0
    %2517 = vrot.lane.b32.xlu0 %v2514, 16
    %v2518 = vpop.permute.xlu0 %2517
    %2520 = vrot.lane.b32.xlu0 %v2514, 32
    %v2521 = vpop.permute.xlu0 %2520
    %2523 = vrot.lane.b32.xlu0 %v2514, 48
    %v2524 = vpop.permute.xlu0 %2523
    %2526 = vrot.lane.b32.xlu0 %v2514, 64
    %v2527 = vpop.permute.xlu0 %2526
    %2529 = vrot.lane.b32.xlu0 %v2514, 80
    %v2530 = vpop.permute.xlu0 %2529
    %2532 = vrot.lane.b32.xlu0 %v2514, 96
    %v2533 = vpop.permute.xlu0 %2532
    %2535 = vrot.lane.b32.xlu0 %v2514, 112
    %v2536 = vpop.permute.xlu0 %2535
    %v2538 = vsel %vm1809, %v2514, %v2518
    %v2539 = vsel %vm1811, %v2538, %v2521
    %v2540 = vsel %vm1813, %v2539, %v2524
    %v2541 = vsel %vm1815, %v2540, %v2527
    %v2542 = vsel %vm1817, %v2541, %v2530
    %v2543 = vsel %vm1819, %v2542, %v2533
    %v2544 = vsel %vm1821, %v2543, %v2536
    %v2545 = vadd.f32 %v2544, %v2049
    %v2546 = vtanh.pop %v2545
    %v2547 = vmul.f32 %v2546, %v2060
    %2548 = vmatpush.msra.mxu0 %v2077
    %2549 = vmatpush.msra.mxu0 %v2076
    %2550 = vmatpush.msra.mxu0 %v2075
    %2551 = vmatpush.msra.mxu0 %v2074
    %2552 = vmatpush.msra.mxu0 %v2073
    %2553 = vmatpush.msra.mxu0 %v2072
    %2554 = vmatpush.msra.mxu0 %v2071
    %2555 = vmatpush.msra.mxu0 %v2070
    %2556 = vmatpush.msra.mxu0 %v2069
    %2557 = vmatpush.msra.mxu0 %v2068
    %2558 = vmatpush.msra.mxu0 %v2067
    %2559 = vmatpush.msra.mxu0 %v2066
    %2560 = vmatpush.msra.mxu0 %v2065
    %2561 = vmatpush.msra.mxu0 %v2064
    %2562 = vmatpush.msra.mxu0 %v2063
    %2563 = vmatpush.msra.mxu0 %v2062
    %2564 = vmatmul.f32.gmra.mxu0 %v2547
    %v2565 = vpop.f32.mrf.mxu0
    %v2566 = vadd.f32 %v2163, %v2565
    %2567 = vdwg.mxu0
    %v2568 = vsel %vm2184, %v2566, -inf
    %2569 = vmax.xlane.f32.xlu0 %v2568
    %v2570 = vpop.xlane.xlu0 %2569
    %v2571 = vsub.f32 %v2566, %v2570
    %v2572 = vmul.f32 %v2571, 1.442695
    %v2573 = vpow.pop %v2572
    %v2574 = vsel %vm2184, %v2573, 0.0
    %2575 = vadd.xlane.f32.xlu0 %v2574
    %v2576 = vpop.xlane.xlu0 %2575
    %v2577 = vrcp.pop %v2576
    %v2578 = vmul.f32 %v2573, %v2577
    %v2580 = vsel %vm2196, %v2578, 0
    %2582 = vmatpush.msra.mxu0 0.0
    %2583 = vmatpush.msra.mxu0 0.0
    %2584 = vmatpush.msra.mxu0 0.0
    %2585 = vmatpush.msra.mxu0 0.0
    %2586 = vmatpush.msra.mxu0 0.0
    %2587 = vmatpush.msra.mxu0 0.0
    %2588 = vmatpush.msra.mxu0 0.0
    %2589 = vmatpush.msra.mxu0 0.0
    %2590 = vmatpush.msra.mxu0 0.0
    %2591 = vmatpush.msra.mxu0 0.0
    %2592 = vmatpush.msra.mxu0 0.0
    %2593 = vmatpush.msra.mxu0 0.0
    %2594 = vmatpush.msra.mxu0 0.0
    %2595 = vmatpush.msra.mxu0 0.0
    %2596 = vmatpush.msra.mxu0 0.0
    %2597 = vmatpush.msra.mxu0 %v2078
    %2598 = vmatmul.f32.gmra.mxu0 %v2580
    %v2599 = vpop.f32.mrf.mxu0
    %v2600 = vadd.f32 0.0, %v2599
    %2601 = vdwg.mxu0
    %v2602 = vmul.f32 %v2600, %v1822
    %2603 = vmatpush.msra.mxu0 %v2094
    %2604 = vmatpush.msra.mxu0 %v2093
    %2605 = vmatpush.msra.mxu0 %v2092
    %2606 = vmatpush.msra.mxu0 %v2091
    %2607 = vmatpush.msra.mxu0 %v2090
    %2608 = vmatpush.msra.mxu0 %v2089
    %2609 = vmatpush.msra.mxu0 %v2088
    %2610 = vmatpush.msra.mxu0 %v2087
    %2611 = vmatpush.msra.mxu0 %v2086
    %2612 = vmatpush.msra.mxu0 %v2085
    %2613 = vmatpush.msra.mxu0 %v2084
    %2614 = vmatpush.msra.mxu0 %v2083
    %2615 = vmatpush.msra.mxu0 %v2082
    %2616 = vmatpush.msra.mxu0 %v2081
    %2617 = vmatpush.msra.mxu0 %v2080
    %2618 = vmatpush.msra.mxu0 %v2079
    %2619 = vmatmul.f32.gmra.mxu0 %v2602
    %v2620 = vpop.f32.mrf.mxu0
    %v2621 = vadd.f32 0.0, %v2620
    %2622 = vdwg.mxu0
    %v2623 = vmul.f32 %v2621, %v2104
    %v2624 = vsel %vm1152, %v2623, 0.0
    %2625 = vadd.xlane.f32.xlu0 %v2624
    %v2626 = vpop.xlane.xlu0 %2625
    %v2627 = vadd.f32 %v2626, %v2245
    %2628 = vrot.lane.b32.xlu0 %v2487, 81
    %v2629 = vpop.permute.xlu0 %2628
    %v2631 = vsel %vm2247, %v2627, %v2629
    %v2633 = vsel %vm2249, %v2631, 0
    %2635 = vmatpush.msra.mxu0 0.0
    %2636 = vmatpush.msra.mxu0 0.0
    %2637 = vmatpush.msra.mxu0 0.0
    %2638 = vmatpush.msra.mxu0 0.0
    %2639 = vmatpush.msra.mxu0 0.0
    %2640 = vmatpush.msra.mxu0 0.0
    %2641 = vmatpush.msra.mxu0 0.0
    %2642 = vmatpush.msra.mxu0 0.0
    %2643 = vmatpush.msra.mxu0 0.0
    %2644 = vmatpush.msra.mxu0 0.0
    %2645 = vmatpush.msra.mxu0 0.0
    %2646 = vmatpush.msra.mxu0 0.0
    %2647 = vmatpush.msra.mxu0 0.0
    %2648 = vmatpush.msra.mxu0 %v2255
    %2649 = vmatpush.msra.mxu0 %v2096
    %2650 = vmatpush.msra.mxu0 %v2095
    %2651 = vmatmul.f32.gmra.mxu0 %v2633
    %v2652 = vpop.f32.mrf.mxu0
    %v2653 = vadd.f32 %v2100, %v2652
    %2654 = vdwg.mxu0
    %v2655 = vmul.f32 %v2653, 0.5
    %v2656 = vtanh.pop %v2655
    %v2657 = vadd.f32 %v2656, 1.0
    %v2658 = vmul.f32 %v2657, 0.5
    %v2659 = vtanh.pop %v2653
    %v2660 = vmul.f32 %v2658, %v2481
    %2662 = vrot.lane.b32.xlu0 %v2659, 96
    %v2663 = vpop.permute.xlu0 %2662
    %v2665 = vmul.f32 %v2658, %v2663
    %2667 = vrot.lane.b32.xlu0 %v2665, 16
    %v2668 = vpop.permute.xlu0 %2667
    %v2670 = vadd.f32 %v2660, %v2668
    %v2671 = vtanh.pop %v2670
    %2673 = vrot.lane.b32.xlu0 %v2671, 32
    %v2674 = vpop.permute.xlu0 %2673
    %v2676 = vmul.f32 %v2658, %v2674
    %2678 = vrot.lane.b32.xlu0 %v2676, 80
    %v2679 = vpop.permute.xlu0 %2678
    %v2681 = vsel %vm1809, %v2679, %v2670
    %v2683 = vsel %vm1811, %v2681, 0
    %2685 = vmatpush.msra.mxu0 0.0
    %2686 = vmatpush.msra.mxu0 0.0
    %2687 = vmatpush.msra.mxu0 0.0
    %2688 = vmatpush.msra.mxu0 0.0
    %2689 = vmatpush.msra.mxu0 0.0
    %2690 = vmatpush.msra.mxu0 0.0
    %2691 = vmatpush.msra.mxu0 0.0
    %2692 = vmatpush.msra.mxu0 0.0
    %2693 = vmatpush.msra.mxu0 0.0
    %2694 = vmatpush.msra.mxu0 0.0
    %2695 = vmatpush.msra.mxu0 0.0
    %2696 = vmatpush.msra.mxu0 0.0
    %2697 = vmatpush.msra.mxu0 %v2053
    %2698 = vmatpush.msra.mxu0 %v2052
    %2699 = vmatpush.msra.mxu0 %v2051
    %2700 = vmatpush.msra.mxu0 %v2050
    %2701 = vmatmul.f32.gmra.mxu0 %v2683
    %v2702 = vpop.f32.mrf.mxu0
    %v2703 = vadd.f32 %v2056, %v2702
    %2704 = vdwg.mxu0
    %2706 = vrot.lane.b32.xlu0 %v2703, 16
    %v2707 = vpop.permute.xlu0 %2706
    %2709 = vrot.lane.b32.xlu0 %v2703, 32
    %v2710 = vpop.permute.xlu0 %2709
    %2712 = vrot.lane.b32.xlu0 %v2703, 48
    %v2713 = vpop.permute.xlu0 %2712
    %2715 = vrot.lane.b32.xlu0 %v2703, 64
    %v2716 = vpop.permute.xlu0 %2715
    %2718 = vrot.lane.b32.xlu0 %v2703, 80
    %v2719 = vpop.permute.xlu0 %2718
    %2721 = vrot.lane.b32.xlu0 %v2703, 96
    %v2722 = vpop.permute.xlu0 %2721
    %2724 = vrot.lane.b32.xlu0 %v2703, 112
    %v2725 = vpop.permute.xlu0 %2724
    %v2727 = vsel %vm1809, %v2703, %v2707
    %v2728 = vsel %vm1811, %v2727, %v2710
    %v2729 = vsel %vm1813, %v2728, %v2713
    %v2730 = vsel %vm1815, %v2729, %v2716
    %v2731 = vsel %vm1817, %v2730, %v2719
    %v2732 = vsel %vm1819, %v2731, %v2722
    %v2733 = vsel %vm1821, %v2732, %v2725
    %v2734 = vadd.f32 %v2733, %v2049
    %v2735 = vtanh.pop %v2734
    %v2736 = vmul.f32 %v2735, %v2060
    %2737 = vmatpush.msra.mxu0 %v2077
    %2738 = vmatpush.msra.mxu0 %v2076
    %2739 = vmatpush.msra.mxu0 %v2075
    %2740 = vmatpush.msra.mxu0 %v2074
    %2741 = vmatpush.msra.mxu0 %v2073
    %2742 = vmatpush.msra.mxu0 %v2072
    %2743 = vmatpush.msra.mxu0 %v2071
    %2744 = vmatpush.msra.mxu0 %v2070
    %2745 = vmatpush.msra.mxu0 %v2069
    %2746 = vmatpush.msra.mxu0 %v2068
    %2747 = vmatpush.msra.mxu0 %v2067
    %2748 = vmatpush.msra.mxu0 %v2066
    %2749 = vmatpush.msra.mxu0 %v2065
    %2750 = vmatpush.msra.mxu0 %v2064
    %2751 = vmatpush.msra.mxu0 %v2063
    %2752 = vmatpush.msra.mxu0 %v2062
    %2753 = vmatmul.f32.gmra.mxu0 %v2736
    %v2754 = vpop.f32.mrf.mxu0
    %v2755 = vadd.f32 %v2163, %v2754
    %2756 = vdwg.mxu0
    %v2757 = vsel %vm2184, %v2755, -inf
    %2758 = vmax.xlane.f32.xlu0 %v2757
    %v2759 = vpop.xlane.xlu0 %2758
    %v2760 = vsub.f32 %v2755, %v2759
    %v2761 = vmul.f32 %v2760, 1.442695
    %v2762 = vpow.pop %v2761
    %v2763 = vsel %vm2184, %v2762, 0.0
    %2764 = vadd.xlane.f32.xlu0 %v2763
    %v2765 = vpop.xlane.xlu0 %2764
    %v2766 = vrcp.pop %v2765
    %v2767 = vmul.f32 %v2762, %v2766
    %v2769 = vsel %vm2196, %v2767, 0
    %2771 = vmatpush.msra.mxu0 0.0
    %2772 = vmatpush.msra.mxu0 0.0
    %2773 = vmatpush.msra.mxu0 0.0
    %2774 = vmatpush.msra.mxu0 0.0
    %2775 = vmatpush.msra.mxu0 0.0
    %2776 = vmatpush.msra.mxu0 0.0
    %2777 = vmatpush.msra.mxu0 0.0
    %2778 = vmatpush.msra.mxu0 0.0
    %2779 = vmatpush.msra.mxu0 0.0
    %2780 = vmatpush.msra.mxu0 0.0
    %2781 = vmatpush.msra.mxu0 0.0
    %2782 = vmatpush.msra.mxu0 0.0
    %2783 = vmatpush.msra.mxu0 0.0
    %2784 = vmatpush.msra.mxu0 0.0
    %2785 = vmatpush.msra.mxu0 0.0
    %2786 = vmatpush.msra.mxu0 %v2078
    %2787 = vmatmul.f32.gmra.mxu0 %v2769
    %v2788 = vpop.f32.mrf.mxu0
    %v2789 = vadd.f32 0.0, %v2788
    %2790 = vdwg.mxu0
    %v2791 = vmul.f32 %v2789, %v1822
    %2792 = vmatpush.msra.mxu0 %v2094
    %2793 = vmatpush.msra.mxu0 %v2093
    %2794 = vmatpush.msra.mxu0 %v2092
    %2795 = vmatpush.msra.mxu0 %v2091
    %2796 = vmatpush.msra.mxu0 %v2090
    %2797 = vmatpush.msra.mxu0 %v2089
    %2798 = vmatpush.msra.mxu0 %v2088
    %2799 = vmatpush.msra.mxu0 %v2087
    %2800 = vmatpush.msra.mxu0 %v2086
    %2801 = vmatpush.msra.mxu0 %v2085
    %2802 = vmatpush.msra.mxu0 %v2084
    %2803 = vmatpush.msra.mxu0 %v2083
    %2804 = vmatpush.msra.mxu0 %v2082
    %2805 = vmatpush.msra.mxu0 %v2081
    %2806 = vmatpush.msra.mxu0 %v2080
    %2807 = vmatpush.msra.mxu0 %v2079
    %2808 = vmatmul.f32.gmra.mxu0 %v2791
    %v2809 = vpop.f32.mrf.mxu0
    %v2810 = vadd.f32 0.0, %v2809
    %2811 = vdwg.mxu0
    %v2812 = vmul.f32 %v2810, %v2104
    %v2813 = vsel %vm1152, %v2812, 0.0
    %2814 = vadd.xlane.f32.xlu0 %v2813
    %v2815 = vpop.xlane.xlu0 %2814
    %v2816 = vadd.f32 %v2815, %v2245
    %2817 = vrot.lane.b32.xlu0 %v2676, 81
    %v2818 = vpop.permute.xlu0 %2817
    %v2820 = vsel %vm2247, %v2816, %v2818
    %v2822 = vsel %vm2249, %v2820, 0
    %2824 = vmatpush.msra.mxu0 0.0
    %2825 = vmatpush.msra.mxu0 0.0
    %2826 = vmatpush.msra.mxu0 0.0
    %2827 = vmatpush.msra.mxu0 0.0
    %2828 = vmatpush.msra.mxu0 0.0
    %2829 = vmatpush.msra.mxu0 0.0
    %2830 = vmatpush.msra.mxu0 0.0
    %2831 = vmatpush.msra.mxu0 0.0
    %2832 = vmatpush.msra.mxu0 0.0
    %2833 = vmatpush.msra.mxu0 0.0
    %2834 = vmatpush.msra.mxu0 0.0
    %2835 = vmatpush.msra.mxu0 0.0
    %2836 = vmatpush.msra.mxu0 0.0
    %2837 = vmatpush.msra.mxu0 %v2255
    %2838 = vmatpush.msra.mxu0 %v2096
    %2839 = vmatpush.msra.mxu0 %v2095
    %2840 = vmatmul.f32.gmra.mxu0 %v2822
    %v2841 = vpop.f32.mrf.mxu0
    %v2842 = vadd.f32 %v2100, %v2841
    %2843 = vdwg.mxu0
    %v2844 = vmul.f32 %v2842, 0.5
    %v2845 = vtanh.pop %v2844
    %v2846 = vadd.f32 %v2845, 1.0
    %v2847 = vmul.f32 %v2846, 0.5
    %v2848 = vtanh.pop %v2842
    %v2849 = vmul.f32 %v2847, %v2670
    %2851 = vrot.lane.b32.xlu0 %v2848, 96
    %v2852 = vpop.permute.xlu0 %2851
    %v2854 = vmul.f32 %v2847, %v2852
    %2856 = vrot.lane.b32.xlu0 %v2854, 16
    %v2857 = vpop.permute.xlu0 %2856
    %v2859 = vadd.f32 %v2849, %v2857
    %v2860 = vtanh.pop %v2859
    %2862 = vrot.lane.b32.xlu0 %v2860, 32
    %v2863 = vpop.permute.xlu0 %2862
    %v2865 = vmul.f32 %v2847, %v2863
    %2867 = vrot.lane.b32.xlu0 %v2865, 80
    %v2868 = vpop.permute.xlu0 %2867
    %v2870 = vsel %vm1809, %v2868, %v2859
    %v2872 = vsel %vm1811, %v2870, 0
    %2874 = vmatpush.msra.mxu0 0.0
    %2875 = vmatpush.msra.mxu0 0.0
    %2876 = vmatpush.msra.mxu0 0.0
    %2877 = vmatpush.msra.mxu0 0.0
    %2878 = vmatpush.msra.mxu0 0.0
    %2879 = vmatpush.msra.mxu0 0.0
    %2880 = vmatpush.msra.mxu0 0.0
    %2881 = vmatpush.msra.mxu0 0.0
    %2882 = vmatpush.msra.mxu0 0.0
    %2883 = vmatpush.msra.mxu0 0.0
    %2884 = vmatpush.msra.mxu0 0.0
    %2885 = vmatpush.msra.mxu0 0.0
    %2886 = vmatpush.msra.mxu0 %v2053
    %2887 = vmatpush.msra.mxu0 %v2052
    %2888 = vmatpush.msra.mxu0 %v2051
    %2889 = vmatpush.msra.mxu0 %v2050
    %2890 = vmatmul.f32.gmra.mxu0 %v2872
    %v2891 = vpop.f32.mrf.mxu0
    %v2892 = vadd.f32 %v2056, %v2891
    %2893 = vdwg.mxu0
    %2895 = vrot.lane.b32.xlu0 %v2892, 16
    %v2896 = vpop.permute.xlu0 %2895
    %2898 = vrot.lane.b32.xlu0 %v2892, 32
    %v2899 = vpop.permute.xlu0 %2898
    %2901 = vrot.lane.b32.xlu0 %v2892, 48
    %v2902 = vpop.permute.xlu0 %2901
    %2904 = vrot.lane.b32.xlu0 %v2892, 64
    %v2905 = vpop.permute.xlu0 %2904
    %2907 = vrot.lane.b32.xlu0 %v2892, 80
    %v2908 = vpop.permute.xlu0 %2907
    %2910 = vrot.lane.b32.xlu0 %v2892, 96
    %v2911 = vpop.permute.xlu0 %2910
    %2913 = vrot.lane.b32.xlu0 %v2892, 112
    %v2914 = vpop.permute.xlu0 %2913
    %v2916 = vsel %vm1809, %v2892, %v2896
    %v2917 = vsel %vm1811, %v2916, %v2899
    %v2918 = vsel %vm1813, %v2917, %v2902
    %v2919 = vsel %vm1815, %v2918, %v2905
    %v2920 = vsel %vm1817, %v2919, %v2908
    %v2921 = vsel %vm1819, %v2920, %v2911
    %v2922 = vsel %vm1821, %v2921, %v2914
    %v2923 = vadd.f32 %v2922, %v2049
    %v2924 = vtanh.pop %v2923
    %v2925 = vmul.f32 %v2924, %v2060
    %2926 = vmatpush.msra.mxu0 %v2077
    %2927 = vmatpush.msra.mxu0 %v2076
    %2928 = vmatpush.msra.mxu0 %v2075
    %2929 = vmatpush.msra.mxu0 %v2074
    %2930 = vmatpush.msra.mxu0 %v2073
    %2931 = vmatpush.msra.mxu0 %v2072
    %2932 = vmatpush.msra.mxu0 %v2071
    %2933 = vmatpush.msra.mxu0 %v2070
    %2934 = vmatpush.msra.mxu0 %v2069
    %2935 = vmatpush.msra.mxu0 %v2068
    %2936 = vmatpush.msra.mxu0 %v2067
    %2937 = vmatpush.msra.mxu0 %v2066
    %2938 = vmatpush.msra.mxu0 %v2065
    %2939 = vmatpush.msra.mxu0 %v2064
    %2940 = vmatpush.msra.mxu0 %v2063
    %2941 = vmatpush.msra.mxu0 %v2062
    %2942 = vmatmul.f32.gmra.mxu0 %v2925
    %v2943 = vpop.f32.mrf.mxu0
    %v2944 = vadd.f32 %v2163, %v2943
    %2945 = vdwg.mxu0
    %v2946 = vsel %vm2184, %v2944, -inf
    %2947 = vmax.xlane.f32.xlu0 %v2946
    %v2948 = vpop.xlane.xlu0 %2947
    %v2949 = vsub.f32 %v2944, %v2948
    %v2950 = vmul.f32 %v2949, 1.442695
    %v2951 = vpow.pop %v2950
    %v2952 = vsel %vm2184, %v2951, 0.0
    %2953 = vadd.xlane.f32.xlu0 %v2952
    %v2954 = vpop.xlane.xlu0 %2953
    %v2955 = vrcp.pop %v2954
    %v2956 = vmul.f32 %v2951, %v2955
    %v2958 = vsel %vm2196, %v2956, 0
    %2960 = vmatpush.msra.mxu0 0.0
    %2961 = vmatpush.msra.mxu0 0.0
    %2962 = vmatpush.msra.mxu0 0.0
    %2963 = vmatpush.msra.mxu0 0.0
    %2964 = vmatpush.msra.mxu0 0.0
    %2965 = vmatpush.msra.mxu0 0.0
    %2966 = vmatpush.msra.mxu0 0.0
    %2967 = vmatpush.msra.mxu0 0.0
    %2968 = vmatpush.msra.mxu0 0.0
    %2969 = vmatpush.msra.mxu0 0.0
    %2970 = vmatpush.msra.mxu0 0.0
    %2971 = vmatpush.msra.mxu0 0.0
    %2972 = vmatpush.msra.mxu0 0.0
    %2973 = vmatpush.msra.mxu0 0.0
    %2974 = vmatpush.msra.mxu0 0.0
    %2975 = vmatpush.msra.mxu0 %v2078
    %2976 = vmatmul.f32.gmra.mxu0 %v2958
    %v2977 = vpop.f32.mrf.mxu0
    %v2978 = vadd.f32 0.0, %v2977
    %2979 = vdwg.mxu0
    %v2980 = vmul.f32 %v2978, %v1822
    %2981 = vmatpush.msra.mxu0 %v2094
    %2982 = vmatpush.msra.mxu0 %v2093
    %2983 = vmatpush.msra.mxu0 %v2092
    %2984 = vmatpush.msra.mxu0 %v2091
    %2985 = vmatpush.msra.mxu0 %v2090
    %2986 = vmatpush.msra.mxu0 %v2089
    %2987 = vmatpush.msra.mxu0 %v2088
    %2988 = vmatpush.msra.mxu0 %v2087
    %2989 = vmatpush.msra.mxu0 %v2086
    %2990 = vmatpush.msra.mxu0 %v2085
    %2991 = vmatpush.msra.mxu0 %v2084
    %2992 = vmatpush.msra.mxu0 %v2083
    %2993 = vmatpush.msra.mxu0 %v2082
    %2994 = vmatpush.msra.mxu0 %v2081
    %2995 = vmatpush.msra.mxu0 %v2080
    %2996 = vmatpush.msra.mxu0 %v2079
    %2997 = vmatmul.f32.gmra.mxu0 %v2980
    %v2998 = vpop.f32.mrf.mxu0
    %v2999 = vadd.f32 0.0, %v2998
    %3000 = vdwg.mxu0
    %v3001 = vmul.f32 %v2999, %v2104
    %v3002 = vsel %vm1152, %v3001, 0.0
    %3003 = vadd.xlane.f32.xlu0 %v3002
    %v3004 = vpop.xlane.xlu0 %3003
    %v3005 = vadd.f32 %v3004, %v2245
    %3006 = vrot.lane.b32.xlu0 %v2865, 81
    %v3007 = vpop.permute.xlu0 %3006
    %v3009 = vsel %vm2247, %v3005, %v3007
    %v3011 = vsel %vm2249, %v3009, 0
    %3013 = vmatpush.msra.mxu0 0.0
    %3014 = vmatpush.msra.mxu0 0.0
    %3015 = vmatpush.msra.mxu0 0.0
    %3016 = vmatpush.msra.mxu0 0.0
    %3017 = vmatpush.msra.mxu0 0.0
    %3018 = vmatpush.msra.mxu0 0.0
    %3019 = vmatpush.msra.mxu0 0.0
    %3020 = vmatpush.msra.mxu0 0.0
    %3021 = vmatpush.msra.mxu0 0.0
    %3022 = vmatpush.msra.mxu0 0.0
    %3023 = vmatpush.msra.mxu0 0.0
    %3024 = vmatpush.msra.mxu0 0.0
    %3025 = vmatpush.msra.mxu0 0.0
    %3026 = vmatpush.msra.mxu0 %v2255
    %3027 = vmatpush.msra.mxu0 %v2096
    %3028 = vmatpush.msra.mxu0 %v2095
    %3029 = vmatmul.f32.gmra.mxu0 %v3011
    %v3030 = vpop.f32.mrf.mxu0
    %v3031 = vadd.f32 %v2100, %v3030
    %3032 = vdwg.mxu0
    %v3033 = vmul.f32 %v3031, 0.5
    %v3034 = vtanh.pop %v3033
    %v3035 = vadd.f32 %v3034, 1.0
    %v3036 = vmul.f32 %v3035, 0.5
    %v3037 = vtanh.pop %v3031
    %v3038 = vmul.f32 %v3036, %v2859
    %3040 = vrot.lane.b32.xlu0 %v3037, 96
    %v3041 = vpop.permute.xlu0 %3040
    %v3043 = vmul.f32 %v3036, %v3041
    %3045 = vrot.lane.b32.xlu0 %v3043, 16
    %v3046 = vpop.permute.xlu0 %3045
    %v3048 = vadd.f32 %v3038, %v3046
    %v3049 = vtanh.pop %v3048
    %3051 = vrot.lane.b32.xlu0 %v3049, 32
    %v3052 = vpop.permute.xlu0 %3051
    %v3054 = vmul.f32 %v3036, %v3052
    %3056 = vrot.lane.b32.xlu0 %v3054, 80
    %v3057 = vpop.permute.xlu0 %3056
    %v3059 = vsel %vm1809, %v3057, %v3048
    %v3061 = vsel %vm1811, %v3059, 0
    %3063 = vmatpush.msra.mxu0 0.0
    %3064 = vmatpush.msra.mxu0 0.0
    %3065 = vmatpush.msra.mxu0 0.0
    %3066 = vmatpush.msra.mxu0 0.0
    %3067 = vmatpush.msra.mxu0 0.0
    %3068 = vmatpush.msra.mxu0 0.0
    %3069 = vmatpush.msra.mxu0 0.0
    %3070 = vmatpush.msra.mxu0 0.0
    %3071 = vmatpush.msra.mxu0 0.0
    %3072 = vmatpush.msra.mxu0 0.0
    %3073 = vmatpush.msra.mxu0 0.0
    %3074 = vmatpush.msra.mxu0 0.0
    %3075 = vmatpush.msra.mxu0 %v2053
    %3076 = vmatpush.msra.mxu0 %v2052
    %3077 = vmatpush.msra.mxu0 %v2051
    %3078 = vmatpush.msra.mxu0 %v2050
    %3079 = vmatmul.f32.gmra.mxu0 %v3061
    %v3080 = vpop.f32.mrf.mxu0
    %v3081 = vadd.f32 %v2056, %v3080
    %3082 = vdwg.mxu0
    %3084 = vrot.lane.b32.xlu0 %v3081, 16
    %v3085 = vpop.permute.xlu0 %3084
    %3087 = vrot.lane.b32.xlu0 %v3081, 32
    %v3088 = vpop.permute.xlu0 %3087
    %3090 = vrot.lane.b32.xlu0 %v3081, 48
    %v3091 = vpop.permute.xlu0 %3090
    %3093 = vrot.lane.b32.xlu0 %v3081, 64
    %v3094 = vpop.permute.xlu0 %3093
    %3096 = vrot.lane.b32.xlu0 %v3081, 80
    %v3097 = vpop.permute.xlu0 %3096
    %3099 = vrot.lane.b32.xlu0 %v3081, 96
    %v3100 = vpop.permute.xlu0 %3099
    %3102 = vrot.lane.b32.xlu0 %v3081, 112
    %v3103 = vpop.permute.xlu0 %3102
    %v3105 = vsel %vm1809, %v3081, %v3085
    %v3106 = vsel %vm1811, %v3105, %v3088
    %v3107 = vsel %vm1813, %v3106, %v3091
    %v3108 = vsel %vm1815, %v3107, %v3094
    %v3109 = vsel %vm1817, %v3108, %v3097
    %v3110 = vsel %vm1819, %v3109, %v3100
    %v3111 = vsel %vm1821, %v3110, %v3103
    %v3112 = vadd.f32 %v3111, %v2049
    %v3113 = vtanh.pop %v3112
    %v3114 = vmul.f32 %v3113, %v2060
    %3115 = vmatpush.msra.mxu0 %v2077
    %3116 = vmatpush.msra.mxu0 %v2076
    %3117 = vmatpush.msra.mxu0 %v2075
    %3118 = vmatpush.msra.mxu0 %v2074
    %3119 = vmatpush.msra.mxu0 %v2073
    %3120 = vmatpush.msra.mxu0 %v2072
    %3121 = vmatpush.msra.mxu0 %v2071
    %3122 = vmatpush.msra.mxu0 %v2070
    %3123 = vmatpush.msra.mxu0 %v2069
    %3124 = vmatpush.msra.mxu0 %v2068
    %3125 = vmatpush.msra.mxu0 %v2067
    %3126 = vmatpush.msra.mxu0 %v2066
    %3127 = vmatpush.msra.mxu0 %v2065
    %3128 = vmatpush.msra.mxu0 %v2064
    %3129 = vmatpush.msra.mxu0 %v2063
    %3130 = vmatpush.msra.mxu0 %v2062
    %3131 = vmatmul.f32.gmra.mxu0 %v3114
    %v3132 = vpop.f32.mrf.mxu0
    %v3133 = vadd.f32 %v2163, %v3132
    %3134 = vdwg.mxu0
    %v3135 = vsel %vm2184, %v3133, -inf
    %3136 = vmax.xlane.f32.xlu0 %v3135
    %v3137 = vpop.xlane.xlu0 %3136
    %v3138 = vsub.f32 %v3133, %v3137
    %v3139 = vmul.f32 %v3138, 1.442695
    %v3140 = vpow.pop %v3139
    %v3141 = vsel %vm2184, %v3140, 0.0
    %3142 = vadd.xlane.f32.xlu0 %v3141
    %v3143 = vpop.xlane.xlu0 %3142
    %v3144 = vrcp.pop %v3143
    %v3145 = vmul.f32 %v3140, %v3144
    %v3147 = vsel %vm2196, %v3145, 0
    %3149 = vmatpush.msra.mxu0 0.0
    %3150 = vmatpush.msra.mxu0 0.0
    %3151 = vmatpush.msra.mxu0 0.0
    %3152 = vmatpush.msra.mxu0 0.0
    %3153 = vmatpush.msra.mxu0 0.0
    %3154 = vmatpush.msra.mxu0 0.0
    %3155 = vmatpush.msra.mxu0 0.0
    %3156 = vmatpush.msra.mxu0 0.0
    %3157 = vmatpush.msra.mxu0 0.0
    %3158 = vmatpush.msra.mxu0 0.0
    %3159 = vmatpush.msra.mxu0 0.0
    %3160 = vmatpush.msra.mxu0 0.0
    %3161 = vmatpush.msra.mxu0 0.0
    %3162 = vmatpush.msra.mxu0 0.0
    %3163 = vmatpush.msra.mxu0 0.0
    %3164 = vmatpush.msra.mxu0 %v2078
    %3165 = vmatmul.f32.gmra.mxu0 %v3147
    %v3166 = vpop.f32.mrf.mxu0
    %v3167 = vadd.f32 0.0, %v3166
    %3168 = vdwg.mxu0
    %v3169 = vmul.f32 %v3167, %v1822
    %3170 = vmatpush.msra.mxu0 %v2094
    %3171 = vmatpush.msra.mxu0 %v2093
    %3172 = vmatpush.msra.mxu0 %v2092
    %3173 = vmatpush.msra.mxu0 %v2091
    %3174 = vmatpush.msra.mxu0 %v2090
    %3175 = vmatpush.msra.mxu0 %v2089
    %3176 = vmatpush.msra.mxu0 %v2088
    %3177 = vmatpush.msra.mxu0 %v2087
    %3178 = vmatpush.msra.mxu0 %v2086
    %3179 = vmatpush.msra.mxu0 %v2085
    %3180 = vmatpush.msra.mxu0 %v2084
    %3181 = vmatpush.msra.mxu0 %v2083
    %3182 = vmatpush.msra.mxu0 %v2082
    %3183 = vmatpush.msra.mxu0 %v2081
    %3184 = vmatpush.msra.mxu0 %v2080
    %3185 = vmatpush.msra.mxu0 %v2079
    %3186 = vmatmul.f32.gmra.mxu0 %v3169
    %v3187 = vpop.f32.mrf.mxu0
    %v3188 = vadd.f32 0.0, %v3187
    %3189 = vdwg.mxu0
    %v3190 = vmul.f32 %v3188, %v2104
    %v3191 = vsel %vm1152, %v3190, 0.0
    %3192 = vadd.xlane.f32.xlu0 %v3191
    %v3193 = vpop.xlane.xlu0 %3192
    %v3194 = vadd.f32 %v3193, %v2245
    %3195 = vrot.lane.b32.xlu0 %v3054, 81
    %v3196 = vpop.permute.xlu0 %3195
    %v3198 = vsel %vm2247, %v3194, %v3196
    %v3200 = vsel %vm2249, %v3198, 0
    %3202 = vmatpush.msra.mxu0 0.0
    %3203 = vmatpush.msra.mxu0 0.0
    %3204 = vmatpush.msra.mxu0 0.0
    %3205 = vmatpush.msra.mxu0 0.0
    %3206 = vmatpush.msra.mxu0 0.0
    %3207 = vmatpush.msra.mxu0 0.0
    %3208 = vmatpush.msra.mxu0 0.0
    %3209 = vmatpush.msra.mxu0 0.0
    %3210 = vmatpush.msra.mxu0 0.0
    %3211 = vmatpush.msra.mxu0 0.0
    %3212 = vmatpush.msra.mxu0 0.0
    %3213 = vmatpush.msra.mxu0 0.0
    %3214 = vmatpush.msra.mxu0 0.0
    %3215 = vmatpush.msra.mxu0 %v2255
    %3216 = vmatpush.msra.mxu0 %v2096
    %3217 = vmatpush.msra.mxu0 %v2095
    %3218 = vmatmul.f32.gmra.mxu0 %v3200
    %v3219 = vpop.f32.mrf.mxu0
    %v3220 = vadd.f32 %v2100, %v3219
    %3221 = vdwg.mxu0
    %v3222 = vmul.f32 %v3220, 0.5
    %v3223 = vtanh.pop %v3222
    %v3224 = vadd.f32 %v3223, 1.0
    %v3225 = vmul.f32 %v3224, 0.5
    %v3226 = vtanh.pop %v3220
    %v3227 = vmul.f32 %v3225, %v3048
    %3229 = vrot.lane.b32.xlu0 %v3226, 96
    %v3230 = vpop.permute.xlu0 %3229
    %v3232 = vmul.f32 %v3225, %v3230
    %3234 = vrot.lane.b32.xlu0 %v3232, 16
    %v3235 = vpop.permute.xlu0 %3234
    %v3237 = vadd.f32 %v3227, %v3235
    %v3238 = vtanh.pop %v3237
    %3240 = vrot.lane.b32.xlu0 %v3238, 32
    %v3241 = vpop.permute.xlu0 %3240
    %v3243 = vmul.f32 %v3225, %v3241
    %3245 = vrot.lane.b32.xlu0 %v3243, 80
    %v3246 = vpop.permute.xlu0 %3245
    %v3248 = vsel %vm1809, %v3246, %v3237
    %v3250 = vsel %vm1811, %v3248, 0
    %3252 = vmatpush.msra.mxu0 0.0
    %3253 = vmatpush.msra.mxu0 0.0
    %3254 = vmatpush.msra.mxu0 0.0
    %3255 = vmatpush.msra.mxu0 0.0
    %3256 = vmatpush.msra.mxu0 0.0
    %3257 = vmatpush.msra.mxu0 0.0
    %3258 = vmatpush.msra.mxu0 0.0
    %3259 = vmatpush.msra.mxu0 0.0
    %3260 = vmatpush.msra.mxu0 0.0
    %3261 = vmatpush.msra.mxu0 0.0
    %3262 = vmatpush.msra.mxu0 0.0
    %3263 = vmatpush.msra.mxu0 0.0
    %3264 = vmatpush.msra.mxu0 %v2053
    %3265 = vmatpush.msra.mxu0 %v2052
    %3266 = vmatpush.msra.mxu0 %v2051
    %3267 = vmatpush.msra.mxu0 %v2050
    %3268 = vmatmul.f32.gmra.mxu0 %v3250
    %v3269 = vpop.f32.mrf.mxu0
    %v3270 = vadd.f32 %v2056, %v3269
    %3271 = vdwg.mxu0
    %3273 = vrot.lane.b32.xlu0 %v3270, 16
    %v3274 = vpop.permute.xlu0 %3273
    %3276 = vrot.lane.b32.xlu0 %v3270, 32
    %v3277 = vpop.permute.xlu0 %3276
    %3279 = vrot.lane.b32.xlu0 %v3270, 48
    %v3280 = vpop.permute.xlu0 %3279
    %3282 = vrot.lane.b32.xlu0 %v3270, 64
    %v3283 = vpop.permute.xlu0 %3282
    %3285 = vrot.lane.b32.xlu0 %v3270, 80
    %v3286 = vpop.permute.xlu0 %3285
    %3288 = vrot.lane.b32.xlu0 %v3270, 96
    %v3289 = vpop.permute.xlu0 %3288
    %3291 = vrot.lane.b32.xlu0 %v3270, 112
    %v3292 = vpop.permute.xlu0 %3291
    %v3294 = vsel %vm1809, %v3270, %v3274
    %v3295 = vsel %vm1811, %v3294, %v3277
    %v3296 = vsel %vm1813, %v3295, %v3280
    %v3297 = vsel %vm1815, %v3296, %v3283
    %v3298 = vsel %vm1817, %v3297, %v3286
    %v3299 = vsel %vm1819, %v3298, %v3289
    %v3300 = vsel %vm1821, %v3299, %v3292
    %v3301 = vadd.f32 %v3300, %v2049
    %v3302 = vtanh.pop %v3301
    %v3303 = vmul.f32 %v3302, %v2060
    %3304 = vmatpush.msra.mxu0 %v2077
    %3305 = vmatpush.msra.mxu0 %v2076
    %3306 = vmatpush.msra.mxu0 %v2075
    %3307 = vmatpush.msra.mxu0 %v2074
    %3308 = vmatpush.msra.mxu0 %v2073
    %3309 = vmatpush.msra.mxu0 %v2072
    %3310 = vmatpush.msra.mxu0 %v2071
    %3311 = vmatpush.msra.mxu0 %v2070
    %3312 = vmatpush.msra.mxu0 %v2069
    %3313 = vmatpush.msra.mxu0 %v2068
    %3314 = vmatpush.msra.mxu0 %v2067
    %3315 = vmatpush.msra.mxu0 %v2066
    %3316 = vmatpush.msra.mxu0 %v2065
    %3317 = vmatpush.msra.mxu0 %v2064
    %3318 = vmatpush.msra.mxu0 %v2063
    %3319 = vmatpush.msra.mxu0 %v2062
    %3320 = vmatmul.f32.gmra.mxu0 %v3303
    %v3321 = vpop.f32.mrf.mxu0
    %v3322 = vadd.f32 %v2163, %v3321
    %3323 = vdwg.mxu0
    %v3324 = vsel %vm2184, %v3322, -inf
    %3325 = vmax.xlane.f32.xlu0 %v3324
    %v3326 = vpop.xlane.xlu0 %3325
    %v3327 = vsub.f32 %v3322, %v3326
    %v3328 = vmul.f32 %v3327, 1.442695
    %v3329 = vpow.pop %v3328
    %v3330 = vsel %vm2184, %v3329, 0.0
    %3331 = vadd.xlane.f32.xlu0 %v3330
    %v3332 = vpop.xlane.xlu0 %3331
    %v3333 = vrcp.pop %v3332
    %v3334 = vmul.f32 %v3329, %v3333
    %v3336 = vsel %vm2196, %v3334, 0
    %3338 = vmatpush.msra.mxu0 0.0
    %3339 = vmatpush.msra.mxu0 0.0
    %3340 = vmatpush.msra.mxu0 0.0
    %3341 = vmatpush.msra.mxu0 0.0
    %3342 = vmatpush.msra.mxu0 0.0
    %3343 = vmatpush.msra.mxu0 0.0
    %3344 = vmatpush.msra.mxu0 0.0
    %3345 = vmatpush.msra.mxu0 0.0
    %3346 = vmatpush.msra.mxu0 0.0
    %3347 = vmatpush.msra.mxu0 0.0
    %3348 = vmatpush.msra.mxu0 0.0
    %3349 = vmatpush.msra.mxu0 0.0
    %3350 = vmatpush.msra.mxu0 0.0
    %3351 = vmatpush.msra.mxu0 0.0
    %3352 = vmatpush.msra.mxu0 0.0
    %3353 = vmatpush.msra.mxu0 %v2078
    %3354 = vmatmul.f32.gmra.mxu0 %v3336
    %v3355 = vpop.f32.mrf.mxu0
    %v3356 = vadd.f32 0.0, %v3355
    %3357 = vdwg.mxu0
    %v3358 = vmul.f32 %v3356, %v1822
    %3359 = vmatpush.msra.mxu0 %v2094
    %3360 = vmatpush.msra.mxu0 %v2093
    %3361 = vmatpush.msra.mxu0 %v2092
    %3362 = vmatpush.msra.mxu0 %v2091
    %3363 = vmatpush.msra.mxu0 %v2090
    %3364 = vmatpush.msra.mxu0 %v2089
    %3365 = vmatpush.msra.mxu0 %v2088
    %3366 = vmatpush.msra.mxu0 %v2087
    %3367 = vmatpush.msra.mxu0 %v2086
    %3368 = vmatpush.msra.mxu0 %v2085
    %3369 = vmatpush.msra.mxu0 %v2084
    %3370 = vmatpush.msra.mxu0 %v2083
    %3371 = vmatpush.msra.mxu0 %v2082
    %3372 = vmatpush.msra.mxu0 %v2081
    %3373 = vmatpush.msra.mxu0 %v2080
    %3374 = vmatpush.msra.mxu0 %v2079
    %3375 = vmatmul.f32.gmra.mxu0 %v3358
    %v3376 = vpop.f32.mrf.mxu0
    %v3377 = vadd.f32 0.0, %v3376
    %3378 = vdwg.mxu0
    %v3379 = vmul.f32 %v3377, %v2104
    %v3380 = vsel %vm1152, %v3379, 0.0
    %3381 = vadd.xlane.f32.xlu0 %v3380
    %v3382 = vpop.xlane.xlu0 %3381
    %v3383 = vadd.f32 %v3382, %v2245
    %3384 = vrot.lane.b32.xlu0 %v3243, 81
    %v3385 = vpop.permute.xlu0 %3384
    %v3387 = vsel %vm2247, %v3383, %v3385
    %v3389 = vsel %vm2249, %v3387, 0
    %3391 = vmatpush.msra.mxu0 0.0
    %3392 = vmatpush.msra.mxu0 0.0
    %3393 = vmatpush.msra.mxu0 0.0
    %3394 = vmatpush.msra.mxu0 0.0
    %3395 = vmatpush.msra.mxu0 0.0
    %3396 = vmatpush.msra.mxu0 0.0
    %3397 = vmatpush.msra.mxu0 0.0
    %3398 = vmatpush.msra.mxu0 0.0
    %3399 = vmatpush.msra.mxu0 0.0
    %3400 = vmatpush.msra.mxu0 0.0
    %3401 = vmatpush.msra.mxu0 0.0
    %3402 = vmatpush.msra.mxu0 0.0
    %3403 = vmatpush.msra.mxu0 0.0
    %3404 = vmatpush.msra.mxu0 %v2255
    %3405 = vmatpush.msra.mxu0 %v2096
    %3406 = vmatpush.msra.mxu0 %v2095
    %3407 = vmatmul.f32.gmra.mxu0 %v3389
    %v3408 = vpop.f32.mrf.mxu0
    %v3409 = vadd.f32 %v2100, %v3408
    %3410 = vdwg.mxu0
    %v3411 = vmul.f32 %v3409, 0.5
    %v3412 = vtanh.pop %v3411
    %v3413 = vadd.f32 %v3412, 1.0
    %v3414 = vmul.f32 %v3413, 0.5
    %v3415 = vtanh.pop %v3409
    %v3416 = vmul.f32 %v3414, %v3237
    %3418 = vrot.lane.b32.xlu0 %v3415, 96
    %v3419 = vpop.permute.xlu0 %3418
    %v3421 = vmul.f32 %v3414, %v3419
    %3423 = vrot.lane.b32.xlu0 %v3421, 16
    %v3424 = vpop.permute.xlu0 %3423
    %v3426 = vadd.f32 %v3416, %v3424
    %v3427 = vtanh.pop %v3426
    %3429 = vrot.lane.b32.xlu0 %v3427, 32
    %v3430 = vpop.permute.xlu0 %3429
    %v3432 = vmul.f32 %v3414, %v3430
    %3434 = vrot.lane.b32.xlu0 %v3432, 80
    %v3435 = vpop.permute.xlu0 %3434
    %v3437 = vsel %vm1809, %v3435, %v3426
    %v3439 = vsel %vm1811, %v3437, 0
    %3441 = vmatpush.msra.mxu0 0.0
    %3442 = vmatpush.msra.mxu0 0.0
    %3443 = vmatpush.msra.mxu0 0.0
    %3444 = vmatpush.msra.mxu0 0.0
    %3445 = vmatpush.msra.mxu0 0.0
    %3446 = vmatpush.msra.mxu0 0.0
    %3447 = vmatpush.msra.mxu0 0.0
    %3448 = vmatpush.msra.mxu0 0.0
    %3449 = vmatpush.msra.mxu0 0.0
    %3450 = vmatpush.msra.mxu0 0.0
    %3451 = vmatpush.msra.mxu0 0.0
    %3452 = vmatpush.msra.mxu0 0.0
    %3453 = vmatpush.msra.mxu0 %v2053
    %3454 = vmatpush.msra.mxu0 %v2052
    %3455 = vmatpush.msra.mxu0 %v2051
    %3456 = vmatpush.msra.mxu0 %v2050
    %3457 = vmatmul.f32.gmra.mxu0 %v3439
    %v3458 = vpop.f32.mrf.mxu0
    %v3459 = vadd.f32 %v2056, %v3458
    %3460 = vdwg.mxu0
    %3462 = vrot.lane.b32.xlu0 %v3459, 16
    %v3463 = vpop.permute.xlu0 %3462
    %3465 = vrot.lane.b32.xlu0 %v3459, 32
    %v3466 = vpop.permute.xlu0 %3465
    %3468 = vrot.lane.b32.xlu0 %v3459, 48
    %v3469 = vpop.permute.xlu0 %3468
    %3471 = vrot.lane.b32.xlu0 %v3459, 64
    %v3472 = vpop.permute.xlu0 %3471
    %3474 = vrot.lane.b32.xlu0 %v3459, 80
    %v3475 = vpop.permute.xlu0 %3474
    %3477 = vrot.lane.b32.xlu0 %v3459, 96
    %v3478 = vpop.permute.xlu0 %3477
    %3480 = vrot.lane.b32.xlu0 %v3459, 112
    %v3481 = vpop.permute.xlu0 %3480
    %v3483 = vsel %vm1809, %v3459, %v3463
    %v3484 = vsel %vm1811, %v3483, %v3466
    %v3485 = vsel %vm1813, %v3484, %v3469
    %v3486 = vsel %vm1815, %v3485, %v3472
    %v3487 = vsel %vm1817, %v3486, %v3475
    %v3488 = vsel %vm1819, %v3487, %v3478
    %v3489 = vsel %vm1821, %v3488, %v3481
    %v3490 = vadd.f32 %v3489, %v2049
    %v3491 = vtanh.pop %v3490
    %v3492 = vmul.f32 %v3491, %v2060
    %3493 = vmatpush.msra.mxu0 %v2077
    %3494 = vmatpush.msra.mxu0 %v2076
    %3495 = vmatpush.msra.mxu0 %v2075
    %3496 = vmatpush.msra.mxu0 %v2074
    %3497 = vmatpush.msra.mxu0 %v2073
    %3498 = vmatpush.msra.mxu0 %v2072
    %3499 = vmatpush.msra.mxu0 %v2071
    %3500 = vmatpush.msra.mxu0 %v2070
    %3501 = vmatpush.msra.mxu0 %v2069
    %3502 = vmatpush.msra.mxu0 %v2068
    %3503 = vmatpush.msra.mxu0 %v2067
    %3504 = vmatpush.msra.mxu0 %v2066
    %3505 = vmatpush.msra.mxu0 %v2065
    %3506 = vmatpush.msra.mxu0 %v2064
    %3507 = vmatpush.msra.mxu0 %v2063
    %3508 = vmatpush.msra.mxu0 %v2062
    %3509 = vmatmul.f32.gmra.mxu0 %v3492
    %v3510 = vpop.f32.mrf.mxu0
    %v3511 = vadd.f32 %v2163, %v3510
    %3512 = vdwg.mxu0
    %v3513 = vsel %vm2184, %v3511, -inf
    %3514 = vmax.xlane.f32.xlu0 %v3513
    %v3515 = vpop.xlane.xlu0 %3514
    %v3516 = vsub.f32 %v3511, %v3515
    %v3517 = vmul.f32 %v3516, 1.442695
    %v3518 = vpow.pop %v3517
    %v3519 = vsel %vm2184, %v3518, 0.0
    %3520 = vadd.xlane.f32.xlu0 %v3519
    %v3521 = vpop.xlane.xlu0 %3520
    %v3522 = vrcp.pop %v3521
    %v3523 = vmul.f32 %v3518, %v3522
    %v3525 = vsel %vm2196, %v3523, 0
    %3527 = vmatpush.msra.mxu0 0.0
    %3528 = vmatpush.msra.mxu0 0.0
    %3529 = vmatpush.msra.mxu0 0.0
    %3530 = vmatpush.msra.mxu0 0.0
    %3531 = vmatpush.msra.mxu0 0.0
    %3532 = vmatpush.msra.mxu0 0.0
    %3533 = vmatpush.msra.mxu0 0.0
    %3534 = vmatpush.msra.mxu0 0.0
    %3535 = vmatpush.msra.mxu0 0.0
    %3536 = vmatpush.msra.mxu0 0.0
    %3537 = vmatpush.msra.mxu0 0.0
    %3538 = vmatpush.msra.mxu0 0.0
    %3539 = vmatpush.msra.mxu0 0.0
    %3540 = vmatpush.msra.mxu0 0.0
    %3541 = vmatpush.msra.mxu0 0.0
    %3542 = vmatpush.msra.mxu0 %v2078
    %3543 = vmatmul.f32.gmra.mxu0 %v3525
    %v3544 = vpop.f32.mrf.mxu0
    %v3545 = vadd.f32 0.0, %v3544
    %3546 = vdwg.mxu0
    %v3547 = vmul.f32 %v3545, %v1822
    %3548 = vmatpush.msra.mxu0 %v2094
    %3549 = vmatpush.msra.mxu0 %v2093
    %3550 = vmatpush.msra.mxu0 %v2092
    %3551 = vmatpush.msra.mxu0 %v2091
    %3552 = vmatpush.msra.mxu0 %v2090
    %3553 = vmatpush.msra.mxu0 %v2089
    %3554 = vmatpush.msra.mxu0 %v2088
    %3555 = vmatpush.msra.mxu0 %v2087
    %3556 = vmatpush.msra.mxu0 %v2086
    %3557 = vmatpush.msra.mxu0 %v2085
    %3558 = vmatpush.msra.mxu0 %v2084
    %3559 = vmatpush.msra.mxu0 %v2083
    %3560 = vmatpush.msra.mxu0 %v2082
    %3561 = vmatpush.msra.mxu0 %v2081
    %3562 = vmatpush.msra.mxu0 %v2080
    %3563 = vmatpush.msra.mxu0 %v2079
    %3564 = vmatmul.f32.gmra.mxu0 %v3547
    %v3565 = vpop.f32.mrf.mxu0
    %v3566 = vadd.f32 0.0, %v3565
    %3567 = vdwg.mxu0
    %v3568 = vmul.f32 %v3566, %v2104
    %v3569 = vsel %vm1152, %v3568, 0.0
    %3570 = vadd.xlane.f32.xlu0 %v3569
    %v3571 = vpop.xlane.xlu0 %3570
    %v3572 = vadd.f32 %v3571, %v2245
    %3573 = vrot.lane.b32.xlu0 %v3432, 81
    %v3574 = vpop.permute.xlu0 %3573
    %v3576 = vsel %vm2247, %v3572, %v3574
    %v3578 = vsel %vm2249, %v3576, 0
    %3580 = vmatpush.msra.mxu0 0.0
    %3581 = vmatpush.msra.mxu0 0.0
    %3582 = vmatpush.msra.mxu0 0.0
    %3583 = vmatpush.msra.mxu0 0.0
    %3584 = vmatpush.msra.mxu0 0.0
    %3585 = vmatpush.msra.mxu0 0.0
    %3586 = vmatpush.msra.mxu0 0.0
    %3587 = vmatpush.msra.mxu0 0.0
    %3588 = vmatpush.msra.mxu0 0.0
    %3589 = vmatpush.msra.mxu0 0.0
    %3590 = vmatpush.msra.mxu0 0.0
    %3591 = vmatpush.msra.mxu0 0.0
    %3592 = vmatpush.msra.mxu0 0.0
    %3593 = vmatpush.msra.mxu0 %v2255
    %3594 = vmatpush.msra.mxu0 %v2096
    %3595 = vmatpush.msra.mxu0 %v2095
    %3596 = vmatmul.f32.gmra.mxu0 %v3578
    %v3597 = vpop.f32.mrf.mxu0
    %v3598 = vadd.f32 %v2100, %v3597
    %3599 = vdwg.mxu0
    %v3600 = vmul.f32 %v3598, 0.5
    %v3601 = vtanh.pop %v3600
    %v3602 = vadd.f32 %v3601, 1.0
    %v3603 = vmul.f32 %v3602, 0.5
    %v3604 = vtanh.pop %v3598
    %v3605 = vmul.f32 %v3603, %v3426
    %3607 = vrot.lane.b32.xlu0 %v3604, 96
    %v3608 = vpop.permute.xlu0 %3607
    %v3610 = vmul.f32 %v3603, %v3608
    %3612 = vrot.lane.b32.xlu0 %v3610, 16
    %v3613 = vpop.permute.xlu0 %3612
    %v3615 = vadd.f32 %v3605, %v3613
    %v3616 = vtanh.pop %v3615
    %3618 = vrot.lane.b32.xlu0 %v3616, 32
    %v3619 = vpop.permute.xlu0 %3618
    %v3621 = vmul.f32 %v3603, %v3619
    %3623 = vrot.lane.b32.xlu0 %v3621, 80
    %v3624 = vpop.permute.xlu0 %3623
    %3627 = vrot.lane.b32.xlu0 %v3566, 16
    %v3628 = vpop.permute.xlu0 %3627
    %v3630 = vsel %vm1809, %v3624, %v3628
    %v3631 = vld [vmem:[%s15] sm:$0xff]
    %v3632 = vld [vmem:[%s15 + $0x8] sm:$0xff]
    %v3633 = vld [vmem:[%s15 + $0x10] sm:$0xff]
    %v3634 = vld [vmem:[%s15 + $0x18] sm:$0xff]
    %v3635 = vld [vmem:[%s16] sm:$0x1]
    %v3637 = vperm.slane %v3635, 0
    %v3640 = vsel %vm1811, %v3630, 0
    %3642 = vmatpush.msra.mxu0 0.0
    %3643 = vmatpush.msra.mxu0 0.0
    %3644 = vmatpush.msra.mxu0 0.0
    %3645 = vmatpush.msra.mxu0 0.0
    %3646 = vmatpush.msra.mxu0 0.0
    %3647 = vmatpush.msra.mxu0 0.0
    %3648 = vmatpush.msra.mxu0 0.0
    %3649 = vmatpush.msra.mxu0 0.0
    %3650 = vmatpush.msra.mxu0 0.0
    %3651 = vmatpush.msra.mxu0 0.0
    %3652 = vmatpush.msra.mxu0 0.0
    %3653 = vmatpush.msra.mxu0 0.0
    %3654 = vmatpush.msra.mxu0 %v3634
    %3655 = vmatpush.msra.mxu0 %v3633
    %3656 = vmatpush.msra.mxu0 %v3632
    %3657 = vmatpush.msra.mxu0 %v3631
    %3658 = vmatmul.f32.gmra.mxu0 %v3640
    %v3659 = vpop.f32.mrf.mxu0
    %v3660 = vadd.f32 %v3637, %v3659
    %3661 = vdwg.mxu0
    %vm3662 = vcmask 33792
    %3663 = vst.msk [vmem:[#allocation14] sm:$0x3] %vm3662, %v3660
    // Predicated region
    $region134: #{net_forward.1} parent=1 // pred_check
      _
    $region135: #{net_forward.1} parent=1 // pred_check_branch
      %3665 = sbr.rel (0) target = $region137
    $region136: #{net_forward.1} parent=1 // pred_region
      %3667 = vsyncadd [#allocation6], 0
      %s3669 = sshll.u32 [#allocation14], 4
      %s3670 = int_to_ptr.vmem [resolvable:$true] %s3669
      %s3671 = sshll.u32 %s28, 4
      %s3672 = int_to_ptr.hbm [resolvable:$true] %s3671
      %3674 = dma.vmem_to_hbm [thread:$0]  %s3670, 32, %s3672, [#allocation6]
    $region137: #{net_forward.1} parent=1 // pred_fallthru
      _
    // Predicated region
    $region138: #{net_forward.1} parent=1 // pred_check
      _
    $region139: #{net_forward.1} parent=1 // pred_check_branch
      %3676 = sbr.rel (0) target = $region141
    $region140: #{net_forward.1} parent=1 // pred_region
      %3678 = dma.done [#allocation6], 32
    $region141: #{net_forward.1} parent=1 // pred_fallthru
      _
    %3679 = vsyncpa [#allocation6], 1
    %3680 = vsyncpa [#allocation7], 1
    %3681 = vsyncpa [#allocation9], 1
    %3682 = vsyncpa [#allocation12], 1

</llo_original>
